<compile_context>
chip_gen: v6e
topology: v6e:2x2x1
jax: 0.10.0
libtpu: 0.0.40
codegen_flags: <defaults>
</compile_context>

<pallas_src>
import math
from functools import partial

import jax
import jax.numpy as jnp
import numpy as np
from jax.experimental import pallas as pl
from jax.experimental.pallas import tpu as pltpu


def _cross_attn_kernel(q_ref, k_ref, v_ref,
                       wq_ref, bq_ref, wk_ref, bk_ref, wv_ref, bv_ref,
                       wo_ref, bo_ref, o_ref, *, num_heads):
    Bt, Lq, Dq = q_ref.shape
    _, Lk, Dkv = k_ref.shape
    E = wq_ref.shape[1]
    Dh = E // num_heads

    # Flatten batch into the matmul M dimension (layout-preserving reshape:
    # last dim / lane axis unchanged, L is a multiple of the 8-sublane tile).
    q2 = q_ref[...].reshape(Bt * Lq, Dq)
    k2 = k_ref[...].reshape(Bt * Lk, Dkv)
    v2 = v_ref[...].reshape(Bt * Lk, Dkv)

    # Fused (outer Linear ∘ MHA in_proj); weights pre-transposed, 1/sqrt(Dh)
    # already folded into the Q weights/bias.
    qh = (jnp.dot(q2, wq_ref[...], preferred_element_type=jnp.float32)
          + bq_ref[...]).reshape(Bt, Lq, E)
    kh = (jnp.dot(k2, wk_ref[...], preferred_element_type=jnp.float32)
          + bk_ref[...]).reshape(Bt, Lk, E)
    vh = (jnp.dot(v2, wv_ref[...], preferred_element_type=jnp.float32)
          + bv_ref[...]).reshape(Bt, Lk, E)

    # Per-head attention, batched over Bt. Static head loop (num_heads is tiny);
    # static lane slices avoid any head-axis transpose/relayout.
    head_outs = []
    for h in range(num_heads):
        lo = h * Dh
        q_h = qh[:, :, lo:lo + Dh]          # (Bt, Lq, Dh)
        k_h = kh[:, :, lo:lo + Dh]          # (Bt, Lk, Dh)
        v_h = vh[:, :, lo:lo + Dh]          # (Bt, Lk, Dh)

        logits = jnp.einsum('bqd,bkd->bqk', q_h, k_h,
                            preferred_element_type=jnp.float32)   # (Bt, Lq, Lk)
        m = jnp.max(logits, axis=-1, keepdims=True)               # XLU reduce
        p = jnp.exp(logits - m)                                   # EUP
        l = jnp.sum(p, axis=-1, keepdims=True)
        p = p * pl.reciprocal(l, approx=True)                     # EUP, not VALU divide
        head_outs.append(jnp.einsum('bqk,bkd->bqd', p, v_h,
                                    preferred_element_type=jnp.float32))

    attn = jnp.concatenate(head_outs, axis=-1).reshape(Bt * Lq, E)

    # MHA output projection (weight pre-transposed).
    out = jnp.dot(attn, wo_ref[...], preferred_element_type=jnp.float32) + bo_ref[...]
    o_ref[...] = out.reshape(Bt, Lq, E).astype(o_ref.dtype)


def cross_attention_layer(query, key, value, params, *, num_heads, batch_block=None):
    """Pallas implementation of CrossAttentionLayer.forward (attention_mask=None)."""
    B, Lq, Dq = query.shape
    _, Lk, Dkv = key.shape
    E = params["w_out"].shape[0]
    Dh = E // num_heads
    scale = 1.0 / math.sqrt(Dh)

    # ---- Host-side algebraic fusion of outer projections with the MHA in_proj ----
    w_in, b_in = params["w_in"], params["b_in"]
    wq_in, wk_in, wv_in = w_in[0:E], w_in[E:2 * E], w_in[2 * E:3 * E]
    bq_in, bk_in, bv_in = b_in[0:E], b_in[E:2 * E], b_in[2 * E:3 * E]

    # y = ((x @ Wp.T + bp) @ Win.T + bin) == x @ (Win @ Wp).T + (Win @ bp + bin)
    wq_c = (scale * (wq_in @ params["wq"])).T                       # (Dq,  E), scale folded in
    bq_c = (scale * (wq_in @ params["bq"] + bq_in)).reshape(1, E)
    wk_c = (wk_in @ params["wk"]).T                                 # (Dkv, E)
    bk_c = (wk_in @ params["bk"] + bk_in).reshape(1, E)
    wv_c = (wv_in @ params["wv"]).T                                 # (Dkv, E)
    bv_c = (wv_in @ params["bv"] + bv_in).reshape(1, E)
    wo_t = params["w_out"].T                                        # (E, E), pre-transposed
    bo = params["b_out"].reshape(1, E)

    # ---- Batch blocking ----
    bt = batch_block if batch_block is not None else min(B, 8)
    nb = (B + bt - 1) // bt
    B_pad = nb * bt
    if B_pad != B:
        pad = ((0, B_pad - B), (0, 0), (0, 0))
        query = jnp.pad(query, pad)
        key = jnp.pad(key, pad)
        value = jnp.pad(value, pad)

    # Constant index_map -> weights stay resident in VMEM across grid steps.
    full = lambda shape: pl.BlockSpec(shape, lambda b: (0,) * len(shape))

    flops = 2 * B_pad * (Lq * Dq * E + 2 * Lk * Dkv * E
                         + 2 * num_heads * Lq * Lk * Dh + Lq * E * E)
    transcendentals = B_pad * num_heads * Lq * Lk
    bytes_accessed = 4 * (B_pad * (Lq * Dq + 2 * Lk * Dkv + Lq * E)
                          + Dq * E + 2 * Dkv * E + E * E + 5 * E)

    out = pl.pallas_call(
        partial(_cross_attn_kernel, num_heads=num_heads),
        out_shape=jax.ShapeDtypeStruct((B_pad, Lq, E), query.dtype),
        grid_spec=pltpu.PrefetchScalarGridSpec(
            num_scalar_prefetch=0,
            grid=(nb,),
            in_specs=[
                pl.BlockSpec((bt, Lq, Dq), lambda b: (b, 0, 0)),    # query block
                pl.BlockSpec((bt, Lk, Dkv), lambda b: (b, 0, 0)),   # key block
                pl.BlockSpec((bt, Lk, Dkv), lambda b: (b, 0, 0)),   # value block
                full((Dq, E)), full((1, E)),                        # fused Q weight/bias
                full((Dkv, E)), full((1, E)),                       # fused K weight/bias
                full((Dkv, E)), full((1, E)),                       # fused V weight/bias
                full((E, E)), full((1, E)),                         # out_proj weight/bias
            ],
            out_specs=pl.BlockSpec((bt, Lq, E), lambda b: (b, 0, 0)),
        ),
        compiler_params=pltpu.CompilerParams(
            dimension_semantics=("parallel",)),
        cost_estimate=pl.CostEstimate(flops=flops,
                                      transcendentals=transcendentals,
                                      bytes_accessed=bytes_accessed),
    )(query, key, value,
      wq_c, bq_c, wk_c, bk_c, wv_c, bv_c, wo_t, bo)

    return out[:B] if B_pad != B else out


def _reference(query, key, value, params, *, num_heads):
    """Pure-JAX reference matching the PyTorch forward semantics (unfused)."""
    E = params["wq"].shape[0]
    q = query @ params["wq"].T + params["bq"]
    k = key @ params["wk"].T + params["bk"]
    v = value @ params["wv"].T + params["bv"]

    w_in, b_in = params["w_in"], params["b_in"]
    qh = q @ w_in[0:E].T + b_in[0:E]
    kh = k @ w_in[E:2 * E].T + b_in[E:2 * E]
    vh = v @ w_in[2 * E:3 * E].T + b_in[2 * E:3 * E]

    B, Lq, _ = q.shape
    Lk = k.shape[1]
    H, Dh = num_heads, E // num_heads
    qh = qh.reshape(B, Lq, H, Dh).transpose(0, 2, 1, 3) / math.sqrt(Dh)
    kh = kh.reshape(B, Lk, H, Dh).transpose(0, 2, 1, 3)
    vh = vh.reshape(B, Lk, H, Dh).transpose(0, 2, 1, 3)

    logits = jnp.einsum("bhqd,bhkd->bhqk", qh, kh)
    p = jax.nn.softmax(logits, axis=-1)
    o = jnp.einsum("bhqk,bhkd->bhqd", p, vh)
    o = o.transpose(0, 2, 1, 3).reshape(B, Lq, E)
    return o @ params["w_out"].T + params["b_out"]


def init_params(key, query_dim, key_value_dim, out_dim):
    ks = jax.random.split(key, 8)
    s = 0.05
    return {
        "wq": s * jax.random.normal(ks[0], (out_dim, query_dim), jnp.float32),
        "bq": s * jax.random.normal(ks[1], (out_dim,), jnp.float32),
        "wk": s * jax.random.normal(ks[2], (out_dim, key_value_dim), jnp.float32),
        "bk": s * jax.random.normal(ks[3], (out_dim,), jnp.float32),
        "wv": s * jax.random.normal(ks[4], (out_dim, key_value_dim), jnp.float32),
        "bv": s * jax.random.normal(ks[5], (out_dim,), jnp.float32),
        "w_in": s * jax.random.normal(ks[6], (3 * out_dim, out_dim), jnp.float32),
        "b_in": jnp.zeros((3 * out_dim,), jnp.float32),
        "w_out": s * jax.random.normal(ks[7], (out_dim, out_dim), jnp.float32),
        "b_out": jnp.zeros((out_dim,), jnp.float32),
    }


if __name__ == "__main__":
    B, Lq, Lk = 8, 16, 8
    query_dim, key_value_dim, out_dim, num_heads = 16, 24, 32, 2

    root = jax.random.PRNGKey(0)
    k_q, k_k, k_v, k_p = jax.random.split(root, 4)
    query = jax.random.normal(k_q, (B, Lq, query_dim), jnp.float32)
    key = jax.random.normal(k_k, (B, Lk, key_value_dim), jnp.float32)
    value = jax.random.normal(k_v, (B, Lk, key_value_dim), jnp.float32)
    params = init_params(k_p, query_dim, key_value_dim, out_dim)

    ref = _reference(query, key, value, params, num_heads=num_heads)

    # Jit the wrapper so the host-side weight-fusion matmuls are compiled & cached.
    fn = jax.jit(cross_attention_layer, static_argnames=("num_heads", "batch_block"))

    # Main case: whole batch in a single grid step (bt = 8).
    out = fn(query, key, value, params, num_heads=num_heads)
    out = jax.block_until_ready(out)
    assert out.shape == (B, Lq, out_dim)
    np.testing.assert_allclose(np.asarray(out), np.asarray(ref), rtol=1e-2, atol=1e-2)

    # Multi-step case: 2 grid steps of 4 batch elements each.
    out1 = fn(query, key, value, params, num_heads=num_heads, batch_block=4)
    out1 = jax.block_until_ready(out1)
    np.testing.assert_allclose(np.asarray(out1), np.asarray(ref), rtol=1e-2, atol=1e-2)

    # Ragged-batch case (exercises the zero-padding path): B=5 with batch_block=4.
    out2 = fn(query[:5], key[:5], value[:5], params,
              num_heads=num_heads, batch_block=4)
    out2 = jax.block_until_ready(out2)
    np.testing.assert_allclose(np.asarray(out2), np.asarray(ref[:5]), rtol=1e-2, atol=1e-2)

    print("KERNEL_OK")
</pallas_src>

<mosaic_0001>
module attributes {stable_mosaic.version = 11 : i64} {
  func.func @_cross_attn_kernel(%arg0: i32, %arg1: memref<8x16x16xf32, #tpu.memory_space<vmem>>, %arg2: memref<8x8x24xf32, #tpu.memory_space<vmem>>, %arg3: memref<8x8x24xf32, #tpu.memory_space<vmem>>, %arg4: memref<16x32xf32, #tpu.memory_space<vmem>>, %arg5: memref<1x32xf32, #tpu.memory_space<vmem>>, %arg6: memref<24x32xf32, #tpu.memory_space<vmem>>, %arg7: memref<1x32xf32, #tpu.memory_space<vmem>>, %arg8: memref<24x32xf32, #tpu.memory_space<vmem>>, %arg9: memref<1x32xf32, #tpu.memory_space<vmem>>, %arg10: memref<32x32xf32, #tpu.memory_space<vmem>>, %arg11: memref<1x32xf32, #tpu.memory_space<vmem>>, %arg12: memref<8x16x32xf32, #tpu.memory_space<vmem>>) attributes {dimension_semantics = [#tpu.dimension_semantics<parallel>], iteration_bounds = array<i64: 1>, scalar_prefetch = 0 : i64, scratch_operands = 0 : i64, tpu.core_type = #tpu.core_type<tc>, window_params = [{transform_indices = @transform_0, window_bounds = array<i64: 8, 16, 16>}, {transform_indices = @transform_1, window_bounds = array<i64: 8, 8, 24>}, {transform_indices = @transform_2, window_bounds = array<i64: 8, 8, 24>}, {pipeline_mode = #tpu.pipeline_mode<synchronous>, transform_indices = @transform_3, window_bounds = array<i64: 16, 32>}, {pipeline_mode = #tpu.pipeline_mode<synchronous>, transform_indices = @transform_4, window_bounds = array<i64: 1, 32>}, {pipeline_mode = #tpu.pipeline_mode<synchronous>, transform_indices = @transform_5, window_bounds = array<i64: 24, 32>}, {pipeline_mode = #tpu.pipeline_mode<synchronous>, transform_indices = @transform_6, window_bounds = array<i64: 1, 32>}, {pipeline_mode = #tpu.pipeline_mode<synchronous>, transform_indices = @transform_7, window_bounds = array<i64: 24, 32>}, {pipeline_mode = #tpu.pipeline_mode<synchronous>, transform_indices = @transform_8, window_bounds = array<i64: 1, 32>}, {pipeline_mode = #tpu.pipeline_mode<synchronous>, transform_indices = @transform_9, window_bounds = array<i64: 32, 32>}, {pipeline_mode = #tpu.pipeline_mode<synchronous>, transform_indices = @transform_10, window_bounds = array<i64: 1, 32>}, {transform_indices = @transform_11, window_bounds = array<i64: 8, 16, 32>}]} {
    %c0 = arith.constant 0 : index
    %c0_0 = arith.constant 0 : index
    %c0_1 = arith.constant 0 : index
    %0 = vector.load %arg1[%c0, %c0_0, %c0_1] : memref<8x16x16xf32, #tpu.memory_space<vmem>>, vector<8x16x16xf32>
    %1 = vector.shape_cast %0 : vector<8x16x16xf32> to vector<128x16xf32>
    %c0_2 = arith.constant 0 : index
    %c0_3 = arith.constant 0 : index
    %c0_4 = arith.constant 0 : index
    %2 = vector.load %arg2[%c0_2, %c0_3, %c0_4] : memref<8x8x24xf32, #tpu.memory_space<vmem>>, vector<8x8x24xf32>
    %3 = vector.shape_cast %2 : vector<8x8x24xf32> to vector<64x24xf32>
    %c0_5 = arith.constant 0 : index
    %c0_6 = arith.constant 0 : index
    %c0_7 = arith.constant 0 : index
    %4 = vector.load %arg3[%c0_5, %c0_6, %c0_7] : memref<8x8x24xf32, #tpu.memory_space<vmem>>, vector<8x8x24xf32>
    %5 = vector.shape_cast %4 : vector<8x8x24xf32> to vector<64x24xf32>
    %c0_8 = arith.constant 0 : index
    %c0_9 = arith.constant 0 : index
    %6 = vector.load %arg4[%c0_8, %c0_9] : memref<16x32xf32, #tpu.memory_space<vmem>>, vector<16x32xf32>
    %cst = arith.constant dense<0.000000e+00> : vector<128x32xf32>
    %7 = tpu.matmul %1, %6, %cst {dimension_numbers = #tpu.dot_dimension_numbers<[1], [0], [0], [1], [0, 0, 1, 1], [], []>} : vector<128x16xf32>, vector<16x32xf32>, vector<128x32xf32> -> vector<128x32xf32>
    %c0_10 = arith.constant 0 : index
    %c0_11 = arith.constant 0 : index
    %8 = vector.load %arg5[%c0_10, %c0_11] : memref<1x32xf32, #tpu.memory_space<vmem>>, vector<1x32xf32>
    %9 = vector.broadcast %8 : vector<1x32xf32> to vector<128x32xf32>
    %10 = arith.addf %7, %9 : vector<128x32xf32>
    %11 = vector.shape_cast %10 : vector<128x32xf32> to vector<8x16x32xf32>
    %c0_12 = arith.constant 0 : index
    %c0_13 = arith.constant 0 : index
    %12 = vector.load %arg6[%c0_12, %c0_13] : memref<24x32xf32, #tpu.memory_space<vmem>>, vector<24x32xf32>
    %cst_14 = arith.constant dense<0.000000e+00> : vector<64x32xf32>
    %13 = tpu.matmul %3, %12, %cst_14 {dimension_numbers = #tpu.dot_dimension_numbers<[1], [0], [0], [1], [0, 0, 1, 1], [], []>} : vector<64x24xf32>, vector<24x32xf32>, vector<64x32xf32> -> vector<64x32xf32>
    %c0_15 = arith.constant 0 : index
    %c0_16 = arith.constant 0 : index
    %14 = vector.load %arg7[%c0_15, %c0_16] : memref<1x32xf32, #tpu.memory_space<vmem>>, vector<1x32xf32>
    %15 = vector.broadcast %14 : vector<1x32xf32> to vector<64x32xf32>
    %16 = arith.addf %13, %15 : vector<64x32xf32>
    %17 = vector.shape_cast %16 : vector<64x32xf32> to vector<8x8x32xf32>
    %c0_17 = arith.constant 0 : index
    %c0_18 = arith.constant 0 : index
    %18 = vector.load %arg8[%c0_17, %c0_18] : memref<24x32xf32, #tpu.memory_space<vmem>>, vector<24x32xf32>
    %cst_19 = arith.constant dense<0.000000e+00> : vector<64x32xf32>
    %19 = tpu.matmul %5, %18, %cst_19 {dimension_numbers = #tpu.dot_dimension_numbers<[1], [0], [0], [1], [0, 0, 1, 1], [], []>} : vector<64x24xf32>, vector<24x32xf32>, vector<64x32xf32> -> vector<64x32xf32>
    %c0_20 = arith.constant 0 : index
    %c0_21 = arith.constant 0 : index
    %20 = vector.load %arg9[%c0_20, %c0_21] : memref<1x32xf32, #tpu.memory_space<vmem>>, vector<1x32xf32>
    %21 = vector.broadcast %20 : vector<1x32xf32> to vector<64x32xf32>
    %22 = arith.addf %19, %21 : vector<64x32xf32>
    %23 = vector.shape_cast %22 : vector<64x32xf32> to vector<8x8x32xf32>
    %24 = vector.extract_strided_slice %11 {offsets = [0, 0, 0], sizes = [8, 16, 16], strides = [1, 1, 1]} : vector<8x16x32xf32> to vector<8x16x16xf32>
    %25 = vector.extract_strided_slice %17 {offsets = [0, 0, 0], sizes = [8, 8, 16], strides = [1, 1, 1]} : vector<8x8x32xf32> to vector<8x8x16xf32>
    %26 = vector.extract_strided_slice %23 {offsets = [0, 0, 0], sizes = [8, 8, 16], strides = [1, 1, 1]} : vector<8x8x32xf32> to vector<8x8x16xf32>
    "tpu.trace_start"() <{level = 10 : i32, message = "bqd,bkd->bqk"}> : () -> ()
    %cst_22 = arith.constant dense<0.000000e+00> : vector<8x16x8xf32>
    %27 = tpu.matmul %24, %25, %cst_22 {dimension_numbers = #tpu.dot_dimension_numbers<[2], [2], [1], [1], [0, 0, 0, 1, 1, 1], [0], [0]>} : vector<8x16x16xf32>, vector<8x8x16xf32>, vector<8x16x8xf32> -> vector<8x16x8xf32>
    "tpu.trace_stop"() : () -> ()
    %cst_23 = arith.constant dense<0xFF800000> : vector<8x16xf32>
    %28 = vector.multi_reduction <maximumf>, %27, %cst_23 [2] : vector<8x16x8xf32> to vector<8x16xf32>
    %29 = vector.shape_cast %28 : vector<8x16xf32> to vector<8x16x1xf32>
    %30 = vector.broadcast %29 : vector<8x16x1xf32> to vector<8x16x8xf32>
    %31 = arith.subf %27, %30 : vector<8x16x8xf32>
    %32 = math.exp %31 : vector<8x16x8xf32>
    %cst_24 = arith.constant dense<0.000000e+00> : vector<8x16xf32>
    %33 = vector.multi_reduction <add>, %32, %cst_24 [2] : vector<8x16x8xf32> to vector<8x16xf32>
    %34 = vector.shape_cast %33 : vector<8x16xf32> to vector<8x16x1xf32>
    %35 = tpu.reciprocal %34 {approx = true} : vector<8x16x1xf32> -> vector<8x16x1xf32>
    %36 = vector.broadcast %35 : vector<8x16x1xf32> to vector<8x16x8xf32>
    %37 = arith.mulf %32, %36 : vector<8x16x8xf32>
    "tpu.trace_start"() <{level = 10 : i32, message = "bqk,bkd->bqd"}> : () -> ()
    %cst_25 = arith.constant dense<0.000000e+00> : vector<8x16x16xf32>
    %38 = tpu.matmul %37, %26, %cst_25 {dimension_numbers = #tpu.dot_dimension_numbers<[2], [1], [1], [2], [0, 0, 0, 1, 1, 2], [0], [0]>} : vector<8x16x8xf32>, vector<8x8x16xf32>, vector<8x16x16xf32> -> vector<8x16x16xf32>
    "tpu.trace_stop"() : () -> ()
    %39 = vector.extract_strided_slice %11 {offsets = [0, 0, 16], sizes = [8, 16, 16], strides = [1, 1, 1]} : vector<8x16x32xf32> to vector<8x16x16xf32>
    %40 = vector.extract_strided_slice %17 {offsets = [0, 0, 16], sizes = [8, 8, 16], strides = [1, 1, 1]} : vector<8x8x32xf32> to vector<8x8x16xf32>
    %41 = vector.extract_strided_slice %23 {offsets = [0, 0, 16], sizes = [8, 8, 16], strides = [1, 1, 1]} : vector<8x8x32xf32> to vector<8x8x16xf32>
    "tpu.trace_start"() <{level = 10 : i32, message = "bqd,bkd->bqk"}> : () -> ()
    %cst_26 = arith.constant dense<0.000000e+00> : vector<8x16x8xf32>
    %42 = tpu.matmul %39, %40, %cst_26 {dimension_numbers = #tpu.dot_dimension_numbers<[2], [2], [1], [1], [0, 0, 0, 1, 1, 1], [0], [0]>} : vector<8x16x16xf32>, vector<8x8x16xf32>, vector<8x16x8xf32> -> vector<8x16x8xf32>
    "tpu.trace_stop"() : () -> ()
    %cst_27 = arith.constant dense<0xFF800000> : vector<8x16xf32>
    %43 = vector.multi_reduction <maximumf>, %42, %cst_27 [2] : vector<8x16x8xf32> to vector<8x16xf32>
    %44 = vector.shape_cast %43 : vector<8x16xf32> to vector<8x16x1xf32>
    %45 = vector.broadcast %44 : vector<8x16x1xf32> to vector<8x16x8xf32>
    %46 = arith.subf %42, %45 : vector<8x16x8xf32>
    %47 = math.exp %46 : vector<8x16x8xf32>
    %cst_28 = arith.constant dense<0.000000e+00> : vector<8x16xf32>
    %48 = vector.multi_reduction <add>, %47, %cst_28 [2] : vector<8x16x8xf32> to vector<8x16xf32>
    %49 = vector.shape_cast %48 : vector<8x16xf32> to vector<8x16x1xf32>
    %50 = tpu.reciprocal %49 {approx = true} : vector<8x16x1xf32> -> vector<8x16x1xf32>
    %51 = vector.broadcast %50 : vector<8x16x1xf32> to vector<8x16x8xf32>
    %52 = arith.mulf %47, %51 : vector<8x16x8xf32>
    "tpu.trace_start"() <{level = 10 : i32, message = "bqk,bkd->bqd"}> : () -> ()
    %cst_29 = arith.constant dense<0.000000e+00> : vector<8x16x16xf32>
    %53 = tpu.matmul %52, %41, %cst_29 {dimension_numbers = #tpu.dot_dimension_numbers<[2], [1], [1], [2], [0, 0, 0, 1, 1, 2], [0], [0]>} : vector<8x16x8xf32>, vector<8x8x16xf32>, vector<8x16x16xf32> -> vector<8x16x16xf32>
    "tpu.trace_stop"() : () -> ()
    %54 = tpu.concatenate %38, %53 in 2 : vector<8x16x16xf32>, vector<8x16x16xf32> -> vector<8x16x32xf32>
    %55 = vector.shape_cast %54 : vector<8x16x32xf32> to vector<128x32xf32>
    %c0_30 = arith.constant 0 : index
    %c0_31 = arith.constant 0 : index
    %56 = vector.load %arg10[%c0_30, %c0_31] : memref<32x32xf32, #tpu.memory_space<vmem>>, vector<32x32xf32>
    %cst_32 = arith.constant dense<0.000000e+00> : vector<128x32xf32>
    %57 = tpu.matmul %55, %56, %cst_32 {dimension_numbers = #tpu.dot_dimension_numbers<[1], [0], [0], [1], [0, 0, 1, 1], [], []>} : vector<128x32xf32>, vector<32x32xf32>, vector<128x32xf32> -> vector<128x32xf32>
    %c0_33 = arith.constant 0 : index
    %c0_34 = arith.constant 0 : index
    %58 = vector.load %arg11[%c0_33, %c0_34] : memref<1x32xf32, #tpu.memory_space<vmem>>, vector<1x32xf32>
    %59 = vector.broadcast %58 : vector<1x32xf32> to vector<128x32xf32>
    %60 = arith.addf %57, %59 : vector<128x32xf32>
    %61 = vector.shape_cast %60 : vector<128x32xf32> to vector<8x16x32xf32>
    %c0_35 = arith.constant 0 : index
    %c0_36 = arith.constant 0 : index
    %c0_37 = arith.constant 0 : index
    %62 = vector.load %arg12[%c0_35, %c0_36, %c0_37] : memref<8x16x32xf32, #tpu.memory_space<vmem>>, vector<8x16x32xf32>
    tpu.vector_store %arg12[%c0_35, %c0_36, %c0_37], %61 {strides = array<i32>} : memref<8x16x32xf32, #tpu.memory_space<vmem>>, vector<8x16x32xf32>,
    return
  }
  func.func @transform_0(%arg0: i32) -> (i32, i32, i32) {
    %c0_i32 = arith.constant 0 : i32
    %c0_i32_0 = arith.constant 0 : i32
    %c0_i32_1 = arith.constant 0 : i32
    return %arg0, %c0_i32, %c0_i32_0 : i32, i32, i32
  }
  func.func @transform_1(%arg0: i32) -> (i32, i32, i32) {
    %c0_i32 = arith.constant 0 : i32
    %c0_i32_0 = arith.constant 0 : i32
    %c0_i32_1 = arith.constant 0 : i32
    return %arg0, %c0_i32, %c0_i32_0 : i32, i32, i32
  }
  func.func @transform_2(%arg0: i32) -> (i32, i32, i32) {
    %c0_i32 = arith.constant 0 : i32
    %c0_i32_0 = arith.constant 0 : i32
    %c0_i32_1 = arith.constant 0 : i32
    return %arg0, %c0_i32, %c0_i32_0 : i32, i32, i32
  }
  func.func @transform_3(%arg0: i32) -> (i32, i32) {
    %c0_i32 = arith.constant 0 : i32
    %c0_i32_0 = arith.constant 0 : i32
    %c0_i32_1 = arith.constant 0 : i32
    return %c0_i32, %c0_i32_0 : i32, i32
  }
  func.func @transform_4(%arg0: i32) -> (i32, i32) {
    %c0_i32 = arith.constant 0 : i32
    %c0_i32_0 = arith.constant 0 : i32
    %c0_i32_1 = arith.constant 0 : i32
    return %c0_i32, %c0_i32_0 : i32, i32
  }
  func.func @transform_5(%arg0: i32) -> (i32, i32) {
    %c0_i32 = arith.constant 0 : i32
    %c0_i32_0 = arith.constant 0 : i32
    %c0_i32_1 = arith.constant 0 : i32
    return %c0_i32, %c0_i32_0 : i32, i32
  }
  func.func @transform_6(%arg0: i32) -> (i32, i32) {
    %c0_i32 = arith.constant 0 : i32
    %c0_i32_0 = arith.constant 0 : i32
    %c0_i32_1 = arith.constant 0 : i32
    return %c0_i32, %c0_i32_0 : i32, i32
  }
  func.func @transform_7(%arg0: i32) -> (i32, i32) {
    %c0_i32 = arith.constant 0 : i32
    %c0_i32_0 = arith.constant 0 : i32
    %c0_i32_1 = arith.constant 0 : i32
    return %c0_i32, %c0_i32_0 : i32, i32
  }
  func.func @transform_8(%arg0: i32) -> (i32, i32) {
    %c0_i32 = arith.constant 0 : i32
    %c0_i32_0 = arith.constant 0 : i32
    %c0_i32_1 = arith.constant 0 : i32
    return %c0_i32, %c0_i32_0 : i32, i32
  }
  func.func @transform_9(%arg0: i32) -> (i32, i32) {
    %c0_i32 = arith.constant 0 : i32
    %c0_i32_0 = arith.constant 0 : i32
    %c0_i32_1 = arith.constant 0 : i32
    return %c0_i32, %c0_i32_0 : i32, i32
  }
  func.func @transform_10(%arg0: i32) -> (i32, i32) {
    %c0_i32 = arith.constant 0 : i32
    %c0_i32_0 = arith.constant 0 : i32
    %c0_i32_1 = arith.constant 0 : i32
    return %c0_i32, %c0_i32_0 : i32, i32
  }
  func.func @transform_11(%arg0: i32) -> (i32, i32, i32) {
    %c0_i32 = arith.constant 0 : i32
    %c0_i32_0 = arith.constant 0 : i32
    %c0_i32_1 = arith.constant 0 : i32
    return %arg0, %c0_i32, %c0_i32_0 : i32, i32, i32
  }
}

</mosaic_0001>

<llo_original>
// kernel: cross_attention_layer.1
$region0: #{cross_attention_layer.1}
  #allocation0 [shape = 'u32[]', space=smem, size = 0x4, offset = 0x4, fixed_abs, tag = 'smem constant byte address 0x4 - core index']
  #allocation1 [shape = 'u32[144,128]{1,0:T(1,128)}', space=vmem, size = 0x12000, scoped, tag = 'internal scratch']
  %s0 = inlined_call_operand.vmem [shape: f32[8,16,16], index: 0, kind: input, shape index: {}]
  %s1 = inlined_call_operand.vmem [shape: f32[8,8,24], index: 1, kind: input, shape index: {}]
  %s2 = inlined_call_operand.vmem [shape: f32[8,8,24], index: 2, kind: input, shape index: {}]
  %s3 = inlined_call_operand.vmem [shape: f32[16,32], index: 3, kind: input, shape index: {}]
  %s4 = inlined_call_operand.vmem [shape: f32[1,32], index: 4, kind: input, shape index: {}]
  %s5 = inlined_call_operand.vmem [shape: f32[24,32], index: 5, kind: input, shape index: {}]
  %s6 = inlined_call_operand.vmem [shape: f32[1,32], index: 6, kind: input, shape index: {}]
  %s7 = inlined_call_operand.vmem [shape: f32[24,32], index: 7, kind: input, shape index: {}]
  %s8 = inlined_call_operand.vmem [shape: f32[1,32], index: 8, kind: input, shape index: {}]
  %s9 = inlined_call_operand.vmem [shape: f32[32,32], index: 9, kind: input, shape index: {}]
  %s10 = inlined_call_operand.vmem [shape: f32[1,32], index: 10, kind: input, shape index: {}]
  %s11 = inlined_call_operand.hbm [shape: f32[8,16,32], index: 11, kind: output, shape index: {}]
  %s12 = sld [smem:[#allocation0]]
  $region54: #{cross_attention_layer.1} parent=0
    _
  %s14 = ssub.s32 1, %s12
  %s15 = scalar_select 0, %s14, %s12
  $region1: #{cross_attention_layer.1} parent=0
    #allocation2 [shape = 'u8[65536]{0}', space=vmem, size = 0x10000, scoped, tag = 'output window, operand 0, single buffered']
    #allocation3 [shape = 's32[1]{0}', space=sflag, size = 0x4, scoped, tag = 'scoped memory for cross_attention_layer.1']
    %16 = vsyncpa [#allocation3], 0
    // Predicated region
    $region2: #{cross_attention_layer.1} parent=1 // pred_check
      _
    $region3: #{cross_attention_layer.1} parent=1 // pred_check_branch
      %18 = sbr.rel (0) target = $region5
    $region4: #{cross_attention_layer.1} parent=1 // pred_region
      _
    $region5: #{cross_attention_layer.1} parent=1 // pred_fallthru
      _
    // Predicated region
    $region6: #{cross_attention_layer.1} parent=1 // pred_check
      _
    $region7: #{cross_attention_layer.1} parent=1 // pred_check_branch
      %20 = sbr.rel (0) target = $region9
    $region8: #{cross_attention_layer.1} parent=1 // pred_region
      _
    $region9: #{cross_attention_layer.1} parent=1 // pred_fallthru
      _
    // Predicated region
    $region10: #{cross_attention_layer.1} parent=1 // pred_check
      _
    $region11: #{cross_attention_layer.1} parent=1 // pred_check_branch
      %22 = sbr.rel (0) target = $region13
    $region12: #{cross_attention_layer.1} parent=1 // pred_region
      _
    $region13: #{cross_attention_layer.1} parent=1 // pred_fallthru
      _
    // Predicated region
    $region14: #{cross_attention_layer.1} parent=1 // pred_check
      _
    $region15: #{cross_attention_layer.1} parent=1 // pred_check_branch
      %24 = sbr.rel (0) target = $region17
    $region16: #{cross_attention_layer.1} parent=1 // pred_region
      _
    $region17: #{cross_attention_layer.1} parent=1 // pred_fallthru
      _
    // Predicated region
    $region18: #{cross_attention_layer.1} parent=1 // pred_check
      _
    $region19: #{cross_attention_layer.1} parent=1 // pred_check_branch
      %26 = sbr.rel (0) target = $region21
    $region20: #{cross_attention_layer.1} parent=1 // pred_region
      _
    $region21: #{cross_attention_layer.1} parent=1 // pred_fallthru
      _
    // Predicated region
    $region22: #{cross_attention_layer.1} parent=1 // pred_check
      _
    $region23: #{cross_attention_layer.1} parent=1 // pred_check_branch
      %28 = sbr.rel (0) target = $region25
    $region24: #{cross_attention_layer.1} parent=1 // pred_region
      _
    $region25: #{cross_attention_layer.1} parent=1 // pred_fallthru
      _
    // Predicated region
    $region26: #{cross_attention_layer.1} parent=1 // pred_check
      _
    $region27: #{cross_attention_layer.1} parent=1 // pred_check_branch
      %30 = sbr.rel (0) target = $region29
    $region28: #{cross_attention_layer.1} parent=1 // pred_region
      _
    $region29: #{cross_attention_layer.1} parent=1 // pred_fallthru
      _
    // Predicated region
    $region30: #{cross_attention_layer.1} parent=1 // pred_check
      _
    $region31: #{cross_attention_layer.1} parent=1 // pred_check_branch
      %32 = sbr.rel (0) target = $region33
    $region32: #{cross_attention_layer.1} parent=1 // pred_region
      _
    $region33: #{cross_attention_layer.1} parent=1 // pred_fallthru
      _
    // Predicated region
    $region34: #{cross_attention_layer.1} parent=1 // pred_check
      _
    $region35: #{cross_attention_layer.1} parent=1 // pred_check_branch
      %34 = sbr.rel (0) target = $region37
    $region36: #{cross_attention_layer.1} parent=1 // pred_region
      _
    $region37: #{cross_attention_layer.1} parent=1 // pred_fallthru
      _
    // Predicated region
    $region38: #{cross_attention_layer.1} parent=1 // pred_check
      _
    $region39: #{cross_attention_layer.1} parent=1 // pred_check_branch
      %36 = sbr.rel (0) target = $region41
    $region40: #{cross_attention_layer.1} parent=1 // pred_region
      _
    $region41: #{cross_attention_layer.1} parent=1 // pred_fallthru
      _
    // Predicated region
    $region42: #{cross_attention_layer.1} parent=1 // pred_check
      _
    $region43: #{cross_attention_layer.1} parent=1 // pred_check_branch
      %38 = sbr.rel (0) target = $region45
    $region44: #{cross_attention_layer.1} parent=1 // pred_region
      _
    $region45: #{cross_attention_layer.1} parent=1 // pred_fallthru
      _
    %v39 = vld [vmem:[%s0] sm:$0xff]
    %v40 = vld [vmem:[%s0 + $0x8] sm:$0xff]
    %v41 = vld [vmem:[%s0 + $0x10] sm:$0xff]
    %v42 = vld [vmem:[%s0 + $0x18] sm:$0xff]
    %v43 = vld [vmem:[%s0 + $0x20] sm:$0xff]
    %v44 = vld [vmem:[%s0 + $0x28] sm:$0xff]
    %v45 = vld [vmem:[%s0 + $0x30] sm:$0xff]
    %v46 = vld [vmem:[%s0 + $0x38] sm:$0xff]
    %v47 = vld [vmem:[%s0 + $0x40] sm:$0xff]
    %v48 = vld [vmem:[%s0 + $0x48] sm:$0xff]
    %v49 = vld [vmem:[%s0 + $0x50] sm:$0xff]
    %v50 = vld [vmem:[%s0 + $0x58] sm:$0xff]
    %v51 = vld [vmem:[%s0 + $0x60] sm:$0xff]
    %v52 = vld [vmem:[%s0 + $0x68] sm:$0xff]
    %v53 = vld [vmem:[%s0 + $0x70] sm:$0xff]
    %v54 = vld [vmem:[%s0 + $0x78] sm:$0xff]
    %v55 = vld [vmem:[%s1] sm:$0xff]
    %v56 = vld [vmem:[%s1 + $0x8] sm:$0xff]
    %v57 = vld [vmem:[%s1 + $0x10] sm:$0xff]
    %v58 = vld [vmem:[%s1 + $0x18] sm:$0xff]
    %v59 = vld [vmem:[%s1 + $0x20] sm:$0xff]
    %v60 = vld [vmem:[%s1 + $0x28] sm:$0xff]
    %v61 = vld [vmem:[%s1 + $0x30] sm:$0xff]
    %v62 = vld [vmem:[%s1 + $0x38] sm:$0xff]
    %v63 = vld [vmem:[%s2] sm:$0xff]
    %v64 = vld [vmem:[%s2 + $0x8] sm:$0xff]
    %v65 = vld [vmem:[%s2 + $0x10] sm:$0xff]
    %v66 = vld [vmem:[%s2 + $0x18] sm:$0xff]
    %v67 = vld [vmem:[%s2 + $0x20] sm:$0xff]
    %v68 = vld [vmem:[%s2 + $0x28] sm:$0xff]
    %v69 = vld [vmem:[%s2 + $0x30] sm:$0xff]
    %v70 = vld [vmem:[%s2 + $0x38] sm:$0xff]
    %v71 = vld [vmem:[%s3] sm:$0xff]
    %v72 = vld [vmem:[%s3 + $0x8] sm:$0xff]
    %v73 = vld [vmem:[%s4] sm:$0x1]
    %v75 = vlaneseq
    %v76 = vshrl.u32 %v75, 7
    %v77 = vsub.s32 0, %v76
    %v78 = vrot.slane %v73, %v77
    %vm80 = vcmask 130048
    %v82 = vsel %vm80, %v39, 0
    %v85 = vsel %vm80, %v40, 0
    %v88 = vsel %vm80, %v41, 0
    %v91 = vsel %vm80, %v42, 0
    %v94 = vsel %vm80, %v43, 0
    %v97 = vsel %vm80, %v44, 0
    %v100 = vsel %vm80, %v45, 0
    %v103 = vsel %vm80, %v46, 0
    %v106 = vsel %vm80, %v47, 0
    %v109 = vsel %vm80, %v48, 0
    %v112 = vsel %vm80, %v49, 0
    %v115 = vsel %vm80, %v50, 0
    %v118 = vsel %vm80, %v51, 0
    %v121 = vsel %vm80, %v52, 0
    %v124 = vsel %vm80, %v53, 0
    %v127 = vsel %vm80, %v54, 0
    %129 = vmatprep.subr.mxu0 0.0
    %130 = vmatpush1.msra.mxu0 0.0
    %131 = vmatprep.subr.mxu0 0.0
    %132 = vmatpush1.msra.mxu0 0.0
    %133 = vmatprep.subr.mxu0 0.0
    %134 = vmatpush1.msra.mxu0 0.0
    %135 = vmatprep.subr.mxu0 0.0
    %136 = vmatpush1.msra.mxu0 0.0
    %137 = vmatprep.subr.mxu0 0.0
    %138 = vmatpush1.msra.mxu0 0.0
    %139 = vmatprep.subr.mxu0 0.0
    %140 = vmatpush1.msra.mxu0 0.0
    %141 = vmatprep.subr.mxu0 0.0
    %142 = vmatpush1.msra.mxu0 0.0
    %143 = vmatprep.subr.mxu0 0.0
    %144 = vmatpush1.msra.mxu0 0.0
    %145 = vmatprep.subr.mxu0 0.0
    %146 = vmatpush1.msra.mxu0 0.0
    %147 = vmatprep.subr.mxu0 0.0
    %148 = vmatpush1.msra.mxu0 0.0
    %149 = vmatprep.subr.mxu0 0.0
    %150 = vmatpush1.msra.mxu0 0.0
    %151 = vmatprep.subr.mxu0 0.0
    %152 = vmatpush1.msra.mxu0 0.0
    %153 = vmatprep.subr.mxu0 0.0
    %154 = vmatpush1.msra.mxu0 0.0
    %155 = vmatprep.subr.mxu0 0.0
    %156 = vmatpush1.msra.mxu0 0.0
    %157 = vmatprep.subr.mxu0 0.0
    %158 = vmatpush1.msra.mxu0 %v72
    %159 = vmatprep.subr.mxu0 0.0
    %160 = vmatpush1.msra.mxu0 %v71
    %161 = vmatprep.subr.mxu0 0.0
    %162 = vmatpush2.msra.mxu0 0.0
    %163 = vmatprep.subr.mxu0 0.0
    %164 = vmatpush2.msra.mxu0 0.0
    %165 = vmatprep.subr.mxu0 0.0
    %166 = vmatpush2.msra.mxu0 0.0
    %167 = vmatprep.subr.mxu0 0.0
    %168 = vmatpush2.msra.mxu0 0.0
    %169 = vmatprep.subr.mxu0 0.0
    %170 = vmatpush2.msra.mxu0 0.0
    %171 = vmatprep.subr.mxu0 0.0
    %172 = vmatpush2.msra.mxu0 0.0
    %173 = vmatprep.subr.mxu0 0.0
    %174 = vmatpush2.msra.mxu0 0.0
    %175 = vmatprep.subr.mxu0 0.0
    %176 = vmatpush2.msra.mxu0 0.0
    %177 = vmatprep.subr.mxu0 0.0
    %178 = vmatpush2.msra.mxu0 0.0
    %179 = vmatprep.subr.mxu0 0.0
    %180 = vmatpush2.msra.mxu0 0.0
    %181 = vmatprep.subr.mxu0 0.0
    %182 = vmatpush2.msra.mxu0 0.0
    %183 = vmatprep.subr.mxu0 0.0
    %184 = vmatpush2.msra.mxu0 0.0
    %185 = vmatprep.subr.mxu0 0.0
    %186 = vmatpush2.msra.mxu0 0.0
    %187 = vmatprep.subr.mxu0 0.0
    %188 = vmatpush2.msra.mxu0 0.0
    %189 = vmatprep.subr.mxu0 0.0
    %190 = vmatpush2.msra.mxu0 0.0
    %191 = vmatprep.subr.mxu0 0.0
    %192 = vmatpush2.msra.mxu0 0.0
    %193 = vmatprep.mubr.f32.mxu0 0.0
    %194 = vmatmul.mubr.f32.gmra.mxu0 %v82
    %v195 = vpop.f32.mrf.mxu0
    %v196 = vadd.f32 %v78, %v195
    %v197 = vpop.f32.mrf.mxu0
    %198 = vmatprep.mubr.f32.mxu0 0.0
    %199 = vmatmul.mubr.f32.gmra.mxu0 %v85
    %v200 = vpop.f32.mrf.mxu0
    %v201 = vadd.f32 %v78, %v200
    %v202 = vpop.f32.mrf.mxu0
    %203 = vmatprep.mubr.f32.mxu0 0.0
    %204 = vmatmul.mubr.f32.gmra.mxu0 %v88
    %v205 = vpop.f32.mrf.mxu0
    %v206 = vadd.f32 %v78, %v205
    %v207 = vpop.f32.mrf.mxu0
    %208 = vmatprep.mubr.f32.mxu0 0.0
    %209 = vmatmul.mubr.f32.gmra.mxu0 %v91
    %v210 = vpop.f32.mrf.mxu0
    %v211 = vadd.f32 %v78, %v210
    %v212 = vpop.f32.mrf.mxu0
    %213 = vmatprep.mubr.f32.mxu0 0.0
    %214 = vmatmul.mubr.f32.gmra.mxu0 %v94
    %v215 = vpop.f32.mrf.mxu0
    %v216 = vadd.f32 %v78, %v215
    %v217 = vpop.f32.mrf.mxu0
    %218 = vmatprep.mubr.f32.mxu0 0.0
    %219 = vmatmul.mubr.f32.gmra.mxu0 %v97
    %v220 = vpop.f32.mrf.mxu0
    %v221 = vadd.f32 %v78, %v220
    %v222 = vpop.f32.mrf.mxu0
    %223 = vmatprep.mubr.f32.mxu0 0.0
    %224 = vmatmul.mubr.f32.gmra.mxu0 %v100
    %v225 = vpop.f32.mrf.mxu0
    %v226 = vadd.f32 %v78, %v225
    %v227 = vpop.f32.mrf.mxu0
    %228 = vmatprep.mubr.f32.mxu0 0.0
    %229 = vmatmul.mubr.f32.gmra.mxu0 %v103
    %v230 = vpop.f32.mrf.mxu0
    %v231 = vadd.f32 %v78, %v230
    %v232 = vpop.f32.mrf.mxu0
    %233 = vmatprep.mubr.f32.mxu0 0.0
    %234 = vmatmul.mubr.f32.gmra.mxu0 %v106
    %v235 = vpop.f32.mrf.mxu0
    %v236 = vadd.f32 %v78, %v235
    %v237 = vpop.f32.mrf.mxu0
    %238 = vmatprep.mubr.f32.mxu0 0.0
    %239 = vmatmul.mubr.f32.gmra.mxu0 %v109
    %v240 = vpop.f32.mrf.mxu0
    %v241 = vadd.f32 %v78, %v240
    %v242 = vpop.f32.mrf.mxu0
    %243 = vmatprep.mubr.f32.mxu0 0.0
    %244 = vmatmul.mubr.f32.gmra.mxu0 %v112
    %v245 = vpop.f32.mrf.mxu0
    %v246 = vadd.f32 %v78, %v245
    %v247 = vpop.f32.mrf.mxu0
    %248 = vmatprep.mubr.f32.mxu0 0.0
    %249 = vmatmul.mubr.f32.gmra.mxu0 %v115
    %v250 = vpop.f32.mrf.mxu0
    %v251 = vadd.f32 %v78, %v250
    %v252 = vpop.f32.mrf.mxu0
    %253 = vmatprep.mubr.f32.mxu0 0.0
    %254 = vmatmul.mubr.f32.gmra.mxu0 %v118
    %v255 = vpop.f32.mrf.mxu0
    %v256 = vadd.f32 %v78, %v255
    %v257 = vpop.f32.mrf.mxu0
    %258 = vmatprep.mubr.f32.mxu0 0.0
    %259 = vmatmul.mubr.f32.gmra.mxu0 %v121
    %v260 = vpop.f32.mrf.mxu0
    %v261 = vadd.f32 %v78, %v260
    %v262 = vpop.f32.mrf.mxu0
    %263 = vmatprep.mubr.f32.mxu0 0.0
    %264 = vmatmul.mubr.f32.gmra.mxu0 %v124
    %v265 = vpop.f32.mrf.mxu0
    %v266 = vadd.f32 %v78, %v265
    %v267 = vpop.f32.mrf.mxu0
    %268 = vmatprep.mubr.f32.mxu0 0.0
    %269 = vmatmul.mubr.f32.gmra.mxu0 %v127
    %v270 = vpop.f32.mrf.mxu0
    %v271 = vadd.f32 %v78, %v270
    %v272 = vpop.f32.mrf.mxu0
    %273 = vdwg.mxu0
    %v274 = vld [vmem:[%s5] sm:$0xff]
    %v275 = vld [vmem:[%s5 + $0x8] sm:$0xff]
    %v276 = vld [vmem:[%s5 + $0x10] sm:$0xff]
    %v277 = vld [vmem:[%s6] sm:$0x1]
    %v279 = vlaneseq
    %v280 = vshrl.u32 %v279, 7
    %v281 = vsub.s32 0, %v280
    %v282 = vrot.slane %v277, %v281
    %vm284 = vcmask 195584
    %v286 = vsel %vm284, %v55, 0
    %v289 = vsel %vm284, %v56, 0
    %v292 = vsel %vm284, %v57, 0
    %v295 = vsel %vm284, %v58, 0
    %v298 = vsel %vm284, %v59, 0
    %v301 = vsel %vm284, %v60, 0
    %v304 = vsel %vm284, %v61, 0
    %v307 = vsel %vm284, %v62, 0
    %309 = vmatprep.subr.mxu0 0.0
    %310 = vmatpush1.msra.mxu0 0.0
    %311 = vmatprep.subr.mxu0 0.0
    %312 = vmatpush1.msra.mxu0 0.0
    %313 = vmatprep.subr.mxu0 0.0
    %314 = vmatpush1.msra.mxu0 0.0
    %315 = vmatprep.subr.mxu0 0.0
    %316 = vmatpush1.msra.mxu0 0.0
    %317 = vmatprep.subr.mxu0 0.0
    %318 = vmatpush1.msra.mxu0 0.0
    %319 = vmatprep.subr.mxu0 0.0
    %320 = vmatpush1.msra.mxu0 0.0
    %321 = vmatprep.subr.mxu0 0.0
    %322 = vmatpush1.msra.mxu0 0.0
    %323 = vmatprep.subr.mxu0 0.0
    %324 = vmatpush1.msra.mxu0 0.0
    %325 = vmatprep.subr.mxu0 0.0
    %326 = vmatpush1.msra.mxu0 0.0
    %327 = vmatprep.subr.mxu0 0.0
    %328 = vmatpush1.msra.mxu0 0.0
    %329 = vmatprep.subr.mxu0 0.0
    %330 = vmatpush1.msra.mxu0 0.0
    %331 = vmatprep.subr.mxu0 0.0
    %332 = vmatpush1.msra.mxu0 0.0
    %333 = vmatprep.subr.mxu0 0.0
    %334 = vmatpush1.msra.mxu0 0.0
    %335 = vmatprep.subr.mxu0 0.0
    %336 = vmatpush1.msra.mxu0 %v276
    %337 = vmatprep.subr.mxu0 0.0
    %338 = vmatpush1.msra.mxu0 %v275
    %339 = vmatprep.subr.mxu0 0.0
    %340 = vmatpush1.msra.mxu0 %v274
    %341 = vmatprep.subr.mxu0 0.0
    %342 = vmatpush2.msra.mxu0 0.0
    %343 = vmatprep.subr.mxu0 0.0
    %344 = vmatpush2.msra.mxu0 0.0
    %345 = vmatprep.subr.mxu0 0.0
    %346 = vmatpush2.msra.mxu0 0.0
    %347 = vmatprep.subr.mxu0 0.0
    %348 = vmatpush2.msra.mxu0 0.0
    %349 = vmatprep.subr.mxu0 0.0
    %350 = vmatpush2.msra.mxu0 0.0
    %351 = vmatprep.subr.mxu0 0.0
    %352 = vmatpush2.msra.mxu0 0.0
    %353 = vmatprep.subr.mxu0 0.0
    %354 = vmatpush2.msra.mxu0 0.0
    %355 = vmatprep.subr.mxu0 0.0
    %356 = vmatpush2.msra.mxu0 0.0
    %357 = vmatprep.subr.mxu0 0.0
    %358 = vmatpush2.msra.mxu0 0.0
    %359 = vmatprep.subr.mxu0 0.0
    %360 = vmatpush2.msra.mxu0 0.0
    %361 = vmatprep.subr.mxu0 0.0
    %362 = vmatpush2.msra.mxu0 0.0
    %363 = vmatprep.subr.mxu0 0.0
    %364 = vmatpush2.msra.mxu0 0.0
    %365 = vmatprep.subr.mxu0 0.0
    %366 = vmatpush2.msra.mxu0 0.0
    %367 = vmatprep.subr.mxu0 0.0
    %368 = vmatpush2.msra.mxu0 0.0
    %369 = vmatprep.subr.mxu0 0.0
    %370 = vmatpush2.msra.mxu0 0.0
    %371 = vmatprep.subr.mxu0 0.0
    %372 = vmatpush2.msra.mxu0 0.0
    %373 = vmatprep.mubr.f32.mxu0 0.0
    %374 = vmatmul.mubr.f32.gmra.mxu0 %v286
    %v375 = vpop.f32.mrf.mxu0
    %v376 = vadd.f32 %v282, %v375
    %v377 = vpop.f32.mrf.mxu0
    %378 = vmatprep.mubr.f32.mxu0 0.0
    %379 = vmatmul.mubr.f32.gmra.mxu0 %v289
    %v380 = vpop.f32.mrf.mxu0
    %v381 = vadd.f32 %v282, %v380
    %v382 = vpop.f32.mrf.mxu0
    %383 = vmatprep.mubr.f32.mxu0 0.0
    %384 = vmatmul.mubr.f32.gmra.mxu0 %v292
    %v385 = vpop.f32.mrf.mxu0
    %v386 = vadd.f32 %v282, %v385
    %v387 = vpop.f32.mrf.mxu0
    %388 = vmatprep.mubr.f32.mxu0 0.0
    %389 = vmatmul.mubr.f32.gmra.mxu0 %v295
    %v390 = vpop.f32.mrf.mxu0
    %v391 = vadd.f32 %v282, %v390
    %v392 = vpop.f32.mrf.mxu0
    %393 = vmatprep.mubr.f32.mxu0 0.0
    %394 = vmatmul.mubr.f32.gmra.mxu0 %v298
    %v395 = vpop.f32.mrf.mxu0
    %v396 = vadd.f32 %v282, %v395
    %v397 = vpop.f32.mrf.mxu0
    %398 = vmatprep.mubr.f32.mxu0 0.0
    %399 = vmatmul.mubr.f32.gmra.mxu0 %v301
    %v400 = vpop.f32.mrf.mxu0
    %v401 = vadd.f32 %v282, %v400
    %v402 = vpop.f32.mrf.mxu0
    %403 = vmatprep.mubr.f32.mxu0 0.0
    %404 = vmatmul.mubr.f32.gmra.mxu0 %v304
    %v405 = vpop.f32.mrf.mxu0
    %v406 = vadd.f32 %v282, %v405
    %v407 = vpop.f32.mrf.mxu0
    %408 = vmatprep.mubr.f32.mxu0 0.0
    %409 = vmatmul.mubr.f32.gmra.mxu0 %v307
    %v410 = vpop.f32.mrf.mxu0
    %v411 = vadd.f32 %v282, %v410
    %v412 = vpop.f32.mrf.mxu0
    %413 = vdwg.mxu0
    %v414 = vld [vmem:[%s7] sm:$0xff]
    %v415 = vld [vmem:[%s7 + $0x8] sm:$0xff]
    %v416 = vld [vmem:[%s7 + $0x10] sm:$0xff]
    %v417 = vld [vmem:[%s8] sm:$0x1]
    %v419 = vlaneseq
    %v420 = vshrl.u32 %v419, 7
    %v421 = vsub.s32 0, %v420
    %v422 = vrot.slane %v417, %v421
    %v425 = vsel %vm284, %v63, 0
    %v428 = vsel %vm284, %v64, 0
    %v431 = vsel %vm284, %v65, 0
    %v434 = vsel %vm284, %v66, 0
    %v437 = vsel %vm284, %v67, 0
    %v440 = vsel %vm284, %v68, 0
    %v443 = vsel %vm284, %v69, 0
    %v446 = vsel %vm284, %v70, 0
    %448 = vmatprep.subr.mxu0 0.0
    %449 = vmatpush1.msra.mxu0 0.0
    %450 = vmatprep.subr.mxu0 0.0
    %451 = vmatpush1.msra.mxu0 0.0
    %452 = vmatprep.subr.mxu0 0.0
    %453 = vmatpush1.msra.mxu0 0.0
    %454 = vmatprep.subr.mxu0 0.0
    %455 = vmatpush1.msra.mxu0 0.0
    %456 = vmatprep.subr.mxu0 0.0
    %457 = vmatpush1.msra.mxu0 0.0
    %458 = vmatprep.subr.mxu0 0.0
    %459 = vmatpush1.msra.mxu0 0.0
    %460 = vmatprep.subr.mxu0 0.0
    %461 = vmatpush1.msra.mxu0 0.0
    %462 = vmatprep.subr.mxu0 0.0
    %463 = vmatpush1.msra.mxu0 0.0
    %464 = vmatprep.subr.mxu0 0.0
    %465 = vmatpush1.msra.mxu0 0.0
    %466 = vmatprep.subr.mxu0 0.0
    %467 = vmatpush1.msra.mxu0 0.0
    %468 = vmatprep.subr.mxu0 0.0
    %469 = vmatpush1.msra.mxu0 0.0
    %470 = vmatprep.subr.mxu0 0.0
    %471 = vmatpush1.msra.mxu0 0.0
    %472 = vmatprep.subr.mxu0 0.0
    %473 = vmatpush1.msra.mxu0 0.0
    %474 = vmatprep.subr.mxu0 0.0
    %475 = vmatpush1.msra.mxu0 %v416
    %476 = vmatprep.subr.mxu0 0.0
    %477 = vmatpush1.msra.mxu0 %v415
    %478 = vmatprep.subr.mxu0 0.0
    %479 = vmatpush1.msra.mxu0 %v414
    %480 = vmatprep.subr.mxu0 0.0
    %481 = vmatpush2.msra.mxu0 0.0
    %482 = vmatprep.subr.mxu0 0.0
    %483 = vmatpush2.msra.mxu0 0.0
    %484 = vmatprep.subr.mxu0 0.0
    %485 = vmatpush2.msra.mxu0 0.0
    %486 = vmatprep.subr.mxu0 0.0
    %487 = vmatpush2.msra.mxu0 0.0
    %488 = vmatprep.subr.mxu0 0.0
    %489 = vmatpush2.msra.mxu0 0.0
    %490 = vmatprep.subr.mxu0 0.0
    %491 = vmatpush2.msra.mxu0 0.0
    %492 = vmatprep.subr.mxu0 0.0
    %493 = vmatpush2.msra.mxu0 0.0
    %494 = vmatprep.subr.mxu0 0.0
    %495 = vmatpush2.msra.mxu0 0.0
    %496 = vmatprep.subr.mxu0 0.0
    %497 = vmatpush2.msra.mxu0 0.0
    %498 = vmatprep.subr.mxu0 0.0
    %499 = vmatpush2.msra.mxu0 0.0
    %500 = vmatprep.subr.mxu0 0.0
    %501 = vmatpush2.msra.mxu0 0.0
    %502 = vmatprep.subr.mxu0 0.0
    %503 = vmatpush2.msra.mxu0 0.0
    %504 = vmatprep.subr.mxu0 0.0
    %505 = vmatpush2.msra.mxu0 0.0
    %506 = vmatprep.subr.mxu0 0.0
    %507 = vmatpush2.msra.mxu0 0.0
    %508 = vmatprep.subr.mxu0 0.0
    %509 = vmatpush2.msra.mxu0 0.0
    %510 = vmatprep.subr.mxu0 0.0
    %511 = vmatpush2.msra.mxu0 0.0
    %512 = vmatprep.mubr.f32.mxu0 0.0
    %513 = vmatmul.mubr.f32.gmra.mxu0 %v425
    %v514 = vpop.f32.mrf.mxu0
    %v515 = vadd.f32 %v422, %v514
    %v516 = vpop.f32.mrf.mxu0
    %517 = vmatprep.mubr.f32.mxu0 0.0
    %518 = vmatmul.mubr.f32.gmra.mxu0 %v428
    %v519 = vpop.f32.mrf.mxu0
    %v520 = vadd.f32 %v422, %v519
    %v521 = vpop.f32.mrf.mxu0
    %522 = vmatprep.mubr.f32.mxu0 0.0
    %523 = vmatmul.mubr.f32.gmra.mxu0 %v431
    %v524 = vpop.f32.mrf.mxu0
    %v525 = vadd.f32 %v422, %v524
    %v526 = vpop.f32.mrf.mxu0
    %527 = vmatprep.mubr.f32.mxu0 0.0
    %528 = vmatmul.mubr.f32.gmra.mxu0 %v434
    %v529 = vpop.f32.mrf.mxu0
    %v530 = vadd.f32 %v422, %v529
    %v531 = vpop.f32.mrf.mxu0
    %532 = vmatprep.mubr.f32.mxu0 0.0
    %533 = vmatmul.mubr.f32.gmra.mxu0 %v437
    %v534 = vpop.f32.mrf.mxu0
    %v535 = vadd.f32 %v422, %v534
    %v536 = vpop.f32.mrf.mxu0
    %537 = vmatprep.mubr.f32.mxu0 0.0
    %538 = vmatmul.mubr.f32.gmra.mxu0 %v440
    %v539 = vpop.f32.mrf.mxu0
    %v540 = vadd.f32 %v422, %v539
    %v541 = vpop.f32.mrf.mxu0
    %542 = vmatprep.mubr.f32.mxu0 0.0
    %543 = vmatmul.mubr.f32.gmra.mxu0 %v443
    %v544 = vpop.f32.mrf.mxu0
    %v545 = vadd.f32 %v422, %v544
    %v546 = vpop.f32.mrf.mxu0
    %547 = vmatprep.mubr.f32.mxu0 0.0
    %548 = vmatmul.mubr.f32.gmra.mxu0 %v446
    %v549 = vpop.f32.mrf.mxu0
    %v550 = vadd.f32 %v422, %v549
    %v551 = vpop.f32.mrf.mxu0
    %552 = vdwg.mxu0
    %v554 = vsel %vm80, %v196, 0
    %v557 = vsel %vm80, %v201, 0
    %v560 = vsel %vm80, %v376, 0
    %562 = vmatprep.subr.mxu0 0.0
    %563 = vmatpush1.xpose.msra.mxu0 0.0
    %564 = vmatprep.subr.mxu0 0.0
    %565 = vmatpush1.xpose.msra.mxu0 0.0
    %566 = vmatprep.subr.mxu0 0.0
    %567 = vmatpush1.xpose.msra.mxu0 0.0
    %568 = vmatprep.subr.mxu0 0.0
    %569 = vmatpush1.xpose.msra.mxu0 0.0
    %570 = vmatprep.subr.mxu0 0.0
    %571 = vmatpush1.xpose.msra.mxu0 0.0
    %572 = vmatprep.subr.mxu0 0.0
    %573 = vmatpush1.xpose.msra.mxu0 0.0
    %574 = vmatprep.subr.mxu0 0.0
    %575 = vmatpush1.xpose.msra.mxu0 0.0
    %576 = vmatprep.subr.mxu0 0.0
    %577 = vmatpush1.xpose.msra.mxu0 0.0
    %578 = vmatprep.subr.mxu0 0.0
    %579 = vmatpush1.xpose.msra.mxu0 0.0
    %580 = vmatprep.subr.mxu0 0.0
    %581 = vmatpush1.xpose.msra.mxu0 0.0
    %582 = vmatprep.subr.mxu0 0.0
    %583 = vmatpush1.xpose.msra.mxu0 0.0
    %584 = vmatprep.subr.mxu0 0.0
    %585 = vmatpush1.xpose.msra.mxu0 0.0
    %586 = vmatprep.subr.mxu0 0.0
    %587 = vmatpush1.xpose.msra.mxu0 0.0
    %588 = vmatprep.subr.mxu0 0.0
    %589 = vmatpush1.xpose.msra.mxu0 0.0
    %590 = vmatprep.subr.mxu0 0.0
    %591 = vmatpush1.xpose.msra.mxu0 0.0
    %592 = vmatprep.subr.mxu0 0.0
    %593 = vmatpush1.xpose.msra.mxu0 %v560
    %594 = vmatprep.subr.mxu0 0.0
    %595 = vmatpush2.xpose.msra.mxu0 0.0
    %596 = vmatprep.subr.mxu0 0.0
    %597 = vmatpush2.xpose.msra.mxu0 0.0
    %598 = vmatprep.subr.mxu0 0.0
    %599 = vmatpush2.xpose.msra.mxu0 0.0
    %600 = vmatprep.subr.mxu0 0.0
    %601 = vmatpush2.xpose.msra.mxu0 0.0
    %602 = vmatprep.subr.mxu0 0.0
    %603 = vmatpush2.xpose.msra.mxu0 0.0
    %604 = vmatprep.subr.mxu0 0.0
    %605 = vmatpush2.xpose.msra.mxu0 0.0
    %606 = vmatprep.subr.mxu0 0.0
    %607 = vmatpush2.xpose.msra.mxu0 0.0
    %608 = vmatprep.subr.mxu0 0.0
    %609 = vmatpush2.xpose.msra.mxu0 0.0
    %610 = vmatprep.subr.mxu0 0.0
    %611 = vmatpush2.xpose.msra.mxu0 0.0
    %612 = vmatprep.subr.mxu0 0.0
    %613 = vmatpush2.xpose.msra.mxu0 0.0
    %614 = vmatprep.subr.mxu0 0.0
    %615 = vmatpush2.xpose.msra.mxu0 0.0
    %616 = vmatprep.subr.mxu0 0.0
    %617 = vmatpush2.xpose.msra.mxu0 0.0
    %618 = vmatprep.subr.mxu0 0.0
    %619 = vmatpush2.xpose.msra.mxu0 0.0
    %620 = vmatprep.subr.mxu0 0.0
    %621 = vmatpush2.xpose.msra.mxu0 0.0
    %622 = vmatprep.subr.mxu0 0.0
    %623 = vmatpush2.xpose.msra.mxu0 0.0
    %624 = vmatprep.subr.mxu0 0.0
    %625 = vmatpush2.xpose.msra.mxu0 0.0
    %626 = vmatprep.mubr.f32.mxu0 0.0
    %627 = vmatmul.mubr.f32.gmra.mxu0 %v554
    %v628 = vpop.f32.mrf.mxu0
    %v629 = vadd.f32 0.0, %v628
    %v630 = vpop.f32.mrf.mxu0
    %631 = vmatprep.mubr.f32.mxu0 0.0
    %632 = vmatmul.mubr.f32.gmra.mxu0 %v557
    %v633 = vpop.f32.mrf.mxu0
    %v634 = vadd.f32 0.0, %v633
    %v635 = vpop.f32.mrf.mxu0
    %636 = vdwg.mxu0
    %v638 = vsel %vm80, %v206, 0
    %v641 = vsel %vm80, %v211, 0
    %v644 = vsel %vm80, %v381, 0
    %646 = vmatprep.subr.mxu0 0.0
    %647 = vmatpush1.xpose.msra.mxu0 0.0
    %648 = vmatprep.subr.mxu0 0.0
    %649 = vmatpush1.xpose.msra.mxu0 0.0
    %650 = vmatprep.subr.mxu0 0.0
    %651 = vmatpush1.xpose.msra.mxu0 0.0
    %652 = vmatprep.subr.mxu0 0.0
    %653 = vmatpush1.xpose.msra.mxu0 0.0
    %654 = vmatprep.subr.mxu0 0.0
    %655 = vmatpush1.xpose.msra.mxu0 0.0
    %656 = vmatprep.subr.mxu0 0.0
    %657 = vmatpush1.xpose.msra.mxu0 0.0
    %658 = vmatprep.subr.mxu0 0.0
    %659 = vmatpush1.xpose.msra.mxu0 0.0
    %660 = vmatprep.subr.mxu0 0.0
    %661 = vmatpush1.xpose.msra.mxu0 0.0
    %662 = vmatprep.subr.mxu0 0.0
    %663 = vmatpush1.xpose.msra.mxu0 0.0
    %664 = vmatprep.subr.mxu0 0.0
    %665 = vmatpush1.xpose.msra.mxu0 0.0
    %666 = vmatprep.subr.mxu0 0.0
    %667 = vmatpush1.xpose.msra.mxu0 0.0
    %668 = vmatprep.subr.mxu0 0.0
    %669 = vmatpush1.xpose.msra.mxu0 0.0
    %670 = vmatprep.subr.mxu0 0.0
    %671 = vmatpush1.xpose.msra.mxu0 0.0
    %672 = vmatprep.subr.mxu0 0.0
    %673 = vmatpush1.xpose.msra.mxu0 0.0
    %674 = vmatprep.subr.mxu0 0.0
    %675 = vmatpush1.xpose.msra.mxu0 0.0
    %676 = vmatprep.subr.mxu0 0.0
    %677 = vmatpush1.xpose.msra.mxu0 %v644
    %678 = vmatprep.subr.mxu0 0.0
    %679 = vmatpush2.xpose.msra.mxu0 0.0
    %680 = vmatprep.subr.mxu0 0.0
    %681 = vmatpush2.xpose.msra.mxu0 0.0
    %682 = vmatprep.subr.mxu0 0.0
    %683 = vmatpush2.xpose.msra.mxu0 0.0
    %684 = vmatprep.subr.mxu0 0.0
    %685 = vmatpush2.xpose.msra.mxu0 0.0
    %686 = vmatprep.subr.mxu0 0.0
    %687 = vmatpush2.xpose.msra.mxu0 0.0
    %688 = vmatprep.subr.mxu0 0.0
    %689 = vmatpush2.xpose.msra.mxu0 0.0
    %690 = vmatprep.subr.mxu0 0.0
    %691 = vmatpush2.xpose.msra.mxu0 0.0
    %692 = vmatprep.subr.mxu0 0.0
    %693 = vmatpush2.xpose.msra.mxu0 0.0
    %694 = vmatprep.subr.mxu0 0.0
    %695 = vmatpush2.xpose.msra.mxu0 0.0
    %696 = vmatprep.subr.mxu0 0.0
    %697 = vmatpush2.xpose.msra.mxu0 0.0
    %698 = vmatprep.subr.mxu0 0.0
    %699 = vmatpush2.xpose.msra.mxu0 0.0
    %700 = vmatprep.subr.mxu0 0.0
    %701 = vmatpush2.xpose.msra.mxu0 0.0
    %702 = vmatprep.subr.mxu0 0.0
    %703 = vmatpush2.xpose.msra.mxu0 0.0
    %704 = vmatprep.subr.mxu0 0.0
    %705 = vmatpush2.xpose.msra.mxu0 0.0
    %706 = vmatprep.subr.mxu0 0.0
    %707 = vmatpush2.xpose.msra.mxu0 0.0
    %708 = vmatprep.subr.mxu0 0.0
    %709 = vmatpush2.xpose.msra.mxu0 0.0
    %710 = vmatprep.mubr.f32.mxu0 0.0
    %711 = vmatmul.mubr.f32.gmra.mxu0 %v638
    %v712 = vpop.f32.mrf.mxu0
    %v713 = vadd.f32 0.0, %v712
    %v714 = vpop.f32.mrf.mxu0
    %715 = vmatprep.mubr.f32.mxu0 0.0
    %716 = vmatmul.mubr.f32.gmra.mxu0 %v641
    %v717 = vpop.f32.mrf.mxu0
    %v718 = vadd.f32 0.0, %v717
    %v719 = vpop.f32.mrf.mxu0
    %720 = vdwg.mxu0
    %v722 = vsel %vm80, %v216, 0
    %v725 = vsel %vm80, %v221, 0
    %v728 = vsel %vm80, %v386, 0
    %730 = vmatprep.subr.mxu0 0.0
    %731 = vmatpush1.xpose.msra.mxu0 0.0
    %732 = vmatprep.subr.mxu0 0.0
    %733 = vmatpush1.xpose.msra.mxu0 0.0
    %734 = vmatprep.subr.mxu0 0.0
    %735 = vmatpush1.xpose.msra.mxu0 0.0
    %736 = vmatprep.subr.mxu0 0.0
    %737 = vmatpush1.xpose.msra.mxu0 0.0
    %738 = vmatprep.subr.mxu0 0.0
    %739 = vmatpush1.xpose.msra.mxu0 0.0
    %740 = vmatprep.subr.mxu0 0.0
    %741 = vmatpush1.xpose.msra.mxu0 0.0
    %742 = vmatprep.subr.mxu0 0.0
    %743 = vmatpush1.xpose.msra.mxu0 0.0
    %744 = vmatprep.subr.mxu0 0.0
    %745 = vmatpush1.xpose.msra.mxu0 0.0
    %746 = vmatprep.subr.mxu0 0.0
    %747 = vmatpush1.xpose.msra.mxu0 0.0
    %748 = vmatprep.subr.mxu0 0.0
    %749 = vmatpush1.xpose.msra.mxu0 0.0
    %750 = vmatprep.subr.mxu0 0.0
    %751 = vmatpush1.xpose.msra.mxu0 0.0
    %752 = vmatprep.subr.mxu0 0.0
    %753 = vmatpush1.xpose.msra.mxu0 0.0
    %754 = vmatprep.subr.mxu0 0.0
    %755 = vmatpush1.xpose.msra.mxu0 0.0
    %756 = vmatprep.subr.mxu0 0.0
    %757 = vmatpush1.xpose.msra.mxu0 0.0
    %758 = vmatprep.subr.mxu0 0.0
    %759 = vmatpush1.xpose.msra.mxu0 0.0
    %760 = vmatprep.subr.mxu0 0.0
    %761 = vmatpush1.xpose.msra.mxu0 %v728
    %762 = vmatprep.subr.mxu0 0.0
    %763 = vmatpush2.xpose.msra.mxu0 0.0
    %764 = vmatprep.subr.mxu0 0.0
    %765 = vmatpush2.xpose.msra.mxu0 0.0
    %766 = vmatprep.subr.mxu0 0.0
    %767 = vmatpush2.xpose.msra.mxu0 0.0
    %768 = vmatprep.subr.mxu0 0.0
    %769 = vmatpush2.xpose.msra.mxu0 0.0
    %770 = vmatprep.subr.mxu0 0.0
    %771 = vmatpush2.xpose.msra.mxu0 0.0
    %772 = vmatprep.subr.mxu0 0.0
    %773 = vmatpush2.xpose.msra.mxu0 0.0
    %774 = vmatprep.subr.mxu0 0.0
    %775 = vmatpush2.xpose.msra.mxu0 0.0
    %776 = vmatprep.subr.mxu0 0.0
    %777 = vmatpush2.xpose.msra.mxu0 0.0
    %778 = vmatprep.subr.mxu0 0.0
    %779 = vmatpush2.xpose.msra.mxu0 0.0
    %780 = vmatprep.subr.mxu0 0.0
    %781 = vmatpush2.xpose.msra.mxu0 0.0
    %782 = vmatprep.subr.mxu0 0.0
    %783 = vmatpush2.xpose.msra.mxu0 0.0
    %784 = vmatprep.subr.mxu0 0.0
    %785 = vmatpush2.xpose.msra.mxu0 0.0
    %786 = vmatprep.subr.mxu0 0.0
    %787 = vmatpush2.xpose.msra.mxu0 0.0
    %788 = vmatprep.subr.mxu0 0.0
    %789 = vmatpush2.xpose.msra.mxu0 0.0
    %790 = vmatprep.subr.mxu0 0.0
    %791 = vmatpush2.xpose.msra.mxu0 0.0
    %792 = vmatprep.subr.mxu0 0.0
    %793 = vmatpush2.xpose.msra.mxu0 0.0
    %794 = vmatprep.mubr.f32.mxu0 0.0
    %795 = vmatmul.mubr.f32.gmra.mxu0 %v722
    %v796 = vpop.f32.mrf.mxu0
    %v797 = vadd.f32 0.0, %v796
    %v798 = vpop.f32.mrf.mxu0
    %799 = vmatprep.mubr.f32.mxu0 0.0
    %800 = vmatmul.mubr.f32.gmra.mxu0 %v725
    %v801 = vpop.f32.mrf.mxu0
    %v802 = vadd.f32 0.0, %v801
    %v803 = vpop.f32.mrf.mxu0
    %804 = vdwg.mxu0
    %v806 = vsel %vm80, %v226, 0
    %v809 = vsel %vm80, %v231, 0
    %v812 = vsel %vm80, %v391, 0
    %814 = vmatprep.subr.mxu0 0.0
    %815 = vmatpush1.xpose.msra.mxu0 0.0
    %816 = vmatprep.subr.mxu0 0.0
    %817 = vmatpush1.xpose.msra.mxu0 0.0
    %818 = vmatprep.subr.mxu0 0.0
    %819 = vmatpush1.xpose.msra.mxu0 0.0
    %820 = vmatprep.subr.mxu0 0.0
    %821 = vmatpush1.xpose.msra.mxu0 0.0
    %822 = vmatprep.subr.mxu0 0.0
    %823 = vmatpush1.xpose.msra.mxu0 0.0
    %824 = vmatprep.subr.mxu0 0.0
    %825 = vmatpush1.xpose.msra.mxu0 0.0
    %826 = vmatprep.subr.mxu0 0.0
    %827 = vmatpush1.xpose.msra.mxu0 0.0
    %828 = vmatprep.subr.mxu0 0.0
    %829 = vmatpush1.xpose.msra.mxu0 0.0
    %830 = vmatprep.subr.mxu0 0.0
    %831 = vmatpush1.xpose.msra.mxu0 0.0
    %832 = vmatprep.subr.mxu0 0.0
    %833 = vmatpush1.xpose.msra.mxu0 0.0
    %834 = vmatprep.subr.mxu0 0.0
    %835 = vmatpush1.xpose.msra.mxu0 0.0
    %836 = vmatprep.subr.mxu0 0.0
    %837 = vmatpush1.xpose.msra.mxu0 0.0
    %838 = vmatprep.subr.mxu0 0.0
    %839 = vmatpush1.xpose.msra.mxu0 0.0
    %840 = vmatprep.subr.mxu0 0.0
    %841 = vmatpush1.xpose.msra.mxu0 0.0
    %842 = vmatprep.subr.mxu0 0.0
    %843 = vmatpush1.xpose.msra.mxu0 0.0
    %844 = vmatprep.subr.mxu0 0.0
    %845 = vmatpush1.xpose.msra.mxu0 %v812
    %846 = vmatprep.subr.mxu0 0.0
    %847 = vmatpush2.xpose.msra.mxu0 0.0
    %848 = vmatprep.subr.mxu0 0.0
    %849 = vmatpush2.xpose.msra.mxu0 0.0
    %850 = vmatprep.subr.mxu0 0.0
    %851 = vmatpush2.xpose.msra.mxu0 0.0
    %852 = vmatprep.subr.mxu0 0.0
    %853 = vmatpush2.xpose.msra.mxu0 0.0
    %854 = vmatprep.subr.mxu0 0.0
    %855 = vmatpush2.xpose.msra.mxu0 0.0
    %856 = vmatprep.subr.mxu0 0.0
    %857 = vmatpush2.xpose.msra.mxu0 0.0
    %858 = vmatprep.subr.mxu0 0.0
    %859 = vmatpush2.xpose.msra.mxu0 0.0
    %860 = vmatprep.subr.mxu0 0.0
    %861 = vmatpush2.xpose.msra.mxu0 0.0
    %862 = vmatprep.subr.mxu0 0.0
    %863 = vmatpush2.xpose.msra.mxu0 0.0
    %864 = vmatprep.subr.mxu0 0.0
    %865 = vmatpush2.xpose.msra.mxu0 0.0
    %866 = vmatprep.subr.mxu0 0.0
    %867 = vmatpush2.xpose.msra.mxu0 0.0
    %868 = vmatprep.subr.mxu0 0.0
    %869 = vmatpush2.xpose.msra.mxu0 0.0
    %870 = vmatprep.subr.mxu0 0.0
    %871 = vmatpush2.xpose.msra.mxu0 0.0
    %872 = vmatprep.subr.mxu0 0.0
    %873 = vmatpush2.xpose.msra.mxu0 0.0
    %874 = vmatprep.subr.mxu0 0.0
    %875 = vmatpush2.xpose.msra.mxu0 0.0
    %876 = vmatprep.subr.mxu0 0.0
    %877 = vmatpush2.xpose.msra.mxu0 0.0
    %878 = vmatprep.mubr.f32.mxu0 0.0
    %879 = vmatmul.mubr.f32.gmra.mxu0 %v806
    %v880 = vpop.f32.mrf.mxu0
    %v881 = vadd.f32 0.0, %v880
    %v882 = vpop.f32.mrf.mxu0
    %883 = vmatprep.mubr.f32.mxu0 0.0
    %884 = vmatmul.mubr.f32.gmra.mxu0 %v809
    %v885 = vpop.f32.mrf.mxu0
    %v886 = vadd.f32 0.0, %v885
    %v887 = vpop.f32.mrf.mxu0
    %888 = vdwg.mxu0
    %v890 = vsel %vm80, %v236, 0
    %v893 = vsel %vm80, %v241, 0
    %v896 = vsel %vm80, %v396, 0
    %898 = vmatprep.subr.mxu0 0.0
    %899 = vmatpush1.xpose.msra.mxu0 0.0
    %900 = vmatprep.subr.mxu0 0.0
    %901 = vmatpush1.xpose.msra.mxu0 0.0
    %902 = vmatprep.subr.mxu0 0.0
    %903 = vmatpush1.xpose.msra.mxu0 0.0
    %904 = vmatprep.subr.mxu0 0.0
    %905 = vmatpush1.xpose.msra.mxu0 0.0
    %906 = vmatprep.subr.mxu0 0.0
    %907 = vmatpush1.xpose.msra.mxu0 0.0
    %908 = vmatprep.subr.mxu0 0.0
    %909 = vmatpush1.xpose.msra.mxu0 0.0
    %910 = vmatprep.subr.mxu0 0.0
    %911 = vmatpush1.xpose.msra.mxu0 0.0
    %912 = vmatprep.subr.mxu0 0.0
    %913 = vmatpush1.xpose.msra.mxu0 0.0
    %914 = vmatprep.subr.mxu0 0.0
    %915 = vmatpush1.xpose.msra.mxu0 0.0
    %916 = vmatprep.subr.mxu0 0.0
    %917 = vmatpush1.xpose.msra.mxu0 0.0
    %918 = vmatprep.subr.mxu0 0.0
    %919 = vmatpush1.xpose.msra.mxu0 0.0
    %920 = vmatprep.subr.mxu0 0.0
    %921 = vmatpush1.xpose.msra.mxu0 0.0
    %922 = vmatprep.subr.mxu0 0.0
    %923 = vmatpush1.xpose.msra.mxu0 0.0
    %924 = vmatprep.subr.mxu0 0.0
    %925 = vmatpush1.xpose.msra.mxu0 0.0
    %926 = vmatprep.subr.mxu0 0.0
    %927 = vmatpush1.xpose.msra.mxu0 0.0
    %928 = vmatprep.subr.mxu0 0.0
    %929 = vmatpush1.xpose.msra.mxu0 %v896
    %930 = vmatprep.subr.mxu0 0.0
    %931 = vmatpush2.xpose.msra.mxu0 0.0
    %932 = vmatprep.subr.mxu0 0.0
    %933 = vmatpush2.xpose.msra.mxu0 0.0
    %934 = vmatprep.subr.mxu0 0.0
    %935 = vmatpush2.xpose.msra.mxu0 0.0
    %936 = vmatprep.subr.mxu0 0.0
    %937 = vmatpush2.xpose.msra.mxu0 0.0
    %938 = vmatprep.subr.mxu0 0.0
    %939 = vmatpush2.xpose.msra.mxu0 0.0
    %940 = vmatprep.subr.mxu0 0.0
    %941 = vmatpush2.xpose.msra.mxu0 0.0
    %942 = vmatprep.subr.mxu0 0.0
    %943 = vmatpush2.xpose.msra.mxu0 0.0
    %944 = vmatprep.subr.mxu0 0.0
    %945 = vmatpush2.xpose.msra.mxu0 0.0
    %946 = vmatprep.subr.mxu0 0.0
    %947 = vmatpush2.xpose.msra.mxu0 0.0
    %948 = vmatprep.subr.mxu0 0.0
    %949 = vmatpush2.xpose.msra.mxu0 0.0
    %950 = vmatprep.subr.mxu0 0.0
    %951 = vmatpush2.xpose.msra.mxu0 0.0
    %952 = vmatprep.subr.mxu0 0.0
    %953 = vmatpush2.xpose.msra.mxu0 0.0
    %954 = vmatprep.subr.mxu0 0.0
    %955 = vmatpush2.xpose.msra.mxu0 0.0
    %956 = vmatprep.subr.mxu0 0.0
    %957 = vmatpush2.xpose.msra.mxu0 0.0
    %958 = vmatprep.subr.mxu0 0.0
    %959 = vmatpush2.xpose.msra.mxu0 0.0
    %960 = vmatprep.subr.mxu0 0.0
    %961 = vmatpush2.xpose.msra.mxu0 0.0
    %962 = vmatprep.mubr.f32.mxu0 0.0
    %963 = vmatmul.mubr.f32.gmra.mxu0 %v890
    %v964 = vpop.f32.mrf.mxu0
    %v965 = vadd.f32 0.0, %v964
    %v966 = vpop.f32.mrf.mxu0
    %967 = vmatprep.mubr.f32.mxu0 0.0
    %968 = vmatmul.mubr.f32.gmra.mxu0 %v893
    %v969 = vpop.f32.mrf.mxu0
    %v970 = vadd.f32 0.0, %v969
    %v971 = vpop.f32.mrf.mxu0
    %972 = vdwg.mxu0
    %v974 = vsel %vm80, %v246, 0
    %v977 = vsel %vm80, %v251, 0
    %v980 = vsel %vm80, %v401, 0
    %982 = vmatprep.subr.mxu0 0.0
    %983 = vmatpush1.xpose.msra.mxu0 0.0
    %984 = vmatprep.subr.mxu0 0.0
    %985 = vmatpush1.xpose.msra.mxu0 0.0
    %986 = vmatprep.subr.mxu0 0.0
    %987 = vmatpush1.xpose.msra.mxu0 0.0
    %988 = vmatprep.subr.mxu0 0.0
    %989 = vmatpush1.xpose.msra.mxu0 0.0
    %990 = vmatprep.subr.mxu0 0.0
    %991 = vmatpush1.xpose.msra.mxu0 0.0
    %992 = vmatprep.subr.mxu0 0.0
    %993 = vmatpush1.xpose.msra.mxu0 0.0
    %994 = vmatprep.subr.mxu0 0.0
    %995 = vmatpush1.xpose.msra.mxu0 0.0
    %996 = vmatprep.subr.mxu0 0.0
    %997 = vmatpush1.xpose.msra.mxu0 0.0
    %998 = vmatprep.subr.mxu0 0.0
    %999 = vmatpush1.xpose.msra.mxu0 0.0
    %1000 = vmatprep.subr.mxu0 0.0
    %1001 = vmatpush1.xpose.msra.mxu0 0.0
    %1002 = vmatprep.subr.mxu0 0.0
    %1003 = vmatpush1.xpose.msra.mxu0 0.0
    %1004 = vmatprep.subr.mxu0 0.0
    %1005 = vmatpush1.xpose.msra.mxu0 0.0
    %1006 = vmatprep.subr.mxu0 0.0
    %1007 = vmatpush1.xpose.msra.mxu0 0.0
    %1008 = vmatprep.subr.mxu0 0.0
    %1009 = vmatpush1.xpose.msra.mxu0 0.0
    %1010 = vmatprep.subr.mxu0 0.0
    %1011 = vmatpush1.xpose.msra.mxu0 0.0
    %1012 = vmatprep.subr.mxu0 0.0
    %1013 = vmatpush1.xpose.msra.mxu0 %v980
    %1014 = vmatprep.subr.mxu0 0.0
    %1015 = vmatpush2.xpose.msra.mxu0 0.0
    %1016 = vmatprep.subr.mxu0 0.0
    %1017 = vmatpush2.xpose.msra.mxu0 0.0
    %1018 = vmatprep.subr.mxu0 0.0
    %1019 = vmatpush2.xpose.msra.mxu0 0.0
    %1020 = vmatprep.subr.mxu0 0.0
    %1021 = vmatpush2.xpose.msra.mxu0 0.0
    %1022 = vmatprep.subr.mxu0 0.0
    %1023 = vmatpush2.xpose.msra.mxu0 0.0
    %1024 = vmatprep.subr.mxu0 0.0
    %1025 = vmatpush2.xpose.msra.mxu0 0.0
    %1026 = vmatprep.subr.mxu0 0.0
    %1027 = vmatpush2.xpose.msra.mxu0 0.0
    %1028 = vmatprep.subr.mxu0 0.0
    %1029 = vmatpush2.xpose.msra.mxu0 0.0
    %1030 = vmatprep.subr.mxu0 0.0
    %1031 = vmatpush2.xpose.msra.mxu0 0.0
    %1032 = vmatprep.subr.mxu0 0.0
    %1033 = vmatpush2.xpose.msra.mxu0 0.0
    %1034 = vmatprep.subr.mxu0 0.0
    %1035 = vmatpush2.xpose.msra.mxu0 0.0
    %1036 = vmatprep.subr.mxu0 0.0
    %1037 = vmatpush2.xpose.msra.mxu0 0.0
    %1038 = vmatprep.subr.mxu0 0.0
    %1039 = vmatpush2.xpose.msra.mxu0 0.0
    %1040 = vmatprep.subr.mxu0 0.0
    %1041 = vmatpush2.xpose.msra.mxu0 0.0
    %1042 = vmatprep.subr.mxu0 0.0
    %1043 = vmatpush2.xpose.msra.mxu0 0.0
    %1044 = vmatprep.subr.mxu0 0.0
    %1045 = vmatpush2.xpose.msra.mxu0 0.0
    %1046 = vmatprep.mubr.f32.mxu0 0.0
    %1047 = vmatmul.mubr.f32.gmra.mxu0 %v974
    %v1048 = vpop.f32.mrf.mxu0
    %v1049 = vadd.f32 0.0, %v1048
    %v1050 = vpop.f32.mrf.mxu0
    %1051 = vmatprep.mubr.f32.mxu0 0.0
    %1052 = vmatmul.mubr.f32.gmra.mxu0 %v977
    %v1053 = vpop.f32.mrf.mxu0
    %v1054 = vadd.f32 0.0, %v1053
    %v1055 = vpop.f32.mrf.mxu0
    %1056 = vdwg.mxu0
    %v1058 = vsel %vm80, %v256, 0
    %v1061 = vsel %vm80, %v261, 0
    %v1064 = vsel %vm80, %v406, 0
    %1066 = vmatprep.subr.mxu0 0.0
    %1067 = vmatpush1.xpose.msra.mxu0 0.0
    %1068 = vmatprep.subr.mxu0 0.0
    %1069 = vmatpush1.xpose.msra.mxu0 0.0
    %1070 = vmatprep.subr.mxu0 0.0
    %1071 = vmatpush1.xpose.msra.mxu0 0.0
    %1072 = vmatprep.subr.mxu0 0.0
    %1073 = vmatpush1.xpose.msra.mxu0 0.0
    %1074 = vmatprep.subr.mxu0 0.0
    %1075 = vmatpush1.xpose.msra.mxu0 0.0
    %1076 = vmatprep.subr.mxu0 0.0
    %1077 = vmatpush1.xpose.msra.mxu0 0.0
    %1078 = vmatprep.subr.mxu0 0.0
    %1079 = vmatpush1.xpose.msra.mxu0 0.0
    %1080 = vmatprep.subr.mxu0 0.0
    %1081 = vmatpush1.xpose.msra.mxu0 0.0
    %1082 = vmatprep.subr.mxu0 0.0
    %1083 = vmatpush1.xpose.msra.mxu0 0.0
    %1084 = vmatprep.subr.mxu0 0.0
    %1085 = vmatpush1.xpose.msra.mxu0 0.0
    %1086 = vmatprep.subr.mxu0 0.0
    %1087 = vmatpush1.xpose.msra.mxu0 0.0
    %1088 = vmatprep.subr.mxu0 0.0
    %1089 = vmatpush1.xpose.msra.mxu0 0.0
    %1090 = vmatprep.subr.mxu0 0.0
    %1091 = vmatpush1.xpose.msra.mxu0 0.0
    %1092 = vmatprep.subr.mxu0 0.0
    %1093 = vmatpush1.xpose.msra.mxu0 0.0
    %1094 = vmatprep.subr.mxu0 0.0
    %1095 = vmatpush1.xpose.msra.mxu0 0.0
    %1096 = vmatprep.subr.mxu0 0.0
    %1097 = vmatpush1.xpose.msra.mxu0 %v1064
    %1098 = vmatprep.subr.mxu0 0.0
    %1099 = vmatpush2.xpose.msra.mxu0 0.0
    %1100 = vmatprep.subr.mxu0 0.0
    %1101 = vmatpush2.xpose.msra.mxu0 0.0
    %1102 = vmatprep.subr.mxu0 0.0
    %1103 = vmatpush2.xpose.msra.mxu0 0.0
    %1104 = vmatprep.subr.mxu0 0.0
    %1105 = vmatpush2.xpose.msra.mxu0 0.0
    %1106 = vmatprep.subr.mxu0 0.0
    %1107 = vmatpush2.xpose.msra.mxu0 0.0
    %1108 = vmatprep.subr.mxu0 0.0
    %1109 = vmatpush2.xpose.msra.mxu0 0.0
    %1110 = vmatprep.subr.mxu0 0.0
    %1111 = vmatpush2.xpose.msra.mxu0 0.0
    %1112 = vmatprep.subr.mxu0 0.0
    %1113 = vmatpush2.xpose.msra.mxu0 0.0
    %1114 = vmatprep.subr.mxu0 0.0
    %1115 = vmatpush2.xpose.msra.mxu0 0.0
    %1116 = vmatprep.subr.mxu0 0.0
    %1117 = vmatpush2.xpose.msra.mxu0 0.0
    %1118 = vmatprep.subr.mxu0 0.0
    %1119 = vmatpush2.xpose.msra.mxu0 0.0
    %1120 = vmatprep.subr.mxu0 0.0
    %1121 = vmatpush2.xpose.msra.mxu0 0.0
    %1122 = vmatprep.subr.mxu0 0.0
    %1123 = vmatpush2.xpose.msra.mxu0 0.0
    %1124 = vmatprep.subr.mxu0 0.0
    %1125 = vmatpush2.xpose.msra.mxu0 0.0
    %1126 = vmatprep.subr.mxu0 0.0
    %1127 = vmatpush2.xpose.msra.mxu0 0.0
    %1128 = vmatprep.subr.mxu0 0.0
    %1129 = vmatpush2.xpose.msra.mxu0 0.0
    %1130 = vmatprep.mubr.f32.mxu0 0.0
    %1131 = vmatmul.mubr.f32.gmra.mxu0 %v1058
    %v1132 = vpop.f32.mrf.mxu0
    %v1133 = vadd.f32 0.0, %v1132
    %v1134 = vpop.f32.mrf.mxu0
    %1135 = vmatprep.mubr.f32.mxu0 0.0
    %1136 = vmatmul.mubr.f32.gmra.mxu0 %v1061
    %v1137 = vpop.f32.mrf.mxu0
    %v1138 = vadd.f32 0.0, %v1137
    %v1139 = vpop.f32.mrf.mxu0
    %1140 = vdwg.mxu0
    %v1142 = vsel %vm80, %v266, 0
    %v1145 = vsel %vm80, %v271, 0
    %v1148 = vsel %vm80, %v411, 0
    %1150 = vmatprep.subr.mxu0 0.0
    %1151 = vmatpush1.xpose.msra.mxu0 0.0
    %1152 = vmatprep.subr.mxu0 0.0
    %1153 = vmatpush1.xpose.msra.mxu0 0.0
    %1154 = vmatprep.subr.mxu0 0.0
    %1155 = vmatpush1.xpose.msra.mxu0 0.0
    %1156 = vmatprep.subr.mxu0 0.0
    %1157 = vmatpush1.xpose.msra.mxu0 0.0
    %1158 = vmatprep.subr.mxu0 0.0
    %1159 = vmatpush1.xpose.msra.mxu0 0.0
    %1160 = vmatprep.subr.mxu0 0.0
    %1161 = vmatpush1.xpose.msra.mxu0 0.0
    %1162 = vmatprep.subr.mxu0 0.0
    %1163 = vmatpush1.xpose.msra.mxu0 0.0
    %1164 = vmatprep.subr.mxu0 0.0
    %1165 = vmatpush1.xpose.msra.mxu0 0.0
    %1166 = vmatprep.subr.mxu0 0.0
    %1167 = vmatpush1.xpose.msra.mxu0 0.0
    %1168 = vmatprep.subr.mxu0 0.0
    %1169 = vmatpush1.xpose.msra.mxu0 0.0
    %1170 = vmatprep.subr.mxu0 0.0
    %1171 = vmatpush1.xpose.msra.mxu0 0.0
    %1172 = vmatprep.subr.mxu0 0.0
    %1173 = vmatpush1.xpose.msra.mxu0 0.0
    %1174 = vmatprep.subr.mxu0 0.0
    %1175 = vmatpush1.xpose.msra.mxu0 0.0
    %1176 = vmatprep.subr.mxu0 0.0
    %1177 = vmatpush1.xpose.msra.mxu0 0.0
    %1178 = vmatprep.subr.mxu0 0.0
    %1179 = vmatpush1.xpose.msra.mxu0 0.0
    %1180 = vmatprep.subr.mxu0 0.0
    %1181 = vmatpush1.xpose.msra.mxu0 %v1148
    %1182 = vmatprep.subr.mxu0 0.0
    %1183 = vmatpush2.xpose.msra.mxu0 0.0
    %1184 = vmatprep.subr.mxu0 0.0
    %1185 = vmatpush2.xpose.msra.mxu0 0.0
    %1186 = vmatprep.subr.mxu0 0.0
    %1187 = vmatpush2.xpose.msra.mxu0 0.0
    %1188 = vmatprep.subr.mxu0 0.0
    %1189 = vmatpush2.xpose.msra.mxu0 0.0
    %1190 = vmatprep.subr.mxu0 0.0
    %1191 = vmatpush2.xpose.msra.mxu0 0.0
    %1192 = vmatprep.subr.mxu0 0.0
    %1193 = vmatpush2.xpose.msra.mxu0 0.0
    %1194 = vmatprep.subr.mxu0 0.0
    %1195 = vmatpush2.xpose.msra.mxu0 0.0
    %1196 = vmatprep.subr.mxu0 0.0
    %1197 = vmatpush2.xpose.msra.mxu0 0.0
    %1198 = vmatprep.subr.mxu0 0.0
    %1199 = vmatpush2.xpose.msra.mxu0 0.0
    %1200 = vmatprep.subr.mxu0 0.0
    %1201 = vmatpush2.xpose.msra.mxu0 0.0
    %1202 = vmatprep.subr.mxu0 0.0
    %1203 = vmatpush2.xpose.msra.mxu0 0.0
    %1204 = vmatprep.subr.mxu0 0.0
    %1205 = vmatpush2.xpose.msra.mxu0 0.0
    %1206 = vmatprep.subr.mxu0 0.0
    %1207 = vmatpush2.xpose.msra.mxu0 0.0
    %1208 = vmatprep.subr.mxu0 0.0
    %1209 = vmatpush2.xpose.msra.mxu0 0.0
    %1210 = vmatprep.subr.mxu0 0.0
    %1211 = vmatpush2.xpose.msra.mxu0 0.0
    %1212 = vmatprep.subr.mxu0 0.0
    %1213 = vmatpush2.xpose.msra.mxu0 0.0
    %1214 = vmatprep.mubr.f32.mxu0 0.0
    %1215 = vmatmul.mubr.f32.gmra.mxu0 %v1142
    %v1216 = vpop.f32.mrf.mxu0
    %v1217 = vadd.f32 0.0, %v1216
    %v1218 = vpop.f32.mrf.mxu0
    %1219 = vmatprep.mubr.f32.mxu0 0.0
    %1220 = vmatmul.mubr.f32.gmra.mxu0 %v1145
    %v1221 = vpop.f32.mrf.mxu0
    %v1222 = vadd.f32 0.0, %v1221
    %v1223 = vpop.f32.mrf.mxu0
    %1224 = vdwg.mxu0
    %vm1225 = vcmask 64512
    %v1226 = vsel %vm1225, %v629, -inf
    %1227 = vmax.xlane.f32.xlu0 %v1226
    %v1228 = vpop.xlane.xlu0 %1227
    %v1229 = vsel %vm1225, %v634, -inf
    %1230 = vmax.xlane.f32.xlu0 %v1229
    %v1231 = vpop.xlane.xlu0 %1230
    %v1232 = vsel %vm1225, %v713, -inf
    %1233 = vmax.xlane.f32.xlu0 %v1232
    %v1234 = vpop.xlane.xlu0 %1233
    %v1235 = vsel %vm1225, %v718, -inf
    %1236 = vmax.xlane.f32.xlu0 %v1235
    %v1237 = vpop.xlane.xlu0 %1236
    %v1238 = vsel %vm1225, %v797, -inf
    %1239 = vmax.xlane.f32.xlu0 %v1238
    %v1240 = vpop.xlane.xlu0 %1239
    %v1241 = vsel %vm1225, %v802, -inf
    %1242 = vmax.xlane.f32.xlu0 %v1241
    %v1243 = vpop.xlane.xlu0 %1242
    %v1244 = vsel %vm1225, %v881, -inf
    %1245 = vmax.xlane.f32.xlu0 %v1244
    %v1246 = vpop.xlane.xlu0 %1245
    %v1247 = vsel %vm1225, %v886, -inf
    %1248 = vmax.xlane.f32.xlu0 %v1247
    %v1249 = vpop.xlane.xlu0 %1248
    %v1250 = vsel %vm1225, %v965, -inf
    %1251 = vmax.xlane.f32.xlu0 %v1250
    %v1252 = vpop.xlane.xlu0 %1251
    %v1253 = vsel %vm1225, %v970, -inf
    %1254 = vmax.xlane.f32.xlu0 %v1253
    %v1255 = vpop.xlane.xlu0 %1254
    %v1256 = vsel %vm1225, %v1049, -inf
    %1257 = vmax.xlane.f32.xlu0 %v1256
    %v1258 = vpop.xlane.xlu0 %1257
    %v1259 = vsel %vm1225, %v1054, -inf
    %1260 = vmax.xlane.f32.xlu0 %v1259
    %v1261 = vpop.xlane.xlu0 %1260
    %v1262 = vsel %vm1225, %v1133, -inf
    %1263 = vmax.xlane.f32.xlu0 %v1262
    %v1264 = vpop.xlane.xlu0 %1263
    %v1265 = vsel %vm1225, %v1138, -inf
    %1266 = vmax.xlane.f32.xlu0 %v1265
    %v1267 = vpop.xlane.xlu0 %1266
    %v1268 = vsel %vm1225, %v1217, -inf
    %1269 = vmax.xlane.f32.xlu0 %v1268
    %v1270 = vpop.xlane.xlu0 %1269
    %v1271 = vsel %vm1225, %v1222, -inf
    %1272 = vmax.xlane.f32.xlu0 %v1271
    %v1273 = vpop.xlane.xlu0 %1272
    %v1274 = vsub.f32 %v629, %v1228
    %v1275 = vsub.f32 %v634, %v1231
    %v1276 = vsub.f32 %v713, %v1234
    %v1277 = vsub.f32 %v718, %v1237
    %v1278 = vsub.f32 %v797, %v1240
    %v1279 = vsub.f32 %v802, %v1243
    %v1280 = vsub.f32 %v881, %v1246
    %v1281 = vsub.f32 %v886, %v1249
    %v1282 = vsub.f32 %v965, %v1252
    %v1283 = vsub.f32 %v970, %v1255
    %v1284 = vsub.f32 %v1049, %v1258
    %v1285 = vsub.f32 %v1054, %v1261
    %v1286 = vsub.f32 %v1133, %v1264
    %v1287 = vsub.f32 %v1138, %v1267
    %v1288 = vsub.f32 %v1217, %v1270
    %v1289 = vsub.f32 %v1222, %v1273
    %v1290 = vmul.f32 %v1274, 1.442695
    %v1291 = vpow.pop %v1290
    %v1292 = vmul.f32 %v1275, 1.442695
    %v1293 = vpow.pop %v1292
    %v1294 = vmul.f32 %v1276, 1.442695
    %v1295 = vpow.pop %v1294
    %v1296 = vmul.f32 %v1277, 1.442695
    %v1297 = vpow.pop %v1296
    %v1298 = vmul.f32 %v1278, 1.442695
    %v1299 = vpow.pop %v1298
    %v1300 = vmul.f32 %v1279, 1.442695
    %v1301 = vpow.pop %v1300
    %v1302 = vmul.f32 %v1280, 1.442695
    %v1303 = vpow.pop %v1302
    %v1304 = vmul.f32 %v1281, 1.442695
    %v1305 = vpow.pop %v1304
    %v1306 = vmul.f32 %v1282, 1.442695
    %v1307 = vpow.pop %v1306
    %v1308 = vmul.f32 %v1283, 1.442695
    %v1309 = vpow.pop %v1308
    %v1310 = vmul.f32 %v1284, 1.442695
    %v1311 = vpow.pop %v1310
    %v1312 = vmul.f32 %v1285, 1.442695
    %v1313 = vpow.pop %v1312
    %v1314 = vmul.f32 %v1286, 1.442695
    %v1315 = vpow.pop %v1314
    %v1316 = vmul.f32 %v1287, 1.442695
    %v1317 = vpow.pop %v1316
    %v1318 = vmul.f32 %v1288, 1.442695
    %v1319 = vpow.pop %v1318
    %v1320 = vmul.f32 %v1289, 1.442695
    %v1321 = vpow.pop %v1320
    %v1322 = vsel %vm1225, %v1291, 0.0
    %1323 = vadd.xlane.f32.xlu0 %v1322
    %v1324 = vpop.xlane.xlu0 %1323
    %v1325 = vsel %vm1225, %v1293, 0.0
    %1326 = vadd.xlane.f32.xlu0 %v1325
    %v1327 = vpop.xlane.xlu0 %1326
    %v1328 = vsel %vm1225, %v1295, 0.0
    %1329 = vadd.xlane.f32.xlu0 %v1328
    %v1330 = vpop.xlane.xlu0 %1329
    %v1331 = vsel %vm1225, %v1297, 0.0
    %1332 = vadd.xlane.f32.xlu0 %v1331
    %v1333 = vpop.xlane.xlu0 %1332
    %v1334 = vsel %vm1225, %v1299, 0.0
    %1335 = vadd.xlane.f32.xlu0 %v1334
    %v1336 = vpop.xlane.xlu0 %1335
    %v1337 = vsel %vm1225, %v1301, 0.0
    %1338 = vadd.xlane.f32.xlu0 %v1337
    %v1339 = vpop.xlane.xlu0 %1338
    %v1340 = vsel %vm1225, %v1303, 0.0
    %1341 = vadd.xlane.f32.xlu0 %v1340
    %v1342 = vpop.xlane.xlu0 %1341
    %v1343 = vsel %vm1225, %v1305, 0.0
    %1344 = vadd.xlane.f32.xlu0 %v1343
    %v1345 = vpop.xlane.xlu0 %1344
    %v1346 = vsel %vm1225, %v1307, 0.0
    %1347 = vadd.xlane.f32.xlu0 %v1346
    %v1348 = vpop.xlane.xlu0 %1347
    %v1349 = vsel %vm1225, %v1309, 0.0
    %1350 = vadd.xlane.f32.xlu0 %v1349
    %v1351 = vpop.xlane.xlu0 %1350
    %v1352 = vsel %vm1225, %v1311, 0.0
    %1353 = vadd.xlane.f32.xlu0 %v1352
    %v1354 = vpop.xlane.xlu0 %1353
    %v1355 = vsel %vm1225, %v1313, 0.0
    %1356 = vadd.xlane.f32.xlu0 %v1355
    %v1357 = vpop.xlane.xlu0 %1356
    %v1358 = vsel %vm1225, %v1315, 0.0
    %1359 = vadd.xlane.f32.xlu0 %v1358
    %v1360 = vpop.xlane.xlu0 %1359
    %v1361 = vsel %vm1225, %v1317, 0.0
    %1362 = vadd.xlane.f32.xlu0 %v1361
    %v1363 = vpop.xlane.xlu0 %1362
    %v1364 = vsel %vm1225, %v1319, 0.0
    %1365 = vadd.xlane.f32.xlu0 %v1364
    %v1366 = vpop.xlane.xlu0 %1365
    %v1367 = vsel %vm1225, %v1321, 0.0
    %1368 = vadd.xlane.f32.xlu0 %v1367
    %v1369 = vpop.xlane.xlu0 %1368
    %v1370 = vrcp.pop %v1324
    %v1371 = vrcp.pop %v1327
    %v1372 = vrcp.pop %v1330
    %v1373 = vrcp.pop %v1333
    %v1374 = vrcp.pop %v1336
    %v1375 = vrcp.pop %v1339
    %v1376 = vrcp.pop %v1342
    %v1377 = vrcp.pop %v1345
    %v1378 = vrcp.pop %v1348
    %v1379 = vrcp.pop %v1351
    %v1380 = vrcp.pop %v1354
    %v1381 = vrcp.pop %v1357
    %v1382 = vrcp.pop %v1360
    %v1383 = vrcp.pop %v1363
    %v1384 = vrcp.pop %v1366
    %v1385 = vrcp.pop %v1369
    %v1386 = vmul.f32 %v1291, %v1370
    %v1387 = vmul.f32 %v1293, %v1371
    %v1388 = vmul.f32 %v1295, %v1372
    %v1389 = vmul.f32 %v1297, %v1373
    %v1390 = vmul.f32 %v1299, %v1374
    %v1391 = vmul.f32 %v1301, %v1375
    %v1392 = vmul.f32 %v1303, %v1376
    %v1393 = vmul.f32 %v1305, %v1377
    %v1394 = vmul.f32 %v1307, %v1378
    %v1395 = vmul.f32 %v1309, %v1379
    %v1396 = vmul.f32 %v1311, %v1380
    %v1397 = vmul.f32 %v1313, %v1381
    %v1398 = vmul.f32 %v1315, %v1382
    %v1399 = vmul.f32 %v1317, %v1383
    %v1400 = vmul.f32 %v1319, %v1384
    %v1401 = vmul.f32 %v1321, %v1385
    %v1403 = vsel %vm1225, %v1386, 0
    %v1406 = vsel %vm1225, %v1387, 0
    %1408 = vmatprep.subr.mxu0 0.0
    %1409 = vmatpush1.msra.mxu0 0.0
    %1410 = vmatprep.subr.mxu0 0.0
    %1411 = vmatpush1.msra.mxu0 0.0
    %1412 = vmatprep.subr.mxu0 0.0
    %1413 = vmatpush1.msra.mxu0 0.0
    %1414 = vmatprep.subr.mxu0 0.0
    %1415 = vmatpush1.msra.mxu0 0.0
    %1416 = vmatprep.subr.mxu0 0.0
    %1417 = vmatpush1.msra.mxu0 0.0
    %1418 = vmatprep.subr.mxu0 0.0
    %1419 = vmatpush1.msra.mxu0 0.0
    %1420 = vmatprep.subr.mxu0 0.0
    %1421 = vmatpush1.msra.mxu0 0.0
    %1422 = vmatprep.subr.mxu0 0.0
    %1423 = vmatpush1.msra.mxu0 0.0
    %1424 = vmatprep.subr.mxu0 0.0
    %1425 = vmatpush1.msra.mxu0 0.0
    %1426 = vmatprep.subr.mxu0 0.0
    %1427 = vmatpush1.msra.mxu0 0.0
    %1428 = vmatprep.subr.mxu0 0.0
    %1429 = vmatpush1.msra.mxu0 0.0
    %1430 = vmatprep.subr.mxu0 0.0
    %1431 = vmatpush1.msra.mxu0 0.0
    %1432 = vmatprep.subr.mxu0 0.0
    %1433 = vmatpush1.msra.mxu0 0.0
    %1434 = vmatprep.subr.mxu0 0.0
    %1435 = vmatpush1.msra.mxu0 0.0
    %1436 = vmatprep.subr.mxu0 0.0
    %1437 = vmatpush1.msra.mxu0 0.0
    %1438 = vmatprep.subr.mxu0 0.0
    %1439 = vmatpush1.msra.mxu0 %v515
    %1440 = vmatprep.subr.mxu0 0.0
    %1441 = vmatpush2.msra.mxu0 0.0
    %1442 = vmatprep.subr.mxu0 0.0
    %1443 = vmatpush2.msra.mxu0 0.0
    %1444 = vmatprep.subr.mxu0 0.0
    %1445 = vmatpush2.msra.mxu0 0.0
    %1446 = vmatprep.subr.mxu0 0.0
    %1447 = vmatpush2.msra.mxu0 0.0
    %1448 = vmatprep.subr.mxu0 0.0
    %1449 = vmatpush2.msra.mxu0 0.0
    %1450 = vmatprep.subr.mxu0 0.0
    %1451 = vmatpush2.msra.mxu0 0.0
    %1452 = vmatprep.subr.mxu0 0.0
    %1453 = vmatpush2.msra.mxu0 0.0
    %1454 = vmatprep.subr.mxu0 0.0
    %1455 = vmatpush2.msra.mxu0 0.0
    %1456 = vmatprep.subr.mxu0 0.0
    %1457 = vmatpush2.msra.mxu0 0.0
    %1458 = vmatprep.subr.mxu0 0.0
    %1459 = vmatpush2.msra.mxu0 0.0
    %1460 = vmatprep.subr.mxu0 0.0
    %1461 = vmatpush2.msra.mxu0 0.0
    %1462 = vmatprep.subr.mxu0 0.0
    %1463 = vmatpush2.msra.mxu0 0.0
    %1464 = vmatprep.subr.mxu0 0.0
    %1465 = vmatpush2.msra.mxu0 0.0
    %1466 = vmatprep.subr.mxu0 0.0
    %1467 = vmatpush2.msra.mxu0 0.0
    %1468 = vmatprep.subr.mxu0 0.0
    %1469 = vmatpush2.msra.mxu0 0.0
    %1470 = vmatprep.subr.mxu0 0.0
    %1471 = vmatpush2.msra.mxu0 0.0
    %1472 = vmatprep.mubr.f32.mxu0 0.0
    %1473 = vmatmul.mubr.f32.gmra.mxu0 %v1403
    %v1474 = vpop.f32.mrf.mxu0
    %v1475 = vadd.f32 0.0, %v1474
    %v1476 = vpop.f32.mrf.mxu0
    %1477 = vmatprep.mubr.f32.mxu0 0.0
    %1478 = vmatmul.mubr.f32.gmra.mxu0 %v1406
    %v1479 = vpop.f32.mrf.mxu0
    %v1480 = vadd.f32 0.0, %v1479
    %v1481 = vpop.f32.mrf.mxu0
    %1482 = vdwg.mxu0
    %v1484 = vsel %vm1225, %v1388, 0
    %v1487 = vsel %vm1225, %v1389, 0
    %1489 = vmatprep.subr.mxu0 0.0
    %1490 = vmatpush1.msra.mxu0 0.0
    %1491 = vmatprep.subr.mxu0 0.0
    %1492 = vmatpush1.msra.mxu0 0.0
    %1493 = vmatprep.subr.mxu0 0.0
    %1494 = vmatpush1.msra.mxu0 0.0
    %1495 = vmatprep.subr.mxu0 0.0
    %1496 = vmatpush1.msra.mxu0 0.0
    %1497 = vmatprep.subr.mxu0 0.0
    %1498 = vmatpush1.msra.mxu0 0.0
    %1499 = vmatprep.subr.mxu0 0.0
    %1500 = vmatpush1.msra.mxu0 0.0
    %1501 = vmatprep.subr.mxu0 0.0
    %1502 = vmatpush1.msra.mxu0 0.0
    %1503 = vmatprep.subr.mxu0 0.0
    %1504 = vmatpush1.msra.mxu0 0.0
    %1505 = vmatprep.subr.mxu0 0.0
    %1506 = vmatpush1.msra.mxu0 0.0
    %1507 = vmatprep.subr.mxu0 0.0
    %1508 = vmatpush1.msra.mxu0 0.0
    %1509 = vmatprep.subr.mxu0 0.0
    %1510 = vmatpush1.msra.mxu0 0.0
    %1511 = vmatprep.subr.mxu0 0.0
    %1512 = vmatpush1.msra.mxu0 0.0
    %1513 = vmatprep.subr.mxu0 0.0
    %1514 = vmatpush1.msra.mxu0 0.0
    %1515 = vmatprep.subr.mxu0 0.0
    %1516 = vmatpush1.msra.mxu0 0.0
    %1517 = vmatprep.subr.mxu0 0.0
    %1518 = vmatpush1.msra.mxu0 0.0
    %1519 = vmatprep.subr.mxu0 0.0
    %1520 = vmatpush1.msra.mxu0 %v520
    %1521 = vmatprep.subr.mxu0 0.0
    %1522 = vmatpush2.msra.mxu0 0.0
    %1523 = vmatprep.subr.mxu0 0.0
    %1524 = vmatpush2.msra.mxu0 0.0
    %1525 = vmatprep.subr.mxu0 0.0
    %1526 = vmatpush2.msra.mxu0 0.0
    %1527 = vmatprep.subr.mxu0 0.0
    %1528 = vmatpush2.msra.mxu0 0.0
    %1529 = vmatprep.subr.mxu0 0.0
    %1530 = vmatpush2.msra.mxu0 0.0
    %1531 = vmatprep.subr.mxu0 0.0
    %1532 = vmatpush2.msra.mxu0 0.0
    %1533 = vmatprep.subr.mxu0 0.0
    %1534 = vmatpush2.msra.mxu0 0.0
    %1535 = vmatprep.subr.mxu0 0.0
    %1536 = vmatpush2.msra.mxu0 0.0
    %1537 = vmatprep.subr.mxu0 0.0
    %1538 = vmatpush2.msra.mxu0 0.0
    %1539 = vmatprep.subr.mxu0 0.0
    %1540 = vmatpush2.msra.mxu0 0.0
    %1541 = vmatprep.subr.mxu0 0.0
    %1542 = vmatpush2.msra.mxu0 0.0
    %1543 = vmatprep.subr.mxu0 0.0
    %1544 = vmatpush2.msra.mxu0 0.0
    %1545 = vmatprep.subr.mxu0 0.0
    %1546 = vmatpush2.msra.mxu0 0.0
    %1547 = vmatprep.subr.mxu0 0.0
    %1548 = vmatpush2.msra.mxu0 0.0
    %1549 = vmatprep.subr.mxu0 0.0
    %1550 = vmatpush2.msra.mxu0 0.0
    %1551 = vmatprep.subr.mxu0 0.0
    %1552 = vmatpush2.msra.mxu0 0.0
    %1553 = vmatprep.mubr.f32.mxu0 0.0
    %1554 = vmatmul.mubr.f32.gmra.mxu0 %v1484
    %v1555 = vpop.f32.mrf.mxu0
    %v1556 = vadd.f32 0.0, %v1555
    %v1557 = vpop.f32.mrf.mxu0
    %1558 = vmatprep.mubr.f32.mxu0 0.0
    %1559 = vmatmul.mubr.f32.gmra.mxu0 %v1487
    %v1560 = vpop.f32.mrf.mxu0
    %v1561 = vadd.f32 0.0, %v1560
    %v1562 = vpop.f32.mrf.mxu0
    %1563 = vdwg.mxu0
    %v1565 = vsel %vm1225, %v1390, 0
    %v1568 = vsel %vm1225, %v1391, 0
    %1570 = vmatprep.subr.mxu0 0.0
    %1571 = vmatpush1.msra.mxu0 0.0
    %1572 = vmatprep.subr.mxu0 0.0
    %1573 = vmatpush1.msra.mxu0 0.0
    %1574 = vmatprep.subr.mxu0 0.0
    %1575 = vmatpush1.msra.mxu0 0.0
    %1576 = vmatprep.subr.mxu0 0.0
    %1577 = vmatpush1.msra.mxu0 0.0
    %1578 = vmatprep.subr.mxu0 0.0
    %1579 = vmatpush1.msra.mxu0 0.0
    %1580 = vmatprep.subr.mxu0 0.0
    %1581 = vmatpush1.msra.mxu0 0.0
    %1582 = vmatprep.subr.mxu0 0.0
    %1583 = vmatpush1.msra.mxu0 0.0
    %1584 = vmatprep.subr.mxu0 0.0
    %1585 = vmatpush1.msra.mxu0 0.0
    %1586 = vmatprep.subr.mxu0 0.0
    %1587 = vmatpush1.msra.mxu0 0.0
    %1588 = vmatprep.subr.mxu0 0.0
    %1589 = vmatpush1.msra.mxu0 0.0
    %1590 = vmatprep.subr.mxu0 0.0
    %1591 = vmatpush1.msra.mxu0 0.0
    %1592 = vmatprep.subr.mxu0 0.0
    %1593 = vmatpush1.msra.mxu0 0.0
    %1594 = vmatprep.subr.mxu0 0.0
    %1595 = vmatpush1.msra.mxu0 0.0
    %1596 = vmatprep.subr.mxu0 0.0
    %1597 = vmatpush1.msra.mxu0 0.0
    %1598 = vmatprep.subr.mxu0 0.0
    %1599 = vmatpush1.msra.mxu0 0.0
    %1600 = vmatprep.subr.mxu0 0.0
    %1601 = vmatpush1.msra.mxu0 %v525
    %1602 = vmatprep.subr.mxu0 0.0
    %1603 = vmatpush2.msra.mxu0 0.0
    %1604 = vmatprep.subr.mxu0 0.0
    %1605 = vmatpush2.msra.mxu0 0.0
    %1606 = vmatprep.subr.mxu0 0.0
    %1607 = vmatpush2.msra.mxu0 0.0
    %1608 = vmatprep.subr.mxu0 0.0
    %1609 = vmatpush2.msra.mxu0 0.0
    %1610 = vmatprep.subr.mxu0 0.0
    %1611 = vmatpush2.msra.mxu0 0.0
    %1612 = vmatprep.subr.mxu0 0.0
    %1613 = vmatpush2.msra.mxu0 0.0
    %1614 = vmatprep.subr.mxu0 0.0
    %1615 = vmatpush2.msra.mxu0 0.0
    %1616 = vmatprep.subr.mxu0 0.0
    %1617 = vmatpush2.msra.mxu0 0.0
    %1618 = vmatprep.subr.mxu0 0.0
    %1619 = vmatpush2.msra.mxu0 0.0
    %1620 = vmatprep.subr.mxu0 0.0
    %1621 = vmatpush2.msra.mxu0 0.0
    %1622 = vmatprep.subr.mxu0 0.0
    %1623 = vmatpush2.msra.mxu0 0.0
    %1624 = vmatprep.subr.mxu0 0.0
    %1625 = vmatpush2.msra.mxu0 0.0
    %1626 = vmatprep.subr.mxu0 0.0
    %1627 = vmatpush2.msra.mxu0 0.0
    %1628 = vmatprep.subr.mxu0 0.0
    %1629 = vmatpush2.msra.mxu0 0.0
    %1630 = vmatprep.subr.mxu0 0.0
    %1631 = vmatpush2.msra.mxu0 0.0
    %1632 = vmatprep.subr.mxu0 0.0
    %1633 = vmatpush2.msra.mxu0 0.0
    %1634 = vmatprep.mubr.f32.mxu0 0.0
    %1635 = vmatmul.mubr.f32.gmra.mxu0 %v1565
    %v1636 = vpop.f32.mrf.mxu0
    %v1637 = vadd.f32 0.0, %v1636
    %v1638 = vpop.f32.mrf.mxu0
    %1639 = vmatprep.mubr.f32.mxu0 0.0
    %1640 = vmatmul.mubr.f32.gmra.mxu0 %v1568
    %v1641 = vpop.f32.mrf.mxu0
    %v1642 = vadd.f32 0.0, %v1641
    %v1643 = vpop.f32.mrf.mxu0
    %1644 = vdwg.mxu0
    %v1646 = vsel %vm1225, %v1392, 0
    %v1649 = vsel %vm1225, %v1393, 0
    %1651 = vmatprep.subr.mxu0 0.0
    %1652 = vmatpush1.msra.mxu0 0.0
    %1653 = vmatprep.subr.mxu0 0.0
    %1654 = vmatpush1.msra.mxu0 0.0
    %1655 = vmatprep.subr.mxu0 0.0
    %1656 = vmatpush1.msra.mxu0 0.0
    %1657 = vmatprep.subr.mxu0 0.0
    %1658 = vmatpush1.msra.mxu0 0.0
    %1659 = vmatprep.subr.mxu0 0.0
    %1660 = vmatpush1.msra.mxu0 0.0
    %1661 = vmatprep.subr.mxu0 0.0
    %1662 = vmatpush1.msra.mxu0 0.0
    %1663 = vmatprep.subr.mxu0 0.0
    %1664 = vmatpush1.msra.mxu0 0.0
    %1665 = vmatprep.subr.mxu0 0.0
    %1666 = vmatpush1.msra.mxu0 0.0
    %1667 = vmatprep.subr.mxu0 0.0
    %1668 = vmatpush1.msra.mxu0 0.0
    %1669 = vmatprep.subr.mxu0 0.0
    %1670 = vmatpush1.msra.mxu0 0.0
    %1671 = vmatprep.subr.mxu0 0.0
    %1672 = vmatpush1.msra.mxu0 0.0
    %1673 = vmatprep.subr.mxu0 0.0
    %1674 = vmatpush1.msra.mxu0 0.0
    %1675 = vmatprep.subr.mxu0 0.0
    %1676 = vmatpush1.msra.mxu0 0.0
    %1677 = vmatprep.subr.mxu0 0.0
    %1678 = vmatpush1.msra.mxu0 0.0
    %1679 = vmatprep.subr.mxu0 0.0
    %1680 = vmatpush1.msra.mxu0 0.0
    %1681 = vmatprep.subr.mxu0 0.0
    %1682 = vmatpush1.msra.mxu0 %v530
    %1683 = vmatprep.subr.mxu0 0.0
    %1684 = vmatpush2.msra.mxu0 0.0
    %1685 = vmatprep.subr.mxu0 0.0
    %1686 = vmatpush2.msra.mxu0 0.0
    %1687 = vmatprep.subr.mxu0 0.0
    %1688 = vmatpush2.msra.mxu0 0.0
    %1689 = vmatprep.subr.mxu0 0.0
    %1690 = vmatpush2.msra.mxu0 0.0
    %1691 = vmatprep.subr.mxu0 0.0
    %1692 = vmatpush2.msra.mxu0 0.0
    %1693 = vmatprep.subr.mxu0 0.0
    %1694 = vmatpush2.msra.mxu0 0.0
    %1695 = vmatprep.subr.mxu0 0.0
    %1696 = vmatpush2.msra.mxu0 0.0
    %1697 = vmatprep.subr.mxu0 0.0
    %1698 = vmatpush2.msra.mxu0 0.0
    %1699 = vmatprep.subr.mxu0 0.0
    %1700 = vmatpush2.msra.mxu0 0.0
    %1701 = vmatprep.subr.mxu0 0.0
    %1702 = vmatpush2.msra.mxu0 0.0
    %1703 = vmatprep.subr.mxu0 0.0
    %1704 = vmatpush2.msra.mxu0 0.0
    %1705 = vmatprep.subr.mxu0 0.0
    %1706 = vmatpush2.msra.mxu0 0.0
    %1707 = vmatprep.subr.mxu0 0.0
    %1708 = vmatpush2.msra.mxu0 0.0
    %1709 = vmatprep.subr.mxu0 0.0
    %1710 = vmatpush2.msra.mxu0 0.0
    %1711 = vmatprep.subr.mxu0 0.0
    %1712 = vmatpush2.msra.mxu0 0.0
    %1713 = vmatprep.subr.mxu0 0.0
    %1714 = vmatpush2.msra.mxu0 0.0
    %1715 = vmatprep.mubr.f32.mxu0 0.0
    %1716 = vmatmul.mubr.f32.gmra.mxu0 %v1646
    %v1717 = vpop.f32.mrf.mxu0
    %v1718 = vadd.f32 0.0, %v1717
    %v1719 = vpop.f32.mrf.mxu0
    %1720 = vmatprep.mubr.f32.mxu0 0.0
    %1721 = vmatmul.mubr.f32.gmra.mxu0 %v1649
    %v1722 = vpop.f32.mrf.mxu0
    %v1723 = vadd.f32 0.0, %v1722
    %v1724 = vpop.f32.mrf.mxu0
    %1725 = vdwg.mxu0
    %v1727 = vsel %vm1225, %v1394, 0
    %v1730 = vsel %vm1225, %v1395, 0
    %1732 = vmatprep.subr.mxu0 0.0
    %1733 = vmatpush1.msra.mxu0 0.0
    %1734 = vmatprep.subr.mxu0 0.0
    %1735 = vmatpush1.msra.mxu0 0.0
    %1736 = vmatprep.subr.mxu0 0.0
    %1737 = vmatpush1.msra.mxu0 0.0
    %1738 = vmatprep.subr.mxu0 0.0
    %1739 = vmatpush1.msra.mxu0 0.0
    %1740 = vmatprep.subr.mxu0 0.0
    %1741 = vmatpush1.msra.mxu0 0.0
    %1742 = vmatprep.subr.mxu0 0.0
    %1743 = vmatpush1.msra.mxu0 0.0
    %1744 = vmatprep.subr.mxu0 0.0
    %1745 = vmatpush1.msra.mxu0 0.0
    %1746 = vmatprep.subr.mxu0 0.0
    %1747 = vmatpush1.msra.mxu0 0.0
    %1748 = vmatprep.subr.mxu0 0.0
    %1749 = vmatpush1.msra.mxu0 0.0
    %1750 = vmatprep.subr.mxu0 0.0
    %1751 = vmatpush1.msra.mxu0 0.0
    %1752 = vmatprep.subr.mxu0 0.0
    %1753 = vmatpush1.msra.mxu0 0.0
    %1754 = vmatprep.subr.mxu0 0.0
    %1755 = vmatpush1.msra.mxu0 0.0
    %1756 = vmatprep.subr.mxu0 0.0
    %1757 = vmatpush1.msra.mxu0 0.0
    %1758 = vmatprep.subr.mxu0 0.0
    %1759 = vmatpush1.msra.mxu0 0.0
    %1760 = vmatprep.subr.mxu0 0.0
    %1761 = vmatpush1.msra.mxu0 0.0
    %1762 = vmatprep.subr.mxu0 0.0
    %1763 = vmatpush1.msra.mxu0 %v535
    %1764 = vmatprep.subr.mxu0 0.0
    %1765 = vmatpush2.msra.mxu0 0.0
    %1766 = vmatprep.subr.mxu0 0.0
    %1767 = vmatpush2.msra.mxu0 0.0
    %1768 = vmatprep.subr.mxu0 0.0
    %1769 = vmatpush2.msra.mxu0 0.0
    %1770 = vmatprep.subr.mxu0 0.0
    %1771 = vmatpush2.msra.mxu0 0.0
    %1772 = vmatprep.subr.mxu0 0.0
    %1773 = vmatpush2.msra.mxu0 0.0
    %1774 = vmatprep.subr.mxu0 0.0
    %1775 = vmatpush2.msra.mxu0 0.0
    %1776 = vmatprep.subr.mxu0 0.0
    %1777 = vmatpush2.msra.mxu0 0.0
    %1778 = vmatprep.subr.mxu0 0.0
    %1779 = vmatpush2.msra.mxu0 0.0
    %1780 = vmatprep.subr.mxu0 0.0
    %1781 = vmatpush2.msra.mxu0 0.0
    %1782 = vmatprep.subr.mxu0 0.0
    %1783 = vmatpush2.msra.mxu0 0.0
    %1784 = vmatprep.subr.mxu0 0.0
    %1785 = vmatpush2.msra.mxu0 0.0
    %1786 = vmatprep.subr.mxu0 0.0
    %1787 = vmatpush2.msra.mxu0 0.0
    %1788 = vmatprep.subr.mxu0 0.0
    %1789 = vmatpush2.msra.mxu0 0.0
    %1790 = vmatprep.subr.mxu0 0.0
    %1791 = vmatpush2.msra.mxu0 0.0
    %1792 = vmatprep.subr.mxu0 0.0
    %1793 = vmatpush2.msra.mxu0 0.0
    %1794 = vmatprep.subr.mxu0 0.0
    %1795 = vmatpush2.msra.mxu0 0.0
    %1796 = vmatprep.mubr.f32.mxu0 0.0
    %1797 = vmatmul.mubr.f32.gmra.mxu0 %v1727
    %v1798 = vpop.f32.mrf.mxu0
    %v1799 = vadd.f32 0.0, %v1798
    %v1800 = vpop.f32.mrf.mxu0
    %1801 = vmatprep.mubr.f32.mxu0 0.0
    %1802 = vmatmul.mubr.f32.gmra.mxu0 %v1730
    %v1803 = vpop.f32.mrf.mxu0
    %v1804 = vadd.f32 0.0, %v1803
    %v1805 = vpop.f32.mrf.mxu0
    %1806 = vdwg.mxu0
    %v1808 = vsel %vm1225, %v1396, 0
    %v1811 = vsel %vm1225, %v1397, 0
    %1813 = vmatprep.subr.mxu0 0.0
    %1814 = vmatpush1.msra.mxu0 0.0
    %1815 = vmatprep.subr.mxu0 0.0
    %1816 = vmatpush1.msra.mxu0 0.0
    %1817 = vmatprep.subr.mxu0 0.0
    %1818 = vmatpush1.msra.mxu0 0.0
    %1819 = vmatprep.subr.mxu0 0.0
    %1820 = vmatpush1.msra.mxu0 0.0
    %1821 = vmatprep.subr.mxu0 0.0
    %1822 = vmatpush1.msra.mxu0 0.0
    %1823 = vmatprep.subr.mxu0 0.0
    %1824 = vmatpush1.msra.mxu0 0.0
    %1825 = vmatprep.subr.mxu0 0.0
    %1826 = vmatpush1.msra.mxu0 0.0
    %1827 = vmatprep.subr.mxu0 0.0
    %1828 = vmatpush1.msra.mxu0 0.0
    %1829 = vmatprep.subr.mxu0 0.0
    %1830 = vmatpush1.msra.mxu0 0.0
    %1831 = vmatprep.subr.mxu0 0.0
    %1832 = vmatpush1.msra.mxu0 0.0
    %1833 = vmatprep.subr.mxu0 0.0
    %1834 = vmatpush1.msra.mxu0 0.0
    %1835 = vmatprep.subr.mxu0 0.0
    %1836 = vmatpush1.msra.mxu0 0.0
    %1837 = vmatprep.subr.mxu0 0.0
    %1838 = vmatpush1.msra.mxu0 0.0
    %1839 = vmatprep.subr.mxu0 0.0
    %1840 = vmatpush1.msra.mxu0 0.0
    %1841 = vmatprep.subr.mxu0 0.0
    %1842 = vmatpush1.msra.mxu0 0.0
    %1843 = vmatprep.subr.mxu0 0.0
    %1844 = vmatpush1.msra.mxu0 %v540
    %1845 = vmatprep.subr.mxu0 0.0
    %1846 = vmatpush2.msra.mxu0 0.0
    %1847 = vmatprep.subr.mxu0 0.0
    %1848 = vmatpush2.msra.mxu0 0.0
    %1849 = vmatprep.subr.mxu0 0.0
    %1850 = vmatpush2.msra.mxu0 0.0
    %1851 = vmatprep.subr.mxu0 0.0
    %1852 = vmatpush2.msra.mxu0 0.0
    %1853 = vmatprep.subr.mxu0 0.0
    %1854 = vmatpush2.msra.mxu0 0.0
    %1855 = vmatprep.subr.mxu0 0.0
    %1856 = vmatpush2.msra.mxu0 0.0
    %1857 = vmatprep.subr.mxu0 0.0
    %1858 = vmatpush2.msra.mxu0 0.0
    %1859 = vmatprep.subr.mxu0 0.0
    %1860 = vmatpush2.msra.mxu0 0.0
    %1861 = vmatprep.subr.mxu0 0.0
    %1862 = vmatpush2.msra.mxu0 0.0
    %1863 = vmatprep.subr.mxu0 0.0
    %1864 = vmatpush2.msra.mxu0 0.0
    %1865 = vmatprep.subr.mxu0 0.0
    %1866 = vmatpush2.msra.mxu0 0.0
    %1867 = vmatprep.subr.mxu0 0.0
    %1868 = vmatpush2.msra.mxu0 0.0
    %1869 = vmatprep.subr.mxu0 0.0
    %1870 = vmatpush2.msra.mxu0 0.0
    %1871 = vmatprep.subr.mxu0 0.0
    %1872 = vmatpush2.msra.mxu0 0.0
    %1873 = vmatprep.subr.mxu0 0.0
    %1874 = vmatpush2.msra.mxu0 0.0
    %1875 = vmatprep.subr.mxu0 0.0
    %1876 = vmatpush2.msra.mxu0 0.0
    %1877 = vmatprep.mubr.f32.mxu0 0.0
    %1878 = vmatmul.mubr.f32.gmra.mxu0 %v1808
    %v1879 = vpop.f32.mrf.mxu0
    %v1880 = vadd.f32 0.0, %v1879
    %v1881 = vpop.f32.mrf.mxu0
    %1882 = vmatprep.mubr.f32.mxu0 0.0
    %1883 = vmatmul.mubr.f32.gmra.mxu0 %v1811
    %v1884 = vpop.f32.mrf.mxu0
    %v1885 = vadd.f32 0.0, %v1884
    %v1886 = vpop.f32.mrf.mxu0
    %1887 = vdwg.mxu0
    %v1889 = vsel %vm1225, %v1398, 0
    %v1892 = vsel %vm1225, %v1399, 0
    %1894 = vmatprep.subr.mxu0 0.0
    %1895 = vmatpush1.msra.mxu0 0.0
    %1896 = vmatprep.subr.mxu0 0.0
    %1897 = vmatpush1.msra.mxu0 0.0
    %1898 = vmatprep.subr.mxu0 0.0
    %1899 = vmatpush1.msra.mxu0 0.0
    %1900 = vmatprep.subr.mxu0 0.0
    %1901 = vmatpush1.msra.mxu0 0.0
    %1902 = vmatprep.subr.mxu0 0.0
    %1903 = vmatpush1.msra.mxu0 0.0
    %1904 = vmatprep.subr.mxu0 0.0
    %1905 = vmatpush1.msra.mxu0 0.0
    %1906 = vmatprep.subr.mxu0 0.0
    %1907 = vmatpush1.msra.mxu0 0.0
    %1908 = vmatprep.subr.mxu0 0.0
    %1909 = vmatpush1.msra.mxu0 0.0
    %1910 = vmatprep.subr.mxu0 0.0
    %1911 = vmatpush1.msra.mxu0 0.0
    %1912 = vmatprep.subr.mxu0 0.0
    %1913 = vmatpush1.msra.mxu0 0.0
    %1914 = vmatprep.subr.mxu0 0.0
    %1915 = vmatpush1.msra.mxu0 0.0
    %1916 = vmatprep.subr.mxu0 0.0
    %1917 = vmatpush1.msra.mxu0 0.0
    %1918 = vmatprep.subr.mxu0 0.0
    %1919 = vmatpush1.msra.mxu0 0.0
    %1920 = vmatprep.subr.mxu0 0.0
    %1921 = vmatpush1.msra.mxu0 0.0
    %1922 = vmatprep.subr.mxu0 0.0
    %1923 = vmatpush1.msra.mxu0 0.0
    %1924 = vmatprep.subr.mxu0 0.0
    %1925 = vmatpush1.msra.mxu0 %v545
    %1926 = vmatprep.subr.mxu0 0.0
    %1927 = vmatpush2.msra.mxu0 0.0
    %1928 = vmatprep.subr.mxu0 0.0
    %1929 = vmatpush2.msra.mxu0 0.0
    %1930 = vmatprep.subr.mxu0 0.0
    %1931 = vmatpush2.msra.mxu0 0.0
    %1932 = vmatprep.subr.mxu0 0.0
    %1933 = vmatpush2.msra.mxu0 0.0
    %1934 = vmatprep.subr.mxu0 0.0
    %1935 = vmatpush2.msra.mxu0 0.0
    %1936 = vmatprep.subr.mxu0 0.0
    %1937 = vmatpush2.msra.mxu0 0.0
    %1938 = vmatprep.subr.mxu0 0.0
    %1939 = vmatpush2.msra.mxu0 0.0
    %1940 = vmatprep.subr.mxu0 0.0
    %1941 = vmatpush2.msra.mxu0 0.0
    %1942 = vmatprep.subr.mxu0 0.0
    %1943 = vmatpush2.msra.mxu0 0.0
    %1944 = vmatprep.subr.mxu0 0.0
    %1945 = vmatpush2.msra.mxu0 0.0
    %1946 = vmatprep.subr.mxu0 0.0
    %1947 = vmatpush2.msra.mxu0 0.0
    %1948 = vmatprep.subr.mxu0 0.0
    %1949 = vmatpush2.msra.mxu0 0.0
    %1950 = vmatprep.subr.mxu0 0.0
    %1951 = vmatpush2.msra.mxu0 0.0
    %1952 = vmatprep.subr.mxu0 0.0
    %1953 = vmatpush2.msra.mxu0 0.0
    %1954 = vmatprep.subr.mxu0 0.0
    %1955 = vmatpush2.msra.mxu0 0.0
    %1956 = vmatprep.subr.mxu0 0.0
    %1957 = vmatpush2.msra.mxu0 0.0
    %1958 = vmatprep.mubr.f32.mxu0 0.0
    %1959 = vmatmul.mubr.f32.gmra.mxu0 %v1889
    %v1960 = vpop.f32.mrf.mxu0
    %v1961 = vadd.f32 0.0, %v1960
    %v1962 = vpop.f32.mrf.mxu0
    %1963 = vmatprep.mubr.f32.mxu0 0.0
    %1964 = vmatmul.mubr.f32.gmra.mxu0 %v1892
    %v1965 = vpop.f32.mrf.mxu0
    %v1966 = vadd.f32 0.0, %v1965
    %v1967 = vpop.f32.mrf.mxu0
    %1968 = vdwg.mxu0
    %v1970 = vsel %vm1225, %v1400, 0
    %v1973 = vsel %vm1225, %v1401, 0
    %1975 = vmatprep.subr.mxu0 0.0
    %1976 = vmatpush1.msra.mxu0 0.0
    %1977 = vmatprep.subr.mxu0 0.0
    %1978 = vmatpush1.msra.mxu0 0.0
    %1979 = vmatprep.subr.mxu0 0.0
    %1980 = vmatpush1.msra.mxu0 0.0
    %1981 = vmatprep.subr.mxu0 0.0
    %1982 = vmatpush1.msra.mxu0 0.0
    %1983 = vmatprep.subr.mxu0 0.0
    %1984 = vmatpush1.msra.mxu0 0.0
    %1985 = vmatprep.subr.mxu0 0.0
    %1986 = vmatpush1.msra.mxu0 0.0
    %1987 = vmatprep.subr.mxu0 0.0
    %1988 = vmatpush1.msra.mxu0 0.0
    %1989 = vmatprep.subr.mxu0 0.0
    %1990 = vmatpush1.msra.mxu0 0.0
    %1991 = vmatprep.subr.mxu0 0.0
    %1992 = vmatpush1.msra.mxu0 0.0
    %1993 = vmatprep.subr.mxu0 0.0
    %1994 = vmatpush1.msra.mxu0 0.0
    %1995 = vmatprep.subr.mxu0 0.0
    %1996 = vmatpush1.msra.mxu0 0.0
    %1997 = vmatprep.subr.mxu0 0.0
    %1998 = vmatpush1.msra.mxu0 0.0
    %1999 = vmatprep.subr.mxu0 0.0
    %2000 = vmatpush1.msra.mxu0 0.0
    %2001 = vmatprep.subr.mxu0 0.0
    %2002 = vmatpush1.msra.mxu0 0.0
    %2003 = vmatprep.subr.mxu0 0.0
    %2004 = vmatpush1.msra.mxu0 0.0
    %2005 = vmatprep.subr.mxu0 0.0
    %2006 = vmatpush1.msra.mxu0 %v550
    %2007 = vmatprep.subr.mxu0 0.0
    %2008 = vmatpush2.msra.mxu0 0.0
    %2009 = vmatprep.subr.mxu0 0.0
    %2010 = vmatpush2.msra.mxu0 0.0
    %2011 = vmatprep.subr.mxu0 0.0
    %2012 = vmatpush2.msra.mxu0 0.0
    %2013 = vmatprep.subr.mxu0 0.0
    %2014 = vmatpush2.msra.mxu0 0.0
    %2015 = vmatprep.subr.mxu0 0.0
    %2016 = vmatpush2.msra.mxu0 0.0
    %2017 = vmatprep.subr.mxu0 0.0
    %2018 = vmatpush2.msra.mxu0 0.0
    %2019 = vmatprep.subr.mxu0 0.0
    %2020 = vmatpush2.msra.mxu0 0.0
    %2021 = vmatprep.subr.mxu0 0.0
    %2022 = vmatpush2.msra.mxu0 0.0
    %2023 = vmatprep.subr.mxu0 0.0
    %2024 = vmatpush2.msra.mxu0 0.0
    %2025 = vmatprep.subr.mxu0 0.0
    %2026 = vmatpush2.msra.mxu0 0.0
    %2027 = vmatprep.subr.mxu0 0.0
    %2028 = vmatpush2.msra.mxu0 0.0
    %2029 = vmatprep.subr.mxu0 0.0
    %2030 = vmatpush2.msra.mxu0 0.0
    %2031 = vmatprep.subr.mxu0 0.0
    %2032 = vmatpush2.msra.mxu0 0.0
    %2033 = vmatprep.subr.mxu0 0.0
    %2034 = vmatpush2.msra.mxu0 0.0
    %2035 = vmatprep.subr.mxu0 0.0
    %2036 = vmatpush2.msra.mxu0 0.0
    %2037 = vmatprep.subr.mxu0 0.0
    %2038 = vmatpush2.msra.mxu0 0.0
    %2039 = vmatprep.mubr.f32.mxu0 0.0
    %2040 = vmatmul.mubr.f32.gmra.mxu0 %v1970
    %v2041 = vpop.f32.mrf.mxu0
    %v2042 = vadd.f32 0.0, %v2041
    %v2043 = vpop.f32.mrf.mxu0
    %2044 = vmatprep.mubr.f32.mxu0 0.0
    %2045 = vmatmul.mubr.f32.gmra.mxu0 %v1973
    %v2046 = vpop.f32.mrf.mxu0
    %v2047 = vadd.f32 0.0, %v2046
    %v2048 = vpop.f32.mrf.mxu0
    %2049 = vdwg.mxu0
    %2050 = vrot.lane.b32.xlu0 %v196, 112
    %v2051 = vpop.permute.xlu0 %2050
    %2052 = vrot.lane.b32.xlu0 %v201, 112
    %v2053 = vpop.permute.xlu0 %2052
    %2054 = vrot.lane.b32.xlu0 %v376, 112
    %v2055 = vpop.permute.xlu0 %2054
    %v2056 = vsel %vm80, %v2051, 0
    %v2058 = vsel %vm80, %v2053, 0
    %v2060 = vsel %vm80, %v2055, 0
    %2062 = vmatprep.subr.mxu0 0.0
    %2063 = vmatpush1.xpose.msra.mxu0 0.0
    %2064 = vmatprep.subr.mxu0 0.0
    %2065 = vmatpush1.xpose.msra.mxu0 0.0
    %2066 = vmatprep.subr.mxu0 0.0
    %2067 = vmatpush1.xpose.msra.mxu0 0.0
    %2068 = vmatprep.subr.mxu0 0.0
    %2069 = vmatpush1.xpose.msra.mxu0 0.0
    %2070 = vmatprep.subr.mxu0 0.0
    %2071 = vmatpush1.xpose.msra.mxu0 0.0
    %2072 = vmatprep.subr.mxu0 0.0
    %2073 = vmatpush1.xpose.msra.mxu0 0.0
    %2074 = vmatprep.subr.mxu0 0.0
    %2075 = vmatpush1.xpose.msra.mxu0 0.0
    %2076 = vmatprep.subr.mxu0 0.0
    %2077 = vmatpush1.xpose.msra.mxu0 0.0
    %2078 = vmatprep.subr.mxu0 0.0
    %2079 = vmatpush1.xpose.msra.mxu0 0.0
    %2080 = vmatprep.subr.mxu0 0.0
    %2081 = vmatpush1.xpose.msra.mxu0 0.0
    %2082 = vmatprep.subr.mxu0 0.0
    %2083 = vmatpush1.xpose.msra.mxu0 0.0
    %2084 = vmatprep.subr.mxu0 0.0
    %2085 = vmatpush1.xpose.msra.mxu0 0.0
    %2086 = vmatprep.subr.mxu0 0.0
    %2087 = vmatpush1.xpose.msra.mxu0 0.0
    %2088 = vmatprep.subr.mxu0 0.0
    %2089 = vmatpush1.xpose.msra.mxu0 0.0
    %2090 = vmatprep.subr.mxu0 0.0
    %2091 = vmatpush1.xpose.msra.mxu0 0.0
    %2092 = vmatprep.subr.mxu0 0.0
    %2093 = vmatpush1.xpose.msra.mxu0 %v2060
    %2094 = vmatprep.subr.mxu0 0.0
    %2095 = vmatpush2.xpose.msra.mxu0 0.0
    %2096 = vmatprep.subr.mxu0 0.0
    %2097 = vmatpush2.xpose.msra.mxu0 0.0
    %2098 = vmatprep.subr.mxu0 0.0
    %2099 = vmatpush2.xpose.msra.mxu0 0.0
    %2100 = vmatprep.subr.mxu0 0.0
    %2101 = vmatpush2.xpose.msra.mxu0 0.0
    %2102 = vmatprep.subr.mxu0 0.0
    %2103 = vmatpush2.xpose.msra.mxu0 0.0
    %2104 = vmatprep.subr.mxu0 0.0
    %2105 = vmatpush2.xpose.msra.mxu0 0.0
    %2106 = vmatprep.subr.mxu0 0.0
    %2107 = vmatpush2.xpose.msra.mxu0 0.0
    %2108 = vmatprep.subr.mxu0 0.0
    %2109 = vmatpush2.xpose.msra.mxu0 0.0
    %2110 = vmatprep.subr.mxu0 0.0
    %2111 = vmatpush2.xpose.msra.mxu0 0.0
    %2112 = vmatprep.subr.mxu0 0.0
    %2113 = vmatpush2.xpose.msra.mxu0 0.0
    %2114 = vmatprep.subr.mxu0 0.0
    %2115 = vmatpush2.xpose.msra.mxu0 0.0
    %2116 = vmatprep.subr.mxu0 0.0
    %2117 = vmatpush2.xpose.msra.mxu0 0.0
    %2118 = vmatprep.subr.mxu0 0.0
    %2119 = vmatpush2.xpose.msra.mxu0 0.0
    %2120 = vmatprep.subr.mxu0 0.0
    %2121 = vmatpush2.xpose.msra.mxu0 0.0
    %2122 = vmatprep.subr.mxu0 0.0
    %2123 = vmatpush2.xpose.msra.mxu0 0.0
    %2124 = vmatprep.subr.mxu0 0.0
    %2125 = vmatpush2.xpose.msra.mxu0 0.0
    %2126 = vmatprep.mubr.f32.mxu0 0.0
    %2127 = vmatmul.mubr.f32.gmra.mxu0 %v2056
    %v2128 = vpop.f32.mrf.mxu0
    %v2129 = vadd.f32 0.0, %v2128
    %v2130 = vpop.f32.mrf.mxu0
    %2131 = vmatprep.mubr.f32.mxu0 0.0
    %2132 = vmatmul.mubr.f32.gmra.mxu0 %v2058
    %v2133 = vpop.f32.mrf.mxu0
    %v2134 = vadd.f32 0.0, %v2133
    %v2135 = vpop.f32.mrf.mxu0
    %2136 = vdwg.mxu0
    %2137 = vrot.lane.b32.xlu0 %v206, 112
    %v2138 = vpop.permute.xlu0 %2137
    %2139 = vrot.lane.b32.xlu0 %v211, 112
    %v2140 = vpop.permute.xlu0 %2139
    %2141 = vrot.lane.b32.xlu0 %v381, 112
    %v2142 = vpop.permute.xlu0 %2141
    %v2143 = vsel %vm80, %v2138, 0
    %v2145 = vsel %vm80, %v2140, 0
    %v2147 = vsel %vm80, %v2142, 0
    %2149 = vmatprep.subr.mxu0 0.0
    %2150 = vmatpush1.xpose.msra.mxu0 0.0
    %2151 = vmatprep.subr.mxu0 0.0
    %2152 = vmatpush1.xpose.msra.mxu0 0.0
    %2153 = vmatprep.subr.mxu0 0.0
    %2154 = vmatpush1.xpose.msra.mxu0 0.0
    %2155 = vmatprep.subr.mxu0 0.0
    %2156 = vmatpush1.xpose.msra.mxu0 0.0
    %2157 = vmatprep.subr.mxu0 0.0
    %2158 = vmatpush1.xpose.msra.mxu0 0.0
    %2159 = vmatprep.subr.mxu0 0.0
    %2160 = vmatpush1.xpose.msra.mxu0 0.0
    %2161 = vmatprep.subr.mxu0 0.0
    %2162 = vmatpush1.xpose.msra.mxu0 0.0
    %2163 = vmatprep.subr.mxu0 0.0
    %2164 = vmatpush1.xpose.msra.mxu0 0.0
    %2165 = vmatprep.subr.mxu0 0.0
    %2166 = vmatpush1.xpose.msra.mxu0 0.0
    %2167 = vmatprep.subr.mxu0 0.0
    %2168 = vmatpush1.xpose.msra.mxu0 0.0
    %2169 = vmatprep.subr.mxu0 0.0
    %2170 = vmatpush1.xpose.msra.mxu0 0.0
    %2171 = vmatprep.subr.mxu0 0.0
    %2172 = vmatpush1.xpose.msra.mxu0 0.0
    %2173 = vmatprep.subr.mxu0 0.0
    %2174 = vmatpush1.xpose.msra.mxu0 0.0
    %2175 = vmatprep.subr.mxu0 0.0
    %2176 = vmatpush1.xpose.msra.mxu0 0.0
    %2177 = vmatprep.subr.mxu0 0.0
    %2178 = vmatpush1.xpose.msra.mxu0 0.0
    %2179 = vmatprep.subr.mxu0 0.0
    %2180 = vmatpush1.xpose.msra.mxu0 %v2147
    %2181 = vmatprep.subr.mxu0 0.0
    %2182 = vmatpush2.xpose.msra.mxu0 0.0
    %2183 = vmatprep.subr.mxu0 0.0
    %2184 = vmatpush2.xpose.msra.mxu0 0.0
    %2185 = vmatprep.subr.mxu0 0.0
    %2186 = vmatpush2.xpose.msra.mxu0 0.0
    %2187 = vmatprep.subr.mxu0 0.0
    %2188 = vmatpush2.xpose.msra.mxu0 0.0
    %2189 = vmatprep.subr.mxu0 0.0
    %2190 = vmatpush2.xpose.msra.mxu0 0.0
    %2191 = vmatprep.subr.mxu0 0.0
    %2192 = vmatpush2.xpose.msra.mxu0 0.0
    %2193 = vmatprep.subr.mxu0 0.0
    %2194 = vmatpush2.xpose.msra.mxu0 0.0
    %2195 = vmatprep.subr.mxu0 0.0
    %2196 = vmatpush2.xpose.msra.mxu0 0.0
    %2197 = vmatprep.subr.mxu0 0.0
    %2198 = vmatpush2.xpose.msra.mxu0 0.0
    %2199 = vmatprep.subr.mxu0 0.0
    %2200 = vmatpush2.xpose.msra.mxu0 0.0
    %2201 = vmatprep.subr.mxu0 0.0
    %2202 = vmatpush2.xpose.msra.mxu0 0.0
    %2203 = vmatprep.subr.mxu0 0.0
    %2204 = vmatpush2.xpose.msra.mxu0 0.0
    %2205 = vmatprep.subr.mxu0 0.0
    %2206 = vmatpush2.xpose.msra.mxu0 0.0
    %2207 = vmatprep.subr.mxu0 0.0
    %2208 = vmatpush2.xpose.msra.mxu0 0.0
    %2209 = vmatprep.subr.mxu0 0.0
    %2210 = vmatpush2.xpose.msra.mxu0 0.0
    %2211 = vmatprep.subr.mxu0 0.0
    %2212 = vmatpush2.xpose.msra.mxu0 0.0
    %2213 = vmatprep.mubr.f32.mxu0 0.0
    %2214 = vmatmul.mubr.f32.gmra.mxu0 %v2143
    %v2215 = vpop.f32.mrf.mxu0
    %v2216 = vadd.f32 0.0, %v2215
    %v2217 = vpop.f32.mrf.mxu0
    %2218 = vmatprep.mubr.f32.mxu0 0.0
    %2219 = vmatmul.mubr.f32.gmra.mxu0 %v2145
    %v2220 = vpop.f32.mrf.mxu0
    %v2221 = vadd.f32 0.0, %v2220
    %v2222 = vpop.f32.mrf.mxu0
    %2223 = vdwg.mxu0
    %2224 = vrot.lane.b32.xlu0 %v216, 112
    %v2225 = vpop.permute.xlu0 %2224
    %2226 = vrot.lane.b32.xlu0 %v221, 112
    %v2227 = vpop.permute.xlu0 %2226
    %2228 = vrot.lane.b32.xlu0 %v386, 112
    %v2229 = vpop.permute.xlu0 %2228
    %v2230 = vsel %vm80, %v2225, 0
    %v2232 = vsel %vm80, %v2227, 0
    %v2234 = vsel %vm80, %v2229, 0
    %2236 = vmatprep.subr.mxu0 0.0
    %2237 = vmatpush1.xpose.msra.mxu0 0.0
    %2238 = vmatprep.subr.mxu0 0.0
    %2239 = vmatpush1.xpose.msra.mxu0 0.0
    %2240 = vmatprep.subr.mxu0 0.0
    %2241 = vmatpush1.xpose.msra.mxu0 0.0
    %2242 = vmatprep.subr.mxu0 0.0
    %2243 = vmatpush1.xpose.msra.mxu0 0.0
    %2244 = vmatprep.subr.mxu0 0.0
    %2245 = vmatpush1.xpose.msra.mxu0 0.0
    %2246 = vmatprep.subr.mxu0 0.0
    %2247 = vmatpush1.xpose.msra.mxu0 0.0
    %2248 = vmatprep.subr.mxu0 0.0
    %2249 = vmatpush1.xpose.msra.mxu0 0.0
    %2250 = vmatprep.subr.mxu0 0.0
    %2251 = vmatpush1.xpose.msra.mxu0 0.0
    %2252 = vmatprep.subr.mxu0 0.0
    %2253 = vmatpush1.xpose.msra.mxu0 0.0
    %2254 = vmatprep.subr.mxu0 0.0
    %2255 = vmatpush1.xpose.msra.mxu0 0.0
    %2256 = vmatprep.subr.mxu0 0.0
    %2257 = vmatpush1.xpose.msra.mxu0 0.0
    %2258 = vmatprep.subr.mxu0 0.0
    %2259 = vmatpush1.xpose.msra.mxu0 0.0
    %2260 = vmatprep.subr.mxu0 0.0
    %2261 = vmatpush1.xpose.msra.mxu0 0.0
    %2262 = vmatprep.subr.mxu0 0.0
    %2263 = vmatpush1.xpose.msra.mxu0 0.0
    %2264 = vmatprep.subr.mxu0 0.0
    %2265 = vmatpush1.xpose.msra.mxu0 0.0
    %2266 = vmatprep.subr.mxu0 0.0
    %2267 = vmatpush1.xpose.msra.mxu0 %v2234
    %2268 = vmatprep.subr.mxu0 0.0
    %2269 = vmatpush2.xpose.msra.mxu0 0.0
    %2270 = vmatprep.subr.mxu0 0.0
    %2271 = vmatpush2.xpose.msra.mxu0 0.0
    %2272 = vmatprep.subr.mxu0 0.0
    %2273 = vmatpush2.xpose.msra.mxu0 0.0
    %2274 = vmatprep.subr.mxu0 0.0
    %2275 = vmatpush2.xpose.msra.mxu0 0.0
    %2276 = vmatprep.subr.mxu0 0.0
    %2277 = vmatpush2.xpose.msra.mxu0 0.0
    %2278 = vmatprep.subr.mxu0 0.0
    %2279 = vmatpush2.xpose.msra.mxu0 0.0
    %2280 = vmatprep.subr.mxu0 0.0
    %2281 = vmatpush2.xpose.msra.mxu0 0.0
    %2282 = vmatprep.subr.mxu0 0.0
    %2283 = vmatpush2.xpose.msra.mxu0 0.0
    %2284 = vmatprep.subr.mxu0 0.0
    %2285 = vmatpush2.xpose.msra.mxu0 0.0
    %2286 = vmatprep.subr.mxu0 0.0
    %2287 = vmatpush2.xpose.msra.mxu0 0.0
    %2288 = vmatprep.subr.mxu0 0.0
    %2289 = vmatpush2.xpose.msra.mxu0 0.0
    %2290 = vmatprep.subr.mxu0 0.0
    %2291 = vmatpush2.xpose.msra.mxu0 0.0
    %2292 = vmatprep.subr.mxu0 0.0
    %2293 = vmatpush2.xpose.msra.mxu0 0.0
    %2294 = vmatprep.subr.mxu0 0.0
    %2295 = vmatpush2.xpose.msra.mxu0 0.0
    %2296 = vmatprep.subr.mxu0 0.0
    %2297 = vmatpush2.xpose.msra.mxu0 0.0
    %2298 = vmatprep.subr.mxu0 0.0
    %2299 = vmatpush2.xpose.msra.mxu0 0.0
    %2300 = vmatprep.mubr.f32.mxu0 0.0
    %2301 = vmatmul.mubr.f32.gmra.mxu0 %v2230
    %v2302 = vpop.f32.mrf.mxu0
    %v2303 = vadd.f32 0.0, %v2302
    %v2304 = vpop.f32.mrf.mxu0
    %2305 = vmatprep.mubr.f32.mxu0 0.0
    %2306 = vmatmul.mubr.f32.gmra.mxu0 %v2232
    %v2307 = vpop.f32.mrf.mxu0
    %v2308 = vadd.f32 0.0, %v2307
    %v2309 = vpop.f32.mrf.mxu0
    %2310 = vdwg.mxu0
    %2311 = vrot.lane.b32.xlu0 %v226, 112
    %v2312 = vpop.permute.xlu0 %2311
    %2313 = vrot.lane.b32.xlu0 %v231, 112
    %v2314 = vpop.permute.xlu0 %2313
    %2315 = vrot.lane.b32.xlu0 %v391, 112
    %v2316 = vpop.permute.xlu0 %2315
    %v2317 = vsel %vm80, %v2312, 0
    %v2319 = vsel %vm80, %v2314, 0
    %v2321 = vsel %vm80, %v2316, 0
    %2323 = vmatprep.subr.mxu0 0.0
    %2324 = vmatpush1.xpose.msra.mxu0 0.0
    %2325 = vmatprep.subr.mxu0 0.0
    %2326 = vmatpush1.xpose.msra.mxu0 0.0
    %2327 = vmatprep.subr.mxu0 0.0
    %2328 = vmatpush1.xpose.msra.mxu0 0.0
    %2329 = vmatprep.subr.mxu0 0.0
    %2330 = vmatpush1.xpose.msra.mxu0 0.0
    %2331 = vmatprep.subr.mxu0 0.0
    %2332 = vmatpush1.xpose.msra.mxu0 0.0
    %2333 = vmatprep.subr.mxu0 0.0
    %2334 = vmatpush1.xpose.msra.mxu0 0.0
    %2335 = vmatprep.subr.mxu0 0.0
    %2336 = vmatpush1.xpose.msra.mxu0 0.0
    %2337 = vmatprep.subr.mxu0 0.0
    %2338 = vmatpush1.xpose.msra.mxu0 0.0
    %2339 = vmatprep.subr.mxu0 0.0
    %2340 = vmatpush1.xpose.msra.mxu0 0.0
    %2341 = vmatprep.subr.mxu0 0.0
    %2342 = vmatpush1.xpose.msra.mxu0 0.0
    %2343 = vmatprep.subr.mxu0 0.0
    %2344 = vmatpush1.xpose.msra.mxu0 0.0
    %2345 = vmatprep.subr.mxu0 0.0
    %2346 = vmatpush1.xpose.msra.mxu0 0.0
    %2347 = vmatprep.subr.mxu0 0.0
    %2348 = vmatpush1.xpose.msra.mxu0 0.0
    %2349 = vmatprep.subr.mxu0 0.0
    %2350 = vmatpush1.xpose.msra.mxu0 0.0
    %2351 = vmatprep.subr.mxu0 0.0
    %2352 = vmatpush1.xpose.msra.mxu0 0.0
    %2353 = vmatprep.subr.mxu0 0.0
    %2354 = vmatpush1.xpose.msra.mxu0 %v2321
    %2355 = vmatprep.subr.mxu0 0.0
    %2356 = vmatpush2.xpose.msra.mxu0 0.0
    %2357 = vmatprep.subr.mxu0 0.0
    %2358 = vmatpush2.xpose.msra.mxu0 0.0
    %2359 = vmatprep.subr.mxu0 0.0
    %2360 = vmatpush2.xpose.msra.mxu0 0.0
    %2361 = vmatprep.subr.mxu0 0.0
    %2362 = vmatpush2.xpose.msra.mxu0 0.0
    %2363 = vmatprep.subr.mxu0 0.0
    %2364 = vmatpush2.xpose.msra.mxu0 0.0
    %2365 = vmatprep.subr.mxu0 0.0
    %2366 = vmatpush2.xpose.msra.mxu0 0.0
    %2367 = vmatprep.subr.mxu0 0.0
    %2368 = vmatpush2.xpose.msra.mxu0 0.0
    %2369 = vmatprep.subr.mxu0 0.0
    %2370 = vmatpush2.xpose.msra.mxu0 0.0
    %2371 = vmatprep.subr.mxu0 0.0
    %2372 = vmatpush2.xpose.msra.mxu0 0.0
    %2373 = vmatprep.subr.mxu0 0.0
    %2374 = vmatpush2.xpose.msra.mxu0 0.0
    %2375 = vmatprep.subr.mxu0 0.0
    %2376 = vmatpush2.xpose.msra.mxu0 0.0
    %2377 = vmatprep.subr.mxu0 0.0
    %2378 = vmatpush2.xpose.msra.mxu0 0.0
    %2379 = vmatprep.subr.mxu0 0.0
    %2380 = vmatpush2.xpose.msra.mxu0 0.0
    %2381 = vmatprep.subr.mxu0 0.0
    %2382 = vmatpush2.xpose.msra.mxu0 0.0
    %2383 = vmatprep.subr.mxu0 0.0
    %2384 = vmatpush2.xpose.msra.mxu0 0.0
    %2385 = vmatprep.subr.mxu0 0.0
    %2386 = vmatpush2.xpose.msra.mxu0 0.0
    %2387 = vmatprep.mubr.f32.mxu0 0.0
    %2388 = vmatmul.mubr.f32.gmra.mxu0 %v2317
    %v2389 = vpop.f32.mrf.mxu0
    %v2390 = vadd.f32 0.0, %v2389
    %v2391 = vpop.f32.mrf.mxu0
    %2392 = vmatprep.mubr.f32.mxu0 0.0
    %2393 = vmatmul.mubr.f32.gmra.mxu0 %v2319
    %v2394 = vpop.f32.mrf.mxu0
    %v2395 = vadd.f32 0.0, %v2394
    %v2396 = vpop.f32.mrf.mxu0
    %2397 = vdwg.mxu0
    %2398 = vrot.lane.b32.xlu0 %v236, 112
    %v2399 = vpop.permute.xlu0 %2398
    %2400 = vrot.lane.b32.xlu0 %v241, 112
    %v2401 = vpop.permute.xlu0 %2400
    %2402 = vrot.lane.b32.xlu0 %v396, 112
    %v2403 = vpop.permute.xlu0 %2402
    %v2404 = vsel %vm80, %v2399, 0
    %v2406 = vsel %vm80, %v2401, 0
    %v2408 = vsel %vm80, %v2403, 0
    %2410 = vmatprep.subr.mxu0 0.0
    %2411 = vmatpush1.xpose.msra.mxu0 0.0
    %2412 = vmatprep.subr.mxu0 0.0
    %2413 = vmatpush1.xpose.msra.mxu0 0.0
    %2414 = vmatprep.subr.mxu0 0.0
    %2415 = vmatpush1.xpose.msra.mxu0 0.0
    %2416 = vmatprep.subr.mxu0 0.0
    %2417 = vmatpush1.xpose.msra.mxu0 0.0
    %2418 = vmatprep.subr.mxu0 0.0
    %2419 = vmatpush1.xpose.msra.mxu0 0.0
    %2420 = vmatprep.subr.mxu0 0.0
    %2421 = vmatpush1.xpose.msra.mxu0 0.0
    %2422 = vmatprep.subr.mxu0 0.0
    %2423 = vmatpush1.xpose.msra.mxu0 0.0
    %2424 = vmatprep.subr.mxu0 0.0
    %2425 = vmatpush1.xpose.msra.mxu0 0.0
    %2426 = vmatprep.subr.mxu0 0.0
    %2427 = vmatpush1.xpose.msra.mxu0 0.0
    %2428 = vmatprep.subr.mxu0 0.0
    %2429 = vmatpush1.xpose.msra.mxu0 0.0
    %2430 = vmatprep.subr.mxu0 0.0
    %2431 = vmatpush1.xpose.msra.mxu0 0.0
    %2432 = vmatprep.subr.mxu0 0.0
    %2433 = vmatpush1.xpose.msra.mxu0 0.0
    %2434 = vmatprep.subr.mxu0 0.0
    %2435 = vmatpush1.xpose.msra.mxu0 0.0
    %2436 = vmatprep.subr.mxu0 0.0
    %2437 = vmatpush1.xpose.msra.mxu0 0.0
    %2438 = vmatprep.subr.mxu0 0.0
    %2439 = vmatpush1.xpose.msra.mxu0 0.0
    %2440 = vmatprep.subr.mxu0 0.0
    %2441 = vmatpush1.xpose.msra.mxu0 %v2408
    %2442 = vmatprep.subr.mxu0 0.0
    %2443 = vmatpush2.xpose.msra.mxu0 0.0
    %2444 = vmatprep.subr.mxu0 0.0
    %2445 = vmatpush2.xpose.msra.mxu0 0.0
    %2446 = vmatprep.subr.mxu0 0.0
    %2447 = vmatpush2.xpose.msra.mxu0 0.0
    %2448 = vmatprep.subr.mxu0 0.0
    %2449 = vmatpush2.xpose.msra.mxu0 0.0
    %2450 = vmatprep.subr.mxu0 0.0
    %2451 = vmatpush2.xpose.msra.mxu0 0.0
    %2452 = vmatprep.subr.mxu0 0.0
    %2453 = vmatpush2.xpose.msra.mxu0 0.0
    %2454 = vmatprep.subr.mxu0 0.0
    %2455 = vmatpush2.xpose.msra.mxu0 0.0
    %2456 = vmatprep.subr.mxu0 0.0
    %2457 = vmatpush2.xpose.msra.mxu0 0.0
    %2458 = vmatprep.subr.mxu0 0.0
    %2459 = vmatpush2.xpose.msra.mxu0 0.0
    %2460 = vmatprep.subr.mxu0 0.0
    %2461 = vmatpush2.xpose.msra.mxu0 0.0
    %2462 = vmatprep.subr.mxu0 0.0
    %2463 = vmatpush2.xpose.msra.mxu0 0.0
    %2464 = vmatprep.subr.mxu0 0.0
    %2465 = vmatpush2.xpose.msra.mxu0 0.0
    %2466 = vmatprep.subr.mxu0 0.0
    %2467 = vmatpush2.xpose.msra.mxu0 0.0
    %2468 = vmatprep.subr.mxu0 0.0
    %2469 = vmatpush2.xpose.msra.mxu0 0.0
    %2470 = vmatprep.subr.mxu0 0.0
    %2471 = vmatpush2.xpose.msra.mxu0 0.0
    %2472 = vmatprep.subr.mxu0 0.0
    %2473 = vmatpush2.xpose.msra.mxu0 0.0
    %2474 = vmatprep.mubr.f32.mxu0 0.0
    %2475 = vmatmul.mubr.f32.gmra.mxu0 %v2404
    %v2476 = vpop.f32.mrf.mxu0
    %v2477 = vadd.f32 0.0, %v2476
    %v2478 = vpop.f32.mrf.mxu0
    %2479 = vmatprep.mubr.f32.mxu0 0.0
    %2480 = vmatmul.mubr.f32.gmra.mxu0 %v2406
    %v2481 = vpop.f32.mrf.mxu0
    %v2482 = vadd.f32 0.0, %v2481
    %v2483 = vpop.f32.mrf.mxu0
    %2484 = vdwg.mxu0
    %2485 = vrot.lane.b32.xlu0 %v246, 112
    %v2486 = vpop.permute.xlu0 %2485
    %2487 = vrot.lane.b32.xlu0 %v251, 112
    %v2488 = vpop.permute.xlu0 %2487
    %2489 = vrot.lane.b32.xlu0 %v401, 112
    %v2490 = vpop.permute.xlu0 %2489
    %v2491 = vsel %vm80, %v2486, 0
    %v2493 = vsel %vm80, %v2488, 0
    %v2495 = vsel %vm80, %v2490, 0
    %2497 = vmatprep.subr.mxu0 0.0
    %2498 = vmatpush1.xpose.msra.mxu0 0.0
    %2499 = vmatprep.subr.mxu0 0.0
    %2500 = vmatpush1.xpose.msra.mxu0 0.0
    %2501 = vmatprep.subr.mxu0 0.0
    %2502 = vmatpush1.xpose.msra.mxu0 0.0
    %2503 = vmatprep.subr.mxu0 0.0
    %2504 = vmatpush1.xpose.msra.mxu0 0.0
    %2505 = vmatprep.subr.mxu0 0.0
    %2506 = vmatpush1.xpose.msra.mxu0 0.0
    %2507 = vmatprep.subr.mxu0 0.0
    %2508 = vmatpush1.xpose.msra.mxu0 0.0
    %2509 = vmatprep.subr.mxu0 0.0
    %2510 = vmatpush1.xpose.msra.mxu0 0.0
    %2511 = vmatprep.subr.mxu0 0.0
    %2512 = vmatpush1.xpose.msra.mxu0 0.0
    %2513 = vmatprep.subr.mxu0 0.0
    %2514 = vmatpush1.xpose.msra.mxu0 0.0
    %2515 = vmatprep.subr.mxu0 0.0
    %2516 = vmatpush1.xpose.msra.mxu0 0.0
    %2517 = vmatprep.subr.mxu0 0.0
    %2518 = vmatpush1.xpose.msra.mxu0 0.0
    %2519 = vmatprep.subr.mxu0 0.0
    %2520 = vmatpush1.xpose.msra.mxu0 0.0
    %2521 = vmatprep.subr.mxu0 0.0
    %2522 = vmatpush1.xpose.msra.mxu0 0.0
    %2523 = vmatprep.subr.mxu0 0.0
    %2524 = vmatpush1.xpose.msra.mxu0 0.0
    %2525 = vmatprep.subr.mxu0 0.0
    %2526 = vmatpush1.xpose.msra.mxu0 0.0
    %2527 = vmatprep.subr.mxu0 0.0
    %2528 = vmatpush1.xpose.msra.mxu0 %v2495
    %2529 = vmatprep.subr.mxu0 0.0
    %2530 = vmatpush2.xpose.msra.mxu0 0.0
    %2531 = vmatprep.subr.mxu0 0.0
    %2532 = vmatpush2.xpose.msra.mxu0 0.0
    %2533 = vmatprep.subr.mxu0 0.0
    %2534 = vmatpush2.xpose.msra.mxu0 0.0
    %2535 = vmatprep.subr.mxu0 0.0
    %2536 = vmatpush2.xpose.msra.mxu0 0.0
    %2537 = vmatprep.subr.mxu0 0.0
    %2538 = vmatpush2.xpose.msra.mxu0 0.0
    %2539 = vmatprep.subr.mxu0 0.0
    %2540 = vmatpush2.xpose.msra.mxu0 0.0
    %2541 = vmatprep.subr.mxu0 0.0
    %2542 = vmatpush2.xpose.msra.mxu0 0.0
    %2543 = vmatprep.subr.mxu0 0.0
    %2544 = vmatpush2.xpose.msra.mxu0 0.0
    %2545 = vmatprep.subr.mxu0 0.0
    %2546 = vmatpush2.xpose.msra.mxu0 0.0
    %2547 = vmatprep.subr.mxu0 0.0
    %2548 = vmatpush2.xpose.msra.mxu0 0.0
    %2549 = vmatprep.subr.mxu0 0.0
    %2550 = vmatpush2.xpose.msra.mxu0 0.0
    %2551 = vmatprep.subr.mxu0 0.0
    %2552 = vmatpush2.xpose.msra.mxu0 0.0
    %2553 = vmatprep.subr.mxu0 0.0
    %2554 = vmatpush2.xpose.msra.mxu0 0.0
    %2555 = vmatprep.subr.mxu0 0.0
    %2556 = vmatpush2.xpose.msra.mxu0 0.0
    %2557 = vmatprep.subr.mxu0 0.0
    %2558 = vmatpush2.xpose.msra.mxu0 0.0
    %2559 = vmatprep.subr.mxu0 0.0
    %2560 = vmatpush2.xpose.msra.mxu0 0.0
    %2561 = vmatprep.mubr.f32.mxu0 0.0
    %2562 = vmatmul.mubr.f32.gmra.mxu0 %v2491
    %v2563 = vpop.f32.mrf.mxu0
    %v2564 = vadd.f32 0.0, %v2563
    %v2565 = vpop.f32.mrf.mxu0
    %2566 = vmatprep.mubr.f32.mxu0 0.0
    %2567 = vmatmul.mubr.f32.gmra.mxu0 %v2493
    %v2568 = vpop.f32.mrf.mxu0
    %v2569 = vadd.f32 0.0, %v2568
    %v2570 = vpop.f32.mrf.mxu0
    %2571 = vdwg.mxu0
    %2572 = vrot.lane.b32.xlu0 %v256, 112
    %v2573 = vpop.permute.xlu0 %2572
    %2574 = vrot.lane.b32.xlu0 %v261, 112
    %v2575 = vpop.permute.xlu0 %2574
    %2576 = vrot.lane.b32.xlu0 %v406, 112
    %v2577 = vpop.permute.xlu0 %2576
    %v2578 = vsel %vm80, %v2573, 0
    %v2580 = vsel %vm80, %v2575, 0
    %v2582 = vsel %vm80, %v2577, 0
    %2584 = vmatprep.subr.mxu0 0.0
    %2585 = vmatpush1.xpose.msra.mxu0 0.0
    %2586 = vmatprep.subr.mxu0 0.0
    %2587 = vmatpush1.xpose.msra.mxu0 0.0
    %2588 = vmatprep.subr.mxu0 0.0
    %2589 = vmatpush1.xpose.msra.mxu0 0.0
    %2590 = vmatprep.subr.mxu0 0.0
    %2591 = vmatpush1.xpose.msra.mxu0 0.0
    %2592 = vmatprep.subr.mxu0 0.0
    %2593 = vmatpush1.xpose.msra.mxu0 0.0
    %2594 = vmatprep.subr.mxu0 0.0
    %2595 = vmatpush1.xpose.msra.mxu0 0.0
    %2596 = vmatprep.subr.mxu0 0.0
    %2597 = vmatpush1.xpose.msra.mxu0 0.0
    %2598 = vmatprep.subr.mxu0 0.0
    %2599 = vmatpush1.xpose.msra.mxu0 0.0
    %2600 = vmatprep.subr.mxu0 0.0
    %2601 = vmatpush1.xpose.msra.mxu0 0.0
    %2602 = vmatprep.subr.mxu0 0.0
    %2603 = vmatpush1.xpose.msra.mxu0 0.0
    %2604 = vmatprep.subr.mxu0 0.0
    %2605 = vmatpush1.xpose.msra.mxu0 0.0
    %2606 = vmatprep.subr.mxu0 0.0
    %2607 = vmatpush1.xpose.msra.mxu0 0.0
    %2608 = vmatprep.subr.mxu0 0.0
    %2609 = vmatpush1.xpose.msra.mxu0 0.0
    %2610 = vmatprep.subr.mxu0 0.0
    %2611 = vmatpush1.xpose.msra.mxu0 0.0
    %2612 = vmatprep.subr.mxu0 0.0
    %2613 = vmatpush1.xpose.msra.mxu0 0.0
    %2614 = vmatprep.subr.mxu0 0.0
    %2615 = vmatpush1.xpose.msra.mxu0 %v2582
    %2616 = vmatprep.subr.mxu0 0.0
    %2617 = vmatpush2.xpose.msra.mxu0 0.0
    %2618 = vmatprep.subr.mxu0 0.0
    %2619 = vmatpush2.xpose.msra.mxu0 0.0
    %2620 = vmatprep.subr.mxu0 0.0
    %2621 = vmatpush2.xpose.msra.mxu0 0.0
    %2622 = vmatprep.subr.mxu0 0.0
    %2623 = vmatpush2.xpose.msra.mxu0 0.0
    %2624 = vmatprep.subr.mxu0 0.0
    %2625 = vmatpush2.xpose.msra.mxu0 0.0
    %2626 = vmatprep.subr.mxu0 0.0
    %2627 = vmatpush2.xpose.msra.mxu0 0.0
    %2628 = vmatprep.subr.mxu0 0.0
    %2629 = vmatpush2.xpose.msra.mxu0 0.0
    %2630 = vmatprep.subr.mxu0 0.0
    %2631 = vmatpush2.xpose.msra.mxu0 0.0
    %2632 = vmatprep.subr.mxu0 0.0
    %2633 = vmatpush2.xpose.msra.mxu0 0.0
    %2634 = vmatprep.subr.mxu0 0.0
    %2635 = vmatpush2.xpose.msra.mxu0 0.0
    %2636 = vmatprep.subr.mxu0 0.0
    %2637 = vmatpush2.xpose.msra.mxu0 0.0
    %2638 = vmatprep.subr.mxu0 0.0
    %2639 = vmatpush2.xpose.msra.mxu0 0.0
    %2640 = vmatprep.subr.mxu0 0.0
    %2641 = vmatpush2.xpose.msra.mxu0 0.0
    %2642 = vmatprep.subr.mxu0 0.0
    %2643 = vmatpush2.xpose.msra.mxu0 0.0
    %2644 = vmatprep.subr.mxu0 0.0
    %2645 = vmatpush2.xpose.msra.mxu0 0.0
    %2646 = vmatprep.subr.mxu0 0.0
    %2647 = vmatpush2.xpose.msra.mxu0 0.0
    %2648 = vmatprep.mubr.f32.mxu0 0.0
    %2649 = vmatmul.mubr.f32.gmra.mxu0 %v2578
    %v2650 = vpop.f32.mrf.mxu0
    %v2651 = vadd.f32 0.0, %v2650
    %v2652 = vpop.f32.mrf.mxu0
    %2653 = vmatprep.mubr.f32.mxu0 0.0
    %2654 = vmatmul.mubr.f32.gmra.mxu0 %v2580
    %v2655 = vpop.f32.mrf.mxu0
    %v2656 = vadd.f32 0.0, %v2655
    %v2657 = vpop.f32.mrf.mxu0
    %2658 = vdwg.mxu0
    %2659 = vrot.lane.b32.xlu0 %v266, 112
    %v2660 = vpop.permute.xlu0 %2659
    %2661 = vrot.lane.b32.xlu0 %v271, 112
    %v2662 = vpop.permute.xlu0 %2661
    %2663 = vrot.lane.b32.xlu0 %v411, 112
    %v2664 = vpop.permute.xlu0 %2663
    %v2665 = vsel %vm80, %v2660, 0
    %v2667 = vsel %vm80, %v2662, 0
    %v2669 = vsel %vm80, %v2664, 0
    %2671 = vmatprep.subr.mxu0 0.0
    %2672 = vmatpush1.xpose.msra.mxu0 0.0
    %2673 = vmatprep.subr.mxu0 0.0
    %2674 = vmatpush1.xpose.msra.mxu0 0.0
    %2675 = vmatprep.subr.mxu0 0.0
    %2676 = vmatpush1.xpose.msra.mxu0 0.0
    %2677 = vmatprep.subr.mxu0 0.0
    %2678 = vmatpush1.xpose.msra.mxu0 0.0
    %2679 = vmatprep.subr.mxu0 0.0
    %2680 = vmatpush1.xpose.msra.mxu0 0.0
    %2681 = vmatprep.subr.mxu0 0.0
    %2682 = vmatpush1.xpose.msra.mxu0 0.0
    %2683 = vmatprep.subr.mxu0 0.0
    %2684 = vmatpush1.xpose.msra.mxu0 0.0
    %2685 = vmatprep.subr.mxu0 0.0
    %2686 = vmatpush1.xpose.msra.mxu0 0.0
    %2687 = vmatprep.subr.mxu0 0.0
    %2688 = vmatpush1.xpose.msra.mxu0 0.0
    %2689 = vmatprep.subr.mxu0 0.0
    %2690 = vmatpush1.xpose.msra.mxu0 0.0
    %2691 = vmatprep.subr.mxu0 0.0
    %2692 = vmatpush1.xpose.msra.mxu0 0.0
    %2693 = vmatprep.subr.mxu0 0.0
    %2694 = vmatpush1.xpose.msra.mxu0 0.0
    %2695 = vmatprep.subr.mxu0 0.0
    %2696 = vmatpush1.xpose.msra.mxu0 0.0
    %2697 = vmatprep.subr.mxu0 0.0
    %2698 = vmatpush1.xpose.msra.mxu0 0.0
    %2699 = vmatprep.subr.mxu0 0.0
    %2700 = vmatpush1.xpose.msra.mxu0 0.0
    %2701 = vmatprep.subr.mxu0 0.0
    %2702 = vmatpush1.xpose.msra.mxu0 %v2669
    %2703 = vmatprep.subr.mxu0 0.0
    %2704 = vmatpush2.xpose.msra.mxu0 0.0
    %2705 = vmatprep.subr.mxu0 0.0
    %2706 = vmatpush2.xpose.msra.mxu0 0.0
    %2707 = vmatprep.subr.mxu0 0.0
    %2708 = vmatpush2.xpose.msra.mxu0 0.0
    %2709 = vmatprep.subr.mxu0 0.0
    %2710 = vmatpush2.xpose.msra.mxu0 0.0
    %2711 = vmatprep.subr.mxu0 0.0
    %2712 = vmatpush2.xpose.msra.mxu0 0.0
    %2713 = vmatprep.subr.mxu0 0.0
    %2714 = vmatpush2.xpose.msra.mxu0 0.0
    %2715 = vmatprep.subr.mxu0 0.0
    %2716 = vmatpush2.xpose.msra.mxu0 0.0
    %2717 = vmatprep.subr.mxu0 0.0
    %2718 = vmatpush2.xpose.msra.mxu0 0.0
    %2719 = vmatprep.subr.mxu0 0.0
    %2720 = vmatpush2.xpose.msra.mxu0 0.0
    %2721 = vmatprep.subr.mxu0 0.0
    %2722 = vmatpush2.xpose.msra.mxu0 0.0
    %2723 = vmatprep.subr.mxu0 0.0
    %2724 = vmatpush2.xpose.msra.mxu0 0.0
    %2725 = vmatprep.subr.mxu0 0.0
    %2726 = vmatpush2.xpose.msra.mxu0 0.0
    %2727 = vmatprep.subr.mxu0 0.0
    %2728 = vmatpush2.xpose.msra.mxu0 0.0
    %2729 = vmatprep.subr.mxu0 0.0
    %2730 = vmatpush2.xpose.msra.mxu0 0.0
    %2731 = vmatprep.subr.mxu0 0.0
    %2732 = vmatpush2.xpose.msra.mxu0 0.0
    %2733 = vmatprep.subr.mxu0 0.0
    %2734 = vmatpush2.xpose.msra.mxu0 0.0
    %2735 = vmatprep.mubr.f32.mxu0 0.0
    %2736 = vmatmul.mubr.f32.gmra.mxu0 %v2665
    %v2737 = vpop.f32.mrf.mxu0
    %v2738 = vadd.f32 0.0, %v2737
    %v2739 = vpop.f32.mrf.mxu0
    %2740 = vmatprep.mubr.f32.mxu0 0.0
    %2741 = vmatmul.mubr.f32.gmra.mxu0 %v2667
    %v2742 = vpop.f32.mrf.mxu0
    %v2743 = vadd.f32 0.0, %v2742
    %v2744 = vpop.f32.mrf.mxu0
    %2745 = vdwg.mxu0
    %v2746 = vsel %vm1225, %v2129, -inf
    %2747 = vmax.xlane.f32.xlu0 %v2746
    %v2748 = vpop.xlane.xlu0 %2747
    %v2749 = vsel %vm1225, %v2134, -inf
    %2750 = vmax.xlane.f32.xlu0 %v2749
    %v2751 = vpop.xlane.xlu0 %2750
    %v2752 = vsel %vm1225, %v2216, -inf
    %2753 = vmax.xlane.f32.xlu0 %v2752
    %v2754 = vpop.xlane.xlu0 %2753
    %v2755 = vsel %vm1225, %v2221, -inf
    %2756 = vmax.xlane.f32.xlu0 %v2755
    %v2757 = vpop.xlane.xlu0 %2756
    %v2758 = vsel %vm1225, %v2303, -inf
    %2759 = vmax.xlane.f32.xlu0 %v2758
    %v2760 = vpop.xlane.xlu0 %2759
    %v2761 = vsel %vm1225, %v2308, -inf
    %2762 = vmax.xlane.f32.xlu0 %v2761
    %v2763 = vpop.xlane.xlu0 %2762
    %v2764 = vsel %vm1225, %v2390, -inf
    %2765 = vmax.xlane.f32.xlu0 %v2764
    %v2766 = vpop.xlane.xlu0 %2765
    %v2767 = vsel %vm1225, %v2395, -inf
    %2768 = vmax.xlane.f32.xlu0 %v2767
    %v2769 = vpop.xlane.xlu0 %2768
    %v2770 = vsel %vm1225, %v2477, -inf
    %2771 = vmax.xlane.f32.xlu0 %v2770
    %v2772 = vpop.xlane.xlu0 %2771
    %v2773 = vsel %vm1225, %v2482, -inf
    %2774 = vmax.xlane.f32.xlu0 %v2773
    %v2775 = vpop.xlane.xlu0 %2774
    %v2776 = vsel %vm1225, %v2564, -inf
    %2777 = vmax.xlane.f32.xlu0 %v2776
    %v2778 = vpop.xlane.xlu0 %2777
    %v2779 = vsel %vm1225, %v2569, -inf
    %2780 = vmax.xlane.f32.xlu0 %v2779
    %v2781 = vpop.xlane.xlu0 %2780
    %v2782 = vsel %vm1225, %v2651, -inf
    %2783 = vmax.xlane.f32.xlu0 %v2782
    %v2784 = vpop.xlane.xlu0 %2783
    %v2785 = vsel %vm1225, %v2656, -inf
    %2786 = vmax.xlane.f32.xlu0 %v2785
    %v2787 = vpop.xlane.xlu0 %2786
    %v2788 = vsel %vm1225, %v2738, -inf
    %2789 = vmax.xlane.f32.xlu0 %v2788
    %v2790 = vpop.xlane.xlu0 %2789
    %v2791 = vsel %vm1225, %v2743, -inf
    %2792 = vmax.xlane.f32.xlu0 %v2791
    %v2793 = vpop.xlane.xlu0 %2792
    %v2794 = vsub.f32 %v2129, %v2748
    %v2795 = vsub.f32 %v2134, %v2751
    %v2796 = vsub.f32 %v2216, %v2754
    %v2797 = vsub.f32 %v2221, %v2757
    %v2798 = vsub.f32 %v2303, %v2760
    %v2799 = vsub.f32 %v2308, %v2763
    %v2800 = vsub.f32 %v2390, %v2766
    %v2801 = vsub.f32 %v2395, %v2769
    %v2802 = vsub.f32 %v2477, %v2772
    %v2803 = vsub.f32 %v2482, %v2775
    %v2804 = vsub.f32 %v2564, %v2778
    %v2805 = vsub.f32 %v2569, %v2781
    %v2806 = vsub.f32 %v2651, %v2784
    %v2807 = vsub.f32 %v2656, %v2787
    %v2808 = vsub.f32 %v2738, %v2790
    %v2809 = vsub.f32 %v2743, %v2793
    %v2810 = vmul.f32 %v2794, 1.442695
    %v2811 = vpow.pop %v2810
    %v2812 = vmul.f32 %v2795, 1.442695
    %v2813 = vpow.pop %v2812
    %v2814 = vmul.f32 %v2796, 1.442695
    %v2815 = vpow.pop %v2814
    %v2816 = vmul.f32 %v2797, 1.442695
    %v2817 = vpow.pop %v2816
    %v2818 = vmul.f32 %v2798, 1.442695
    %v2819 = vpow.pop %v2818
    %v2820 = vmul.f32 %v2799, 1.442695
    %v2821 = vpow.pop %v2820
    %v2822 = vmul.f32 %v2800, 1.442695
    %v2823 = vpow.pop %v2822
    %v2824 = vmul.f32 %v2801, 1.442695
    %v2825 = vpow.pop %v2824
    %v2826 = vmul.f32 %v2802, 1.442695
    %v2827 = vpow.pop %v2826
    %v2828 = vmul.f32 %v2803, 1.442695
    %v2829 = vpow.pop %v2828
    %v2830 = vmul.f32 %v2804, 1.442695
    %v2831 = vpow.pop %v2830
    %v2832 = vmul.f32 %v2805, 1.442695
    %v2833 = vpow.pop %v2832
    %v2834 = vmul.f32 %v2806, 1.442695
    %v2835 = vpow.pop %v2834
    %v2836 = vmul.f32 %v2807, 1.442695
    %v2837 = vpow.pop %v2836
    %v2838 = vmul.f32 %v2808, 1.442695
    %v2839 = vpow.pop %v2838
    %v2840 = vmul.f32 %v2809, 1.442695
    %v2841 = vpow.pop %v2840
    %v2842 = vsel %vm1225, %v2811, 0.0
    %2843 = vadd.xlane.f32.xlu0 %v2842
    %v2844 = vpop.xlane.xlu0 %2843
    %v2845 = vsel %vm1225, %v2813, 0.0
    %2846 = vadd.xlane.f32.xlu0 %v2845
    %v2847 = vpop.xlane.xlu0 %2846
    %v2848 = vsel %vm1225, %v2815, 0.0
    %2849 = vadd.xlane.f32.xlu0 %v2848
    %v2850 = vpop.xlane.xlu0 %2849
    %v2851 = vsel %vm1225, %v2817, 0.0
    %2852 = vadd.xlane.f32.xlu0 %v2851
    %v2853 = vpop.xlane.xlu0 %2852
    %v2854 = vsel %vm1225, %v2819, 0.0
    %2855 = vadd.xlane.f32.xlu0 %v2854
    %v2856 = vpop.xlane.xlu0 %2855
    %v2857 = vsel %vm1225, %v2821, 0.0
    %2858 = vadd.xlane.f32.xlu0 %v2857
    %v2859 = vpop.xlane.xlu0 %2858
    %v2860 = vsel %vm1225, %v2823, 0.0
    %2861 = vadd.xlane.f32.xlu0 %v2860
    %v2862 = vpop.xlane.xlu0 %2861
    %v2863 = vsel %vm1225, %v2825, 0.0
    %2864 = vadd.xlane.f32.xlu0 %v2863
    %v2865 = vpop.xlane.xlu0 %2864
    %v2866 = vsel %vm1225, %v2827, 0.0
    %2867 = vadd.xlane.f32.xlu0 %v2866
    %v2868 = vpop.xlane.xlu0 %2867
    %v2869 = vsel %vm1225, %v2829, 0.0
    %2870 = vadd.xlane.f32.xlu0 %v2869
    %v2871 = vpop.xlane.xlu0 %2870
    %v2872 = vsel %vm1225, %v2831, 0.0
    %2873 = vadd.xlane.f32.xlu0 %v2872
    %v2874 = vpop.xlane.xlu0 %2873
    %v2875 = vsel %vm1225, %v2833, 0.0
    %2876 = vadd.xlane.f32.xlu0 %v2875
    %v2877 = vpop.xlane.xlu0 %2876
    %v2878 = vsel %vm1225, %v2835, 0.0
    %2879 = vadd.xlane.f32.xlu0 %v2878
    %v2880 = vpop.xlane.xlu0 %2879
    %v2881 = vsel %vm1225, %v2837, 0.0
    %2882 = vadd.xlane.f32.xlu0 %v2881
    %v2883 = vpop.xlane.xlu0 %2882
    %v2884 = vsel %vm1225, %v2839, 0.0
    %2885 = vadd.xlane.f32.xlu0 %v2884
    %v2886 = vpop.xlane.xlu0 %2885
    %v2887 = vsel %vm1225, %v2841, 0.0
    %2888 = vadd.xlane.f32.xlu0 %v2887
    %v2889 = vpop.xlane.xlu0 %2888
    %v2890 = vrcp.pop %v2844
    %v2891 = vrcp.pop %v2847
    %v2892 = vrcp.pop %v2850
    %v2893 = vrcp.pop %v2853
    %v2894 = vrcp.pop %v2856
    %v2895 = vrcp.pop %v2859
    %v2896 = vrcp.pop %v2862
    %v2897 = vrcp.pop %v2865
    %v2898 = vrcp.pop %v2868
    %v2899 = vrcp.pop %v2871
    %v2900 = vrcp.pop %v2874
    %v2901 = vrcp.pop %v2877
    %v2902 = vrcp.pop %v2880
    %v2903 = vrcp.pop %v2883
    %v2904 = vrcp.pop %v2886
    %v2905 = vrcp.pop %v2889
    %v2906 = vmul.f32 %v2811, %v2890
    %v2907 = vmul.f32 %v2813, %v2891
    %v2908 = vmul.f32 %v2815, %v2892
    %v2909 = vmul.f32 %v2817, %v2893
    %v2910 = vmul.f32 %v2819, %v2894
    %v2911 = vmul.f32 %v2821, %v2895
    %v2912 = vmul.f32 %v2823, %v2896
    %v2913 = vmul.f32 %v2825, %v2897
    %v2914 = vmul.f32 %v2827, %v2898
    %v2915 = vmul.f32 %v2829, %v2899
    %v2916 = vmul.f32 %v2831, %v2900
    %v2917 = vmul.f32 %v2833, %v2901
    %v2918 = vmul.f32 %v2835, %v2902
    %v2919 = vmul.f32 %v2837, %v2903
    %v2920 = vmul.f32 %v2839, %v2904
    %v2921 = vmul.f32 %v2841, %v2905
    %2923 = vrot.lane.b32.xlu0 %v515, 112
    %v2924 = vpop.permute.xlu0 %2923
    %v2927 = vsel %vm1225, %v2906, 0
    %v2930 = vsel %vm1225, %v2907, 0
    %2932 = vmatprep.subr.mxu0 0.0
    %2933 = vmatpush1.msra.mxu0 0.0
    %2934 = vmatprep.subr.mxu0 0.0
    %2935 = vmatpush1.msra.mxu0 0.0
    %2936 = vmatprep.subr.mxu0 0.0
    %2937 = vmatpush1.msra.mxu0 0.0
    %2938 = vmatprep.subr.mxu0 0.0
    %2939 = vmatpush1.msra.mxu0 0.0
    %2940 = vmatprep.subr.mxu0 0.0
    %2941 = vmatpush1.msra.mxu0 0.0
    %2942 = vmatprep.subr.mxu0 0.0
    %2943 = vmatpush1.msra.mxu0 0.0
    %2944 = vmatprep.subr.mxu0 0.0
    %2945 = vmatpush1.msra.mxu0 0.0
    %2946 = vmatprep.subr.mxu0 0.0
    %2947 = vmatpush1.msra.mxu0 0.0
    %2948 = vmatprep.subr.mxu0 0.0
    %2949 = vmatpush1.msra.mxu0 0.0
    %2950 = vmatprep.subr.mxu0 0.0
    %2951 = vmatpush1.msra.mxu0 0.0
    %2952 = vmatprep.subr.mxu0 0.0
    %2953 = vmatpush1.msra.mxu0 0.0
    %2954 = vmatprep.subr.mxu0 0.0
    %2955 = vmatpush1.msra.mxu0 0.0
    %2956 = vmatprep.subr.mxu0 0.0
    %2957 = vmatpush1.msra.mxu0 0.0
    %2958 = vmatprep.subr.mxu0 0.0
    %2959 = vmatpush1.msra.mxu0 0.0
    %2960 = vmatprep.subr.mxu0 0.0
    %2961 = vmatpush1.msra.mxu0 0.0
    %2962 = vmatprep.subr.mxu0 0.0
    %2963 = vmatpush1.msra.mxu0 %v2924
    %2964 = vmatprep.subr.mxu0 0.0
    %2965 = vmatpush2.msra.mxu0 0.0
    %2966 = vmatprep.subr.mxu0 0.0
    %2967 = vmatpush2.msra.mxu0 0.0
    %2968 = vmatprep.subr.mxu0 0.0
    %2969 = vmatpush2.msra.mxu0 0.0
    %2970 = vmatprep.subr.mxu0 0.0
    %2971 = vmatpush2.msra.mxu0 0.0
    %2972 = vmatprep.subr.mxu0 0.0
    %2973 = vmatpush2.msra.mxu0 0.0
    %2974 = vmatprep.subr.mxu0 0.0
    %2975 = vmatpush2.msra.mxu0 0.0
    %2976 = vmatprep.subr.mxu0 0.0
    %2977 = vmatpush2.msra.mxu0 0.0
    %2978 = vmatprep.subr.mxu0 0.0
    %2979 = vmatpush2.msra.mxu0 0.0
    %2980 = vmatprep.subr.mxu0 0.0
    %2981 = vmatpush2.msra.mxu0 0.0
    %2982 = vmatprep.subr.mxu0 0.0
    %2983 = vmatpush2.msra.mxu0 0.0
    %2984 = vmatprep.subr.mxu0 0.0
    %2985 = vmatpush2.msra.mxu0 0.0
    %2986 = vmatprep.subr.mxu0 0.0
    %2987 = vmatpush2.msra.mxu0 0.0
    %2988 = vmatprep.subr.mxu0 0.0
    %2989 = vmatpush2.msra.mxu0 0.0
    %2990 = vmatprep.subr.mxu0 0.0
    %2991 = vmatpush2.msra.mxu0 0.0
    %2992 = vmatprep.subr.mxu0 0.0
    %2993 = vmatpush2.msra.mxu0 0.0
    %2994 = vmatprep.subr.mxu0 0.0
    %2995 = vmatpush2.msra.mxu0 0.0
    %2996 = vmatprep.mubr.f32.mxu0 0.0
    %2997 = vmatmul.mubr.f32.gmra.mxu0 %v2927
    %v2998 = vpop.f32.mrf.mxu0
    %v2999 = vadd.f32 0.0, %v2998
    %v3000 = vpop.f32.mrf.mxu0
    %3001 = vmatprep.mubr.f32.mxu0 0.0
    %3002 = vmatmul.mubr.f32.gmra.mxu0 %v2930
    %v3003 = vpop.f32.mrf.mxu0
    %v3004 = vadd.f32 0.0, %v3003
    %v3005 = vpop.f32.mrf.mxu0
    %3006 = vdwg.mxu0
    %3008 = vrot.lane.b32.xlu0 %v520, 112
    %v3009 = vpop.permute.xlu0 %3008
    %v3012 = vsel %vm1225, %v2908, 0
    %v3015 = vsel %vm1225, %v2909, 0
    %3017 = vmatprep.subr.mxu0 0.0
    %3018 = vmatpush1.msra.mxu0 0.0
    %3019 = vmatprep.subr.mxu0 0.0
    %3020 = vmatpush1.msra.mxu0 0.0
    %3021 = vmatprep.subr.mxu0 0.0
    %3022 = vmatpush1.msra.mxu0 0.0
    %3023 = vmatprep.subr.mxu0 0.0
    %3024 = vmatpush1.msra.mxu0 0.0
    %3025 = vmatprep.subr.mxu0 0.0
    %3026 = vmatpush1.msra.mxu0 0.0
    %3027 = vmatprep.subr.mxu0 0.0
    %3028 = vmatpush1.msra.mxu0 0.0
    %3029 = vmatprep.subr.mxu0 0.0
    %3030 = vmatpush1.msra.mxu0 0.0
    %3031 = vmatprep.subr.mxu0 0.0
    %3032 = vmatpush1.msra.mxu0 0.0
    %3033 = vmatprep.subr.mxu0 0.0
    %3034 = vmatpush1.msra.mxu0 0.0
    %3035 = vmatprep.subr.mxu0 0.0
    %3036 = vmatpush1.msra.mxu0 0.0
    %3037 = vmatprep.subr.mxu0 0.0
    %3038 = vmatpush1.msra.mxu0 0.0
    %3039 = vmatprep.subr.mxu0 0.0
    %3040 = vmatpush1.msra.mxu0 0.0
    %3041 = vmatprep.subr.mxu0 0.0
    %3042 = vmatpush1.msra.mxu0 0.0
    %3043 = vmatprep.subr.mxu0 0.0
    %3044 = vmatpush1.msra.mxu0 0.0
    %3045 = vmatprep.subr.mxu0 0.0
    %3046 = vmatpush1.msra.mxu0 0.0
    %3047 = vmatprep.subr.mxu0 0.0
    %3048 = vmatpush1.msra.mxu0 %v3009
    %3049 = vmatprep.subr.mxu0 0.0
    %3050 = vmatpush2.msra.mxu0 0.0
    %3051 = vmatprep.subr.mxu0 0.0
    %3052 = vmatpush2.msra.mxu0 0.0
    %3053 = vmatprep.subr.mxu0 0.0
    %3054 = vmatpush2.msra.mxu0 0.0
    %3055 = vmatprep.subr.mxu0 0.0
    %3056 = vmatpush2.msra.mxu0 0.0
    %3057 = vmatprep.subr.mxu0 0.0
    %3058 = vmatpush2.msra.mxu0 0.0
    %3059 = vmatprep.subr.mxu0 0.0
    %3060 = vmatpush2.msra.mxu0 0.0
    %3061 = vmatprep.subr.mxu0 0.0
    %3062 = vmatpush2.msra.mxu0 0.0
    %3063 = vmatprep.subr.mxu0 0.0
    %3064 = vmatpush2.msra.mxu0 0.0
    %3065 = vmatprep.subr.mxu0 0.0
    %3066 = vmatpush2.msra.mxu0 0.0
    %3067 = vmatprep.subr.mxu0 0.0
    %3068 = vmatpush2.msra.mxu0 0.0
    %3069 = vmatprep.subr.mxu0 0.0
    %3070 = vmatpush2.msra.mxu0 0.0
    %3071 = vmatprep.subr.mxu0 0.0
    %3072 = vmatpush2.msra.mxu0 0.0
    %3073 = vmatprep.subr.mxu0 0.0
    %3074 = vmatpush2.msra.mxu0 0.0
    %3075 = vmatprep.subr.mxu0 0.0
    %3076 = vmatpush2.msra.mxu0 0.0
    %3077 = vmatprep.subr.mxu0 0.0
    %3078 = vmatpush2.msra.mxu0 0.0
    %3079 = vmatprep.subr.mxu0 0.0
    %3080 = vmatpush2.msra.mxu0 0.0
    %3081 = vmatprep.mubr.f32.mxu0 0.0
    %3082 = vmatmul.mubr.f32.gmra.mxu0 %v3012
    %v3083 = vpop.f32.mrf.mxu0
    %v3084 = vadd.f32 0.0, %v3083
    %v3085 = vpop.f32.mrf.mxu0
    %3086 = vmatprep.mubr.f32.mxu0 0.0
    %3087 = vmatmul.mubr.f32.gmra.mxu0 %v3015
    %v3088 = vpop.f32.mrf.mxu0
    %v3089 = vadd.f32 0.0, %v3088
    %v3090 = vpop.f32.mrf.mxu0
    %3091 = vdwg.mxu0
    %3093 = vrot.lane.b32.xlu0 %v525, 112
    %v3094 = vpop.permute.xlu0 %3093
    %v3097 = vsel %vm1225, %v2910, 0
    %v3100 = vsel %vm1225, %v2911, 0
    %3102 = vmatprep.subr.mxu0 0.0
    %3103 = vmatpush1.msra.mxu0 0.0
    %3104 = vmatprep.subr.mxu0 0.0
    %3105 = vmatpush1.msra.mxu0 0.0
    %3106 = vmatprep.subr.mxu0 0.0
    %3107 = vmatpush1.msra.mxu0 0.0
    %3108 = vmatprep.subr.mxu0 0.0
    %3109 = vmatpush1.msra.mxu0 0.0
    %3110 = vmatprep.subr.mxu0 0.0
    %3111 = vmatpush1.msra.mxu0 0.0
    %3112 = vmatprep.subr.mxu0 0.0
    %3113 = vmatpush1.msra.mxu0 0.0
    %3114 = vmatprep.subr.mxu0 0.0
    %3115 = vmatpush1.msra.mxu0 0.0
    %3116 = vmatprep.subr.mxu0 0.0
    %3117 = vmatpush1.msra.mxu0 0.0
    %3118 = vmatprep.subr.mxu0 0.0
    %3119 = vmatpush1.msra.mxu0 0.0
    %3120 = vmatprep.subr.mxu0 0.0
    %3121 = vmatpush1.msra.mxu0 0.0
    %3122 = vmatprep.subr.mxu0 0.0
    %3123 = vmatpush1.msra.mxu0 0.0
    %3124 = vmatprep.subr.mxu0 0.0
    %3125 = vmatpush1.msra.mxu0 0.0
    %3126 = vmatprep.subr.mxu0 0.0
    %3127 = vmatpush1.msra.mxu0 0.0
    %3128 = vmatprep.subr.mxu0 0.0
    %3129 = vmatpush1.msra.mxu0 0.0
    %3130 = vmatprep.subr.mxu0 0.0
    %3131 = vmatpush1.msra.mxu0 0.0
    %3132 = vmatprep.subr.mxu0 0.0
    %3133 = vmatpush1.msra.mxu0 %v3094
    %3134 = vmatprep.subr.mxu0 0.0
    %3135 = vmatpush2.msra.mxu0 0.0
    %3136 = vmatprep.subr.mxu0 0.0
    %3137 = vmatpush2.msra.mxu0 0.0
    %3138 = vmatprep.subr.mxu0 0.0
    %3139 = vmatpush2.msra.mxu0 0.0
    %3140 = vmatprep.subr.mxu0 0.0
    %3141 = vmatpush2.msra.mxu0 0.0
    %3142 = vmatprep.subr.mxu0 0.0
    %3143 = vmatpush2.msra.mxu0 0.0
    %3144 = vmatprep.subr.mxu0 0.0
    %3145 = vmatpush2.msra.mxu0 0.0
    %3146 = vmatprep.subr.mxu0 0.0
    %3147 = vmatpush2.msra.mxu0 0.0
    %3148 = vmatprep.subr.mxu0 0.0
    %3149 = vmatpush2.msra.mxu0 0.0
    %3150 = vmatprep.subr.mxu0 0.0
    %3151 = vmatpush2.msra.mxu0 0.0
    %3152 = vmatprep.subr.mxu0 0.0
    %3153 = vmatpush2.msra.mxu0 0.0
    %3154 = vmatprep.subr.mxu0 0.0
    %3155 = vmatpush2.msra.mxu0 0.0
    %3156 = vmatprep.subr.mxu0 0.0
    %3157 = vmatpush2.msra.mxu0 0.0
    %3158 = vmatprep.subr.mxu0 0.0
    %3159 = vmatpush2.msra.mxu0 0.0
    %3160 = vmatprep.subr.mxu0 0.0
    %3161 = vmatpush2.msra.mxu0 0.0
    %3162 = vmatprep.subr.mxu0 0.0
    %3163 = vmatpush2.msra.mxu0 0.0
    %3164 = vmatprep.subr.mxu0 0.0
    %3165 = vmatpush2.msra.mxu0 0.0
    %3166 = vmatprep.mubr.f32.mxu0 0.0
    %3167 = vmatmul.mubr.f32.gmra.mxu0 %v3097
    %v3168 = vpop.f32.mrf.mxu0
    %v3169 = vadd.f32 0.0, %v3168
    %v3170 = vpop.f32.mrf.mxu0
    %3171 = vmatprep.mubr.f32.mxu0 0.0
    %3172 = vmatmul.mubr.f32.gmra.mxu0 %v3100
    %v3173 = vpop.f32.mrf.mxu0
    %v3174 = vadd.f32 0.0, %v3173
    %v3175 = vpop.f32.mrf.mxu0
    %3176 = vdwg.mxu0
    %3178 = vrot.lane.b32.xlu0 %v530, 112
    %v3179 = vpop.permute.xlu0 %3178
    %v3182 = vsel %vm1225, %v2912, 0
    %v3185 = vsel %vm1225, %v2913, 0
    %3187 = vmatprep.subr.mxu0 0.0
    %3188 = vmatpush1.msra.mxu0 0.0
    %3189 = vmatprep.subr.mxu0 0.0
    %3190 = vmatpush1.msra.mxu0 0.0
    %3191 = vmatprep.subr.mxu0 0.0
    %3192 = vmatpush1.msra.mxu0 0.0
    %3193 = vmatprep.subr.mxu0 0.0
    %3194 = vmatpush1.msra.mxu0 0.0
    %3195 = vmatprep.subr.mxu0 0.0
    %3196 = vmatpush1.msra.mxu0 0.0
    %3197 = vmatprep.subr.mxu0 0.0
    %3198 = vmatpush1.msra.mxu0 0.0
    %3199 = vmatprep.subr.mxu0 0.0
    %3200 = vmatpush1.msra.mxu0 0.0
    %3201 = vmatprep.subr.mxu0 0.0
    %3202 = vmatpush1.msra.mxu0 0.0
    %3203 = vmatprep.subr.mxu0 0.0
    %3204 = vmatpush1.msra.mxu0 0.0
    %3205 = vmatprep.subr.mxu0 0.0
    %3206 = vmatpush1.msra.mxu0 0.0
    %3207 = vmatprep.subr.mxu0 0.0
    %3208 = vmatpush1.msra.mxu0 0.0
    %3209 = vmatprep.subr.mxu0 0.0
    %3210 = vmatpush1.msra.mxu0 0.0
    %3211 = vmatprep.subr.mxu0 0.0
    %3212 = vmatpush1.msra.mxu0 0.0
    %3213 = vmatprep.subr.mxu0 0.0
    %3214 = vmatpush1.msra.mxu0 0.0
    %3215 = vmatprep.subr.mxu0 0.0
    %3216 = vmatpush1.msra.mxu0 0.0
    %3217 = vmatprep.subr.mxu0 0.0
    %3218 = vmatpush1.msra.mxu0 %v3179
    %3219 = vmatprep.subr.mxu0 0.0
    %3220 = vmatpush2.msra.mxu0 0.0
    %3221 = vmatprep.subr.mxu0 0.0
    %3222 = vmatpush2.msra.mxu0 0.0
    %3223 = vmatprep.subr.mxu0 0.0
    %3224 = vmatpush2.msra.mxu0 0.0
    %3225 = vmatprep.subr.mxu0 0.0
    %3226 = vmatpush2.msra.mxu0 0.0
    %3227 = vmatprep.subr.mxu0 0.0
    %3228 = vmatpush2.msra.mxu0 0.0
    %3229 = vmatprep.subr.mxu0 0.0
    %3230 = vmatpush2.msra.mxu0 0.0
    %3231 = vmatprep.subr.mxu0 0.0
    %3232 = vmatpush2.msra.mxu0 0.0
    %3233 = vmatprep.subr.mxu0 0.0
    %3234 = vmatpush2.msra.mxu0 0.0
    %3235 = vmatprep.subr.mxu0 0.0
    %3236 = vmatpush2.msra.mxu0 0.0
    %3237 = vmatprep.subr.mxu0 0.0
    %3238 = vmatpush2.msra.mxu0 0.0
    %3239 = vmatprep.subr.mxu0 0.0
    %3240 = vmatpush2.msra.mxu0 0.0
    %3241 = vmatprep.subr.mxu0 0.0
    %3242 = vmatpush2.msra.mxu0 0.0
    %3243 = vmatprep.subr.mxu0 0.0
    %3244 = vmatpush2.msra.mxu0 0.0
    %3245 = vmatprep.subr.mxu0 0.0
    %3246 = vmatpush2.msra.mxu0 0.0
    %3247 = vmatprep.subr.mxu0 0.0
    %3248 = vmatpush2.msra.mxu0 0.0
    %3249 = vmatprep.subr.mxu0 0.0
    %3250 = vmatpush2.msra.mxu0 0.0
    %3251 = vmatprep.mubr.f32.mxu0 0.0
    %3252 = vmatmul.mubr.f32.gmra.mxu0 %v3182
    %v3253 = vpop.f32.mrf.mxu0
    %v3254 = vadd.f32 0.0, %v3253
    %v3255 = vpop.f32.mrf.mxu0
    %3256 = vmatprep.mubr.f32.mxu0 0.0
    %3257 = vmatmul.mubr.f32.gmra.mxu0 %v3185
    %v3258 = vpop.f32.mrf.mxu0
    %v3259 = vadd.f32 0.0, %v3258
    %v3260 = vpop.f32.mrf.mxu0
    %3261 = vdwg.mxu0
    %3263 = vrot.lane.b32.xlu0 %v535, 112
    %v3264 = vpop.permute.xlu0 %3263
    %v3267 = vsel %vm1225, %v2914, 0
    %v3270 = vsel %vm1225, %v2915, 0
    %3272 = vmatprep.subr.mxu0 0.0
    %3273 = vmatpush1.msra.mxu0 0.0
    %3274 = vmatprep.subr.mxu0 0.0
    %3275 = vmatpush1.msra.mxu0 0.0
    %3276 = vmatprep.subr.mxu0 0.0
    %3277 = vmatpush1.msra.mxu0 0.0
    %3278 = vmatprep.subr.mxu0 0.0
    %3279 = vmatpush1.msra.mxu0 0.0
    %3280 = vmatprep.subr.mxu0 0.0
    %3281 = vmatpush1.msra.mxu0 0.0
    %3282 = vmatprep.subr.mxu0 0.0
    %3283 = vmatpush1.msra.mxu0 0.0
    %3284 = vmatprep.subr.mxu0 0.0
    %3285 = vmatpush1.msra.mxu0 0.0
    %3286 = vmatprep.subr.mxu0 0.0
    %3287 = vmatpush1.msra.mxu0 0.0
    %3288 = vmatprep.subr.mxu0 0.0
    %3289 = vmatpush1.msra.mxu0 0.0
    %3290 = vmatprep.subr.mxu0 0.0
    %3291 = vmatpush1.msra.mxu0 0.0
    %3292 = vmatprep.subr.mxu0 0.0
    %3293 = vmatpush1.msra.mxu0 0.0
    %3294 = vmatprep.subr.mxu0 0.0
    %3295 = vmatpush1.msra.mxu0 0.0
    %3296 = vmatprep.subr.mxu0 0.0
    %3297 = vmatpush1.msra.mxu0 0.0
    %3298 = vmatprep.subr.mxu0 0.0
    %3299 = vmatpush1.msra.mxu0 0.0
    %3300 = vmatprep.subr.mxu0 0.0
    %3301 = vmatpush1.msra.mxu0 0.0
    %3302 = vmatprep.subr.mxu0 0.0
    %3303 = vmatpush1.msra.mxu0 %v3264
    %3304 = vmatprep.subr.mxu0 0.0
    %3305 = vmatpush2.msra.mxu0 0.0
    %3306 = vmatprep.subr.mxu0 0.0
    %3307 = vmatpush2.msra.mxu0 0.0
    %3308 = vmatprep.subr.mxu0 0.0
    %3309 = vmatpush2.msra.mxu0 0.0
    %3310 = vmatprep.subr.mxu0 0.0
    %3311 = vmatpush2.msra.mxu0 0.0
    %3312 = vmatprep.subr.mxu0 0.0
    %3313 = vmatpush2.msra.mxu0 0.0
    %3314 = vmatprep.subr.mxu0 0.0
    %3315 = vmatpush2.msra.mxu0 0.0
    %3316 = vmatprep.subr.mxu0 0.0
    %3317 = vmatpush2.msra.mxu0 0.0
    %3318 = vmatprep.subr.mxu0 0.0
    %3319 = vmatpush2.msra.mxu0 0.0
    %3320 = vmatprep.subr.mxu0 0.0
    %3321 = vmatpush2.msra.mxu0 0.0
    %3322 = vmatprep.subr.mxu0 0.0
    %3323 = vmatpush2.msra.mxu0 0.0
    %3324 = vmatprep.subr.mxu0 0.0
    %3325 = vmatpush2.msra.mxu0 0.0
    %3326 = vmatprep.subr.mxu0 0.0
    %3327 = vmatpush2.msra.mxu0 0.0
    %3328 = vmatprep.subr.mxu0 0.0
    %3329 = vmatpush2.msra.mxu0 0.0
    %3330 = vmatprep.subr.mxu0 0.0
    %3331 = vmatpush2.msra.mxu0 0.0
    %3332 = vmatprep.subr.mxu0 0.0
    %3333 = vmatpush2.msra.mxu0 0.0
    %3334 = vmatprep.subr.mxu0 0.0
    %3335 = vmatpush2.msra.mxu0 0.0
    %3336 = vmatprep.mubr.f32.mxu0 0.0
    %3337 = vmatmul.mubr.f32.gmra.mxu0 %v3267
    %v3338 = vpop.f32.mrf.mxu0
    %v3339 = vadd.f32 0.0, %v3338
    %v3340 = vpop.f32.mrf.mxu0
    %3341 = vmatprep.mubr.f32.mxu0 0.0
    %3342 = vmatmul.mubr.f32.gmra.mxu0 %v3270
    %v3343 = vpop.f32.mrf.mxu0
    %v3344 = vadd.f32 0.0, %v3343
    %v3345 = vpop.f32.mrf.mxu0
    %3346 = vdwg.mxu0
    %3348 = vrot.lane.b32.xlu0 %v540, 112
    %v3349 = vpop.permute.xlu0 %3348
    %v3352 = vsel %vm1225, %v2916, 0
    %v3355 = vsel %vm1225, %v2917, 0
    %3357 = vmatprep.subr.mxu0 0.0
    %3358 = vmatpush1.msra.mxu0 0.0
    %3359 = vmatprep.subr.mxu0 0.0
    %3360 = vmatpush1.msra.mxu0 0.0
    %3361 = vmatprep.subr.mxu0 0.0
    %3362 = vmatpush1.msra.mxu0 0.0
    %3363 = vmatprep.subr.mxu0 0.0
    %3364 = vmatpush1.msra.mxu0 0.0
    %3365 = vmatprep.subr.mxu0 0.0
    %3366 = vmatpush1.msra.mxu0 0.0
    %3367 = vmatprep.subr.mxu0 0.0
    %3368 = vmatpush1.msra.mxu0 0.0
    %3369 = vmatprep.subr.mxu0 0.0
    %3370 = vmatpush1.msra.mxu0 0.0
    %3371 = vmatprep.subr.mxu0 0.0
    %3372 = vmatpush1.msra.mxu0 0.0
    %3373 = vmatprep.subr.mxu0 0.0
    %3374 = vmatpush1.msra.mxu0 0.0
    %3375 = vmatprep.subr.mxu0 0.0
    %3376 = vmatpush1.msra.mxu0 0.0
    %3377 = vmatprep.subr.mxu0 0.0
    %3378 = vmatpush1.msra.mxu0 0.0
    %3379 = vmatprep.subr.mxu0 0.0
    %3380 = vmatpush1.msra.mxu0 0.0
    %3381 = vmatprep.subr.mxu0 0.0
    %3382 = vmatpush1.msra.mxu0 0.0
    %3383 = vmatprep.subr.mxu0 0.0
    %3384 = vmatpush1.msra.mxu0 0.0
    %3385 = vmatprep.subr.mxu0 0.0
    %3386 = vmatpush1.msra.mxu0 0.0
    %3387 = vmatprep.subr.mxu0 0.0
    %3388 = vmatpush1.msra.mxu0 %v3349
    %3389 = vmatprep.subr.mxu0 0.0
    %3390 = vmatpush2.msra.mxu0 0.0
    %3391 = vmatprep.subr.mxu0 0.0
    %3392 = vmatpush2.msra.mxu0 0.0
    %3393 = vmatprep.subr.mxu0 0.0
    %3394 = vmatpush2.msra.mxu0 0.0
    %3395 = vmatprep.subr.mxu0 0.0
    %3396 = vmatpush2.msra.mxu0 0.0
    %3397 = vmatprep.subr.mxu0 0.0
    %3398 = vmatpush2.msra.mxu0 0.0
    %3399 = vmatprep.subr.mxu0 0.0
    %3400 = vmatpush2.msra.mxu0 0.0
    %3401 = vmatprep.subr.mxu0 0.0
    %3402 = vmatpush2.msra.mxu0 0.0
    %3403 = vmatprep.subr.mxu0 0.0
    %3404 = vmatpush2.msra.mxu0 0.0
    %3405 = vmatprep.subr.mxu0 0.0
    %3406 = vmatpush2.msra.mxu0 0.0
    %3407 = vmatprep.subr.mxu0 0.0
    %3408 = vmatpush2.msra.mxu0 0.0
    %3409 = vmatprep.subr.mxu0 0.0
    %3410 = vmatpush2.msra.mxu0 0.0
    %3411 = vmatprep.subr.mxu0 0.0
    %3412 = vmatpush2.msra.mxu0 0.0
    %3413 = vmatprep.subr.mxu0 0.0
    %3414 = vmatpush2.msra.mxu0 0.0
    %3415 = vmatprep.subr.mxu0 0.0
    %3416 = vmatpush2.msra.mxu0 0.0
    %3417 = vmatprep.subr.mxu0 0.0
    %3418 = vmatpush2.msra.mxu0 0.0
    %3419 = vmatprep.subr.mxu0 0.0
    %3420 = vmatpush2.msra.mxu0 0.0
    %3421 = vmatprep.mubr.f32.mxu0 0.0
    %3422 = vmatmul.mubr.f32.gmra.mxu0 %v3352
    %v3423 = vpop.f32.mrf.mxu0
    %v3424 = vadd.f32 0.0, %v3423
    %v3425 = vpop.f32.mrf.mxu0
    %3426 = vmatprep.mubr.f32.mxu0 0.0
    %3427 = vmatmul.mubr.f32.gmra.mxu0 %v3355
    %v3428 = vpop.f32.mrf.mxu0
    %v3429 = vadd.f32 0.0, %v3428
    %v3430 = vpop.f32.mrf.mxu0
    %3431 = vdwg.mxu0
    %3433 = vrot.lane.b32.xlu0 %v545, 112
    %v3434 = vpop.permute.xlu0 %3433
    %v3437 = vsel %vm1225, %v2918, 0
    %v3440 = vsel %vm1225, %v2919, 0
    %3442 = vmatprep.subr.mxu0 0.0
    %3443 = vmatpush1.msra.mxu0 0.0
    %3444 = vmatprep.subr.mxu0 0.0
    %3445 = vmatpush1.msra.mxu0 0.0
    %3446 = vmatprep.subr.mxu0 0.0
    %3447 = vmatpush1.msra.mxu0 0.0
    %3448 = vmatprep.subr.mxu0 0.0
    %3449 = vmatpush1.msra.mxu0 0.0
    %3450 = vmatprep.subr.mxu0 0.0
    %3451 = vmatpush1.msra.mxu0 0.0
    %3452 = vmatprep.subr.mxu0 0.0
    %3453 = vmatpush1.msra.mxu0 0.0
    %3454 = vmatprep.subr.mxu0 0.0
    %3455 = vmatpush1.msra.mxu0 0.0
    %3456 = vmatprep.subr.mxu0 0.0
    %3457 = vmatpush1.msra.mxu0 0.0
    %3458 = vmatprep.subr.mxu0 0.0
    %3459 = vmatpush1.msra.mxu0 0.0
    %3460 = vmatprep.subr.mxu0 0.0
    %3461 = vmatpush1.msra.mxu0 0.0
    %3462 = vmatprep.subr.mxu0 0.0
    %3463 = vmatpush1.msra.mxu0 0.0
    %3464 = vmatprep.subr.mxu0 0.0
    %3465 = vmatpush1.msra.mxu0 0.0
    %3466 = vmatprep.subr.mxu0 0.0
    %3467 = vmatpush1.msra.mxu0 0.0
    %3468 = vmatprep.subr.mxu0 0.0
    %3469 = vmatpush1.msra.mxu0 0.0
    %3470 = vmatprep.subr.mxu0 0.0
    %3471 = vmatpush1.msra.mxu0 0.0
    %3472 = vmatprep.subr.mxu0 0.0
    %3473 = vmatpush1.msra.mxu0 %v3434
    %3474 = vmatprep.subr.mxu0 0.0
    %3475 = vmatpush2.msra.mxu0 0.0
    %3476 = vmatprep.subr.mxu0 0.0
    %3477 = vmatpush2.msra.mxu0 0.0
    %3478 = vmatprep.subr.mxu0 0.0
    %3479 = vmatpush2.msra.mxu0 0.0
    %3480 = vmatprep.subr.mxu0 0.0
    %3481 = vmatpush2.msra.mxu0 0.0
    %3482 = vmatprep.subr.mxu0 0.0
    %3483 = vmatpush2.msra.mxu0 0.0
    %3484 = vmatprep.subr.mxu0 0.0
    %3485 = vmatpush2.msra.mxu0 0.0
    %3486 = vmatprep.subr.mxu0 0.0
    %3487 = vmatpush2.msra.mxu0 0.0
    %3488 = vmatprep.subr.mxu0 0.0
    %3489 = vmatpush2.msra.mxu0 0.0
    %3490 = vmatprep.subr.mxu0 0.0
    %3491 = vmatpush2.msra.mxu0 0.0
    %3492 = vmatprep.subr.mxu0 0.0
    %3493 = vmatpush2.msra.mxu0 0.0
    %3494 = vmatprep.subr.mxu0 0.0
    %3495 = vmatpush2.msra.mxu0 0.0
    %3496 = vmatprep.subr.mxu0 0.0
    %3497 = vmatpush2.msra.mxu0 0.0
    %3498 = vmatprep.subr.mxu0 0.0
    %3499 = vmatpush2.msra.mxu0 0.0
    %3500 = vmatprep.subr.mxu0 0.0
    %3501 = vmatpush2.msra.mxu0 0.0
    %3502 = vmatprep.subr.mxu0 0.0
    %3503 = vmatpush2.msra.mxu0 0.0
    %3504 = vmatprep.subr.mxu0 0.0
    %3505 = vmatpush2.msra.mxu0 0.0
    %3506 = vmatprep.mubr.f32.mxu0 0.0
    %3507 = vmatmul.mubr.f32.gmra.mxu0 %v3437
    %v3508 = vpop.f32.mrf.mxu0
    %v3509 = vadd.f32 0.0, %v3508
    %v3510 = vpop.f32.mrf.mxu0
    %3511 = vmatprep.mubr.f32.mxu0 0.0
    %3512 = vmatmul.mubr.f32.gmra.mxu0 %v3440
    %v3513 = vpop.f32.mrf.mxu0
    %v3514 = vadd.f32 0.0, %v3513
    %v3515 = vpop.f32.mrf.mxu0
    %3516 = vdwg.mxu0
    %3518 = vrot.lane.b32.xlu0 %v550, 112
    %v3519 = vpop.permute.xlu0 %3518
    %v3522 = vsel %vm1225, %v2920, 0
    %v3525 = vsel %vm1225, %v2921, 0
    %3527 = vmatprep.subr.mxu0 0.0
    %3528 = vmatpush1.msra.mxu0 0.0
    %3529 = vmatprep.subr.mxu0 0.0
    %3530 = vmatpush1.msra.mxu0 0.0
    %3531 = vmatprep.subr.mxu0 0.0
    %3532 = vmatpush1.msra.mxu0 0.0
    %3533 = vmatprep.subr.mxu0 0.0
    %3534 = vmatpush1.msra.mxu0 0.0
    %3535 = vmatprep.subr.mxu0 0.0
    %3536 = vmatpush1.msra.mxu0 0.0
    %3537 = vmatprep.subr.mxu0 0.0
    %3538 = vmatpush1.msra.mxu0 0.0
    %3539 = vmatprep.subr.mxu0 0.0
    %3540 = vmatpush1.msra.mxu0 0.0
    %3541 = vmatprep.subr.mxu0 0.0
    %3542 = vmatpush1.msra.mxu0 0.0
    %3543 = vmatprep.subr.mxu0 0.0
    %3544 = vmatpush1.msra.mxu0 0.0
    %3545 = vmatprep.subr.mxu0 0.0
    %3546 = vmatpush1.msra.mxu0 0.0
    %3547 = vmatprep.subr.mxu0 0.0
    %3548 = vmatpush1.msra.mxu0 0.0
    %3549 = vmatprep.subr.mxu0 0.0
    %3550 = vmatpush1.msra.mxu0 0.0
    %3551 = vmatprep.subr.mxu0 0.0
    %3552 = vmatpush1.msra.mxu0 0.0
    %3553 = vmatprep.subr.mxu0 0.0
    %3554 = vmatpush1.msra.mxu0 0.0
    %3555 = vmatprep.subr.mxu0 0.0
    %3556 = vmatpush1.msra.mxu0 0.0
    %3557 = vmatprep.subr.mxu0 0.0
    %3558 = vmatpush1.msra.mxu0 %v3519
    %3559 = vmatprep.subr.mxu0 0.0
    %3560 = vmatpush2.msra.mxu0 0.0
    %3561 = vmatprep.subr.mxu0 0.0
    %3562 = vmatpush2.msra.mxu0 0.0
    %3563 = vmatprep.subr.mxu0 0.0
    %3564 = vmatpush2.msra.mxu0 0.0
    %3565 = vmatprep.subr.mxu0 0.0
    %3566 = vmatpush2.msra.mxu0 0.0
    %3567 = vmatprep.subr.mxu0 0.0
    %3568 = vmatpush2.msra.mxu0 0.0
    %3569 = vmatprep.subr.mxu0 0.0
    %3570 = vmatpush2.msra.mxu0 0.0
    %3571 = vmatprep.subr.mxu0 0.0
    %3572 = vmatpush2.msra.mxu0 0.0
    %3573 = vmatprep.subr.mxu0 0.0
    %3574 = vmatpush2.msra.mxu0 0.0
    %3575 = vmatprep.subr.mxu0 0.0
    %3576 = vmatpush2.msra.mxu0 0.0
    %3577 = vmatprep.subr.mxu0 0.0
    %3578 = vmatpush2.msra.mxu0 0.0
    %3579 = vmatprep.subr.mxu0 0.0
    %3580 = vmatpush2.msra.mxu0 0.0
    %3581 = vmatprep.subr.mxu0 0.0
    %3582 = vmatpush2.msra.mxu0 0.0
    %3583 = vmatprep.subr.mxu0 0.0
    %3584 = vmatpush2.msra.mxu0 0.0
    %3585 = vmatprep.subr.mxu0 0.0
    %3586 = vmatpush2.msra.mxu0 0.0
    %3587 = vmatprep.subr.mxu0 0.0
    %3588 = vmatpush2.msra.mxu0 0.0
    %3589 = vmatprep.subr.mxu0 0.0
    %3590 = vmatpush2.msra.mxu0 0.0
    %3591 = vmatprep.mubr.f32.mxu0 0.0
    %3592 = vmatmul.mubr.f32.gmra.mxu0 %v3522
    %v3593 = vpop.f32.mrf.mxu0
    %v3594 = vadd.f32 0.0, %v3593
    %v3595 = vpop.f32.mrf.mxu0
    %3596 = vmatprep.mubr.f32.mxu0 0.0
    %3597 = vmatmul.mubr.f32.gmra.mxu0 %v3525
    %v3598 = vpop.f32.mrf.mxu0
    %v3599 = vadd.f32 0.0, %v3598
    %v3600 = vpop.f32.mrf.mxu0
    %3601 = vdwg.mxu0
    %3618 = vrot.lane.b32.xlu0 %v2999, 16
    %v3619 = vpop.permute.xlu0 %3618
    %3620 = vrot.lane.b32.xlu0 %v3004, 16
    %v3621 = vpop.permute.xlu0 %3620
    %3622 = vrot.lane.b32.xlu0 %v3084, 16
    %v3623 = vpop.permute.xlu0 %3622
    %3624 = vrot.lane.b32.xlu0 %v3089, 16
    %v3625 = vpop.permute.xlu0 %3624
    %3626 = vrot.lane.b32.xlu0 %v3169, 16
    %v3627 = vpop.permute.xlu0 %3626
    %3628 = vrot.lane.b32.xlu0 %v3174, 16
    %v3629 = vpop.permute.xlu0 %3628
    %3630 = vrot.lane.b32.xlu0 %v3254, 16
    %v3631 = vpop.permute.xlu0 %3630
    %3632 = vrot.lane.b32.xlu0 %v3259, 16
    %v3633 = vpop.permute.xlu0 %3632
    %3634 = vrot.lane.b32.xlu0 %v3339, 16
    %v3635 = vpop.permute.xlu0 %3634
    %3636 = vrot.lane.b32.xlu0 %v3344, 16
    %v3637 = vpop.permute.xlu0 %3636
    %3638 = vrot.lane.b32.xlu0 %v3424, 16
    %v3639 = vpop.permute.xlu0 %3638
    %3640 = vrot.lane.b32.xlu0 %v3429, 16
    %v3641 = vpop.permute.xlu0 %3640
    %3642 = vrot.lane.b32.xlu0 %v3509, 16
    %v3643 = vpop.permute.xlu0 %3642
    %3644 = vrot.lane.b32.xlu0 %v3514, 16
    %v3645 = vpop.permute.xlu0 %3644
    %3646 = vrot.lane.b32.xlu0 %v3594, 16
    %v3647 = vpop.permute.xlu0 %3646
    %3648 = vrot.lane.b32.xlu0 %v3599, 16
    %v3649 = vpop.permute.xlu0 %3648
    %v3666 = vsel %vm80, %v1475, %v3619
    %v3667 = vsel %vm80, %v1480, %v3621
    %v3668 = vsel %vm80, %v1556, %v3623
    %v3669 = vsel %vm80, %v1561, %v3625
    %v3670 = vsel %vm80, %v1637, %v3627
    %v3671 = vsel %vm80, %v1642, %v3629
    %v3672 = vsel %vm80, %v1718, %v3631
    %v3673 = vsel %vm80, %v1723, %v3633
    %v3674 = vsel %vm80, %v1799, %v3635
    %v3675 = vsel %vm80, %v1804, %v3637
    %v3676 = vsel %vm80, %v1880, %v3639
    %v3677 = vsel %vm80, %v1885, %v3641
    %v3678 = vsel %vm80, %v1961, %v3643
    %v3679 = vsel %vm80, %v1966, %v3645
    %v3680 = vsel %vm80, %v2042, %v3647
    %v3681 = vsel %vm80, %v2047, %v3649
    %v3682 = vld [vmem:[%s9] sm:$0xff]
    %v3683 = vld [vmem:[%s9 + $0x8] sm:$0xff]
    %v3684 = vld [vmem:[%s9 + $0x10] sm:$0xff]
    %v3685 = vld [vmem:[%s9 + $0x18] sm:$0xff]
    %v3686 = vld [vmem:[%s10] sm:$0x1]
    %v3688 = vlaneseq
    %v3689 = vshrl.u32 %v3688, 7
    %v3690 = vsub.s32 0, %v3689
    %v3691 = vrot.slane %v3686, %v3690
    %vm3693 = vcmask 261120
    %v3695 = vsel %vm3693, %v3666, 0
    %v3698 = vsel %vm3693, %v3667, 0
    %v3701 = vsel %vm3693, %v3668, 0
    %v3704 = vsel %vm3693, %v3669, 0
    %v3707 = vsel %vm3693, %v3670, 0
    %v3710 = vsel %vm3693, %v3671, 0
    %v3713 = vsel %vm3693, %v3672, 0
    %v3716 = vsel %vm3693, %v3673, 0
    %v3719 = vsel %vm3693, %v3674, 0
    %v3722 = vsel %vm3693, %v3675, 0
    %v3725 = vsel %vm3693, %v3676, 0
    %v3728 = vsel %vm3693, %v3677, 0
    %v3731 = vsel %vm3693, %v3678, 0
    %v3734 = vsel %vm3693, %v3679, 0
    %v3737 = vsel %vm3693, %v3680, 0
    %v3740 = vsel %vm3693, %v3681, 0
    %3742 = vmatprep.subr.mxu0 0.0
    %3743 = vmatpush1.msra.mxu0 0.0
    %3744 = vmatprep.subr.mxu0 0.0
    %3745 = vmatpush1.msra.mxu0 0.0
    %3746 = vmatprep.subr.mxu0 0.0
    %3747 = vmatpush1.msra.mxu0 0.0
    %3748 = vmatprep.subr.mxu0 0.0
    %3749 = vmatpush1.msra.mxu0 0.0
    %3750 = vmatprep.subr.mxu0 0.0
    %3751 = vmatpush1.msra.mxu0 0.0
    %3752 = vmatprep.subr.mxu0 0.0
    %3753 = vmatpush1.msra.mxu0 0.0
    %3754 = vmatprep.subr.mxu0 0.0
    %3755 = vmatpush1.msra.mxu0 0.0
    %3756 = vmatprep.subr.mxu0 0.0
    %3757 = vmatpush1.msra.mxu0 0.0
    %3758 = vmatprep.subr.mxu0 0.0
    %3759 = vmatpush1.msra.mxu0 0.0
    %3760 = vmatprep.subr.mxu0 0.0
    %3761 = vmatpush1.msra.mxu0 0.0
    %3762 = vmatprep.subr.mxu0 0.0
    %3763 = vmatpush1.msra.mxu0 0.0
    %3764 = vmatprep.subr.mxu0 0.0
    %3765 = vmatpush1.msra.mxu0 0.0
    %3766 = vmatprep.subr.mxu0 0.0
    %3767 = vmatpush1.msra.mxu0 %v3685
    %3768 = vmatprep.subr.mxu0 0.0
    %3769 = vmatpush1.msra.mxu0 %v3684
    %3770 = vmatprep.subr.mxu0 0.0
    %3771 = vmatpush1.msra.mxu0 %v3683
    %3772 = vmatprep.subr.mxu0 0.0
    %3773 = vmatpush1.msra.mxu0 %v3682
    %3774 = vmatprep.subr.mxu0 0.0
    %3775 = vmatpush2.msra.mxu0 0.0
    %3776 = vmatprep.subr.mxu0 0.0
    %3777 = vmatpush2.msra.mxu0 0.0
    %3778 = vmatprep.subr.mxu0 0.0
    %3779 = vmatpush2.msra.mxu0 0.0
    %3780 = vmatprep.subr.mxu0 0.0
    %3781 = vmatpush2.msra.mxu0 0.0
    %3782 = vmatprep.subr.mxu0 0.0
    %3783 = vmatpush2.msra.mxu0 0.0
    %3784 = vmatprep.subr.mxu0 0.0
    %3785 = vmatpush2.msra.mxu0 0.0
    %3786 = vmatprep.subr.mxu0 0.0
    %3787 = vmatpush2.msra.mxu0 0.0
    %3788 = vmatprep.subr.mxu0 0.0
    %3789 = vmatpush2.msra.mxu0 0.0
    %3790 = vmatprep.subr.mxu0 0.0
    %3791 = vmatpush2.msra.mxu0 0.0
    %3792 = vmatprep.subr.mxu0 0.0
    %3793 = vmatpush2.msra.mxu0 0.0
    %3794 = vmatprep.subr.mxu0 0.0
    %3795 = vmatpush2.msra.mxu0 0.0
    %3796 = vmatprep.subr.mxu0 0.0
    %3797 = vmatpush2.msra.mxu0 0.0
    %3798 = vmatprep.subr.mxu0 0.0
    %3799 = vmatpush2.msra.mxu0 0.0
    %3800 = vmatprep.subr.mxu0 0.0
    %3801 = vmatpush2.msra.mxu0 0.0
    %3802 = vmatprep.subr.mxu0 0.0
    %3803 = vmatpush2.msra.mxu0 0.0
    %3804 = vmatprep.subr.mxu0 0.0
    %3805 = vmatpush2.msra.mxu0 0.0
    %3806 = vmatprep.mubr.f32.mxu0 0.0
    %3807 = vmatmul.mubr.f32.gmra.mxu0 %v3695
    %v3808 = vpop.f32.mrf.mxu0
    %v3809 = vadd.f32 %v3691, %v3808
    %v3810 = vpop.f32.mrf.mxu0
    %3811 = vmatprep.mubr.f32.mxu0 0.0
    %3812 = vmatmul.mubr.f32.gmra.mxu0 %v3698
    %v3813 = vpop.f32.mrf.mxu0
    %v3814 = vadd.f32 %v3691, %v3813
    %v3815 = vpop.f32.mrf.mxu0
    %3816 = vmatprep.mubr.f32.mxu0 0.0
    %3817 = vmatmul.mubr.f32.gmra.mxu0 %v3701
    %v3818 = vpop.f32.mrf.mxu0
    %v3819 = vadd.f32 %v3691, %v3818
    %v3820 = vpop.f32.mrf.mxu0
    %3821 = vmatprep.mubr.f32.mxu0 0.0
    %3822 = vmatmul.mubr.f32.gmra.mxu0 %v3704
    %v3823 = vpop.f32.mrf.mxu0
    %v3824 = vadd.f32 %v3691, %v3823
    %v3825 = vpop.f32.mrf.mxu0
    %3826 = vmatprep.mubr.f32.mxu0 0.0
    %3827 = vmatmul.mubr.f32.gmra.mxu0 %v3707
    %v3828 = vpop.f32.mrf.mxu0
    %v3829 = vadd.f32 %v3691, %v3828
    %v3830 = vpop.f32.mrf.mxu0
    %3831 = vmatprep.mubr.f32.mxu0 0.0
    %3832 = vmatmul.mubr.f32.gmra.mxu0 %v3710
    %v3833 = vpop.f32.mrf.mxu0
    %v3834 = vadd.f32 %v3691, %v3833
    %v3835 = vpop.f32.mrf.mxu0
    %3836 = vmatprep.mubr.f32.mxu0 0.0
    %3837 = vmatmul.mubr.f32.gmra.mxu0 %v3713
    %v3838 = vpop.f32.mrf.mxu0
    %v3839 = vadd.f32 %v3691, %v3838
    %v3840 = vpop.f32.mrf.mxu0
    %3841 = vmatprep.mubr.f32.mxu0 0.0
    %3842 = vmatmul.mubr.f32.gmra.mxu0 %v3716
    %v3843 = vpop.f32.mrf.mxu0
    %v3844 = vadd.f32 %v3691, %v3843
    %v3845 = vpop.f32.mrf.mxu0
    %3846 = vmatprep.mubr.f32.mxu0 0.0
    %3847 = vmatmul.mubr.f32.gmra.mxu0 %v3719
    %v3848 = vpop.f32.mrf.mxu0
    %v3849 = vadd.f32 %v3691, %v3848
    %v3850 = vpop.f32.mrf.mxu0
    %3851 = vmatprep.mubr.f32.mxu0 0.0
    %3852 = vmatmul.mubr.f32.gmra.mxu0 %v3722
    %v3853 = vpop.f32.mrf.mxu0
    %v3854 = vadd.f32 %v3691, %v3853
    %v3855 = vpop.f32.mrf.mxu0
    %3856 = vmatprep.mubr.f32.mxu0 0.0
    %3857 = vmatmul.mubr.f32.gmra.mxu0 %v3725
    %v3858 = vpop.f32.mrf.mxu0
    %v3859 = vadd.f32 %v3691, %v3858
    %v3860 = vpop.f32.mrf.mxu0
    %3861 = vmatprep.mubr.f32.mxu0 0.0
    %3862 = vmatmul.mubr.f32.gmra.mxu0 %v3728
    %v3863 = vpop.f32.mrf.mxu0
    %v3864 = vadd.f32 %v3691, %v3863
    %v3865 = vpop.f32.mrf.mxu0
    %3866 = vmatprep.mubr.f32.mxu0 0.0
    %3867 = vmatmul.mubr.f32.gmra.mxu0 %v3731
    %v3868 = vpop.f32.mrf.mxu0
    %v3869 = vadd.f32 %v3691, %v3868
    %v3870 = vpop.f32.mrf.mxu0
    %3871 = vmatprep.mubr.f32.mxu0 0.0
    %3872 = vmatmul.mubr.f32.gmra.mxu0 %v3734
    %v3873 = vpop.f32.mrf.mxu0
    %v3874 = vadd.f32 %v3691, %v3873
    %v3875 = vpop.f32.mrf.mxu0
    %3876 = vmatprep.mubr.f32.mxu0 0.0
    %3877 = vmatmul.mubr.f32.gmra.mxu0 %v3737
    %v3878 = vpop.f32.mrf.mxu0
    %v3879 = vadd.f32 %v3691, %v3878
    %v3880 = vpop.f32.mrf.mxu0
    %3881 = vmatprep.mubr.f32.mxu0 0.0
    %3882 = vmatmul.mubr.f32.gmra.mxu0 %v3740
    %v3883 = vpop.f32.mrf.mxu0
    %v3884 = vadd.f32 %v3691, %v3883
    %v3885 = vpop.f32.mrf.mxu0
    %3886 = vdwg.mxu0
    %3887 = vst.msk [vmem:[#allocation2] sm:$0xff] %vm3693, %v3809
    %3888 = vst.msk [vmem:[#allocation2 + $0x8] sm:$0xff] %vm3693, %v3814
    %3889 = vst.msk [vmem:[#allocation2 + $0x10] sm:$0xff] %vm3693, %v3819
    %3890 = vst.msk [vmem:[#allocation2 + $0x18] sm:$0xff] %vm3693, %v3824
    %3891 = vst.msk [vmem:[#allocation2 + $0x20] sm:$0xff] %vm3693, %v3829
    %3892 = vst.msk [vmem:[#allocation2 + $0x28] sm:$0xff] %vm3693, %v3834
    %3893 = vst.msk [vmem:[#allocation2 + $0x30] sm:$0xff] %vm3693, %v3839
    %3894 = vst.msk [vmem:[#allocation2 + $0x38] sm:$0xff] %vm3693, %v3844
    %3895 = vst.msk [vmem:[#allocation2 + $0x40] sm:$0xff] %vm3693, %v3849
    %3896 = vst.msk [vmem:[#allocation2 + $0x48] sm:$0xff] %vm3693, %v3854
    %3897 = vst.msk [vmem:[#allocation2 + $0x50] sm:$0xff] %vm3693, %v3859
    %3898 = vst.msk [vmem:[#allocation2 + $0x58] sm:$0xff] %vm3693, %v3864
    %3899 = vst.msk [vmem:[#allocation2 + $0x60] sm:$0xff] %vm3693, %v3869
    %3900 = vst.msk [vmem:[#allocation2 + $0x68] sm:$0xff] %vm3693, %v3874
    %3901 = vst.msk [vmem:[#allocation2 + $0x70] sm:$0xff] %vm3693, %v3879
    %3902 = vst.msk [vmem:[#allocation2 + $0x78] sm:$0xff] %vm3693, %v3884
    // Predicated region
    $region46: #{cross_attention_layer.1} parent=1 // pred_check
      _
    $region47: #{cross_attention_layer.1} parent=1 // pred_check_branch
      %3904 = sbr.rel (0) target = $region49
    $region48: #{cross_attention_layer.1} parent=1 // pred_region
      %s3906 = ssub.s32 2048, 2048
      %3907 = vsyncadd [#allocation3], %s3906
      %s3908 = sshll.u32 [#allocation2], 4
      %s3909 = int_to_ptr.vmem [resolvable:$true] %s3908
      %3914 = dma.vmem_to_hbm [thread:$0]  %s3909, 2048, %s11, [#allocation3], 128, 128, 8
    $region49: #{cross_attention_layer.1} parent=1 // pred_fallthru
      _
    // Predicated region
    $region50: #{cross_attention_layer.1} parent=1 // pred_check
      _
    $region51: #{cross_attention_layer.1} parent=1 // pred_check_branch
      %3916 = sbr.rel (0) target = $region53
    $region52: #{cross_attention_layer.1} parent=1 // pred_region
      %3917 = dma.done [#allocation3], 2048
    $region53: #{cross_attention_layer.1} parent=1 // pred_fallthru
      _
    %3918 = vsyncpa [#allocation3], 1

</llo_original>
